<compile_context>
chip_gen: v7x
topology: tpu7x:2x2x1
jax: 0.10.0
libtpu: 0.0.40
codegen_flags: <defaults>
</compile_context>

<pallas_src>
import functools

import jax
import jax.numpy as jnp
from jax import lax
from jax.experimental import pallas as pl
from jax.experimental.pallas import tpu as pltpu

LN_EPS = 1e-5                      # PyTorch nn.LayerNorm default
NEG_INF = -1e30


def _default_vmem_limit():
    # ~56 MiB on v7x (64 MiB physical), up to 100 MiB on v5e/v6e (128 MiB).
    try:
        cap = int(pltpu.get_tpu_info().vmem_capacity_bytes)
    except Exception:
        cap = 64 * 1024 * 1024
    return max(32 * 1024 * 1024, min(cap - 8 * 1024 * 1024, 100 * 1024 * 1024))


_VMEM_LIMIT = _default_vmem_limit()


# ----------------------------------------------------------------------------
# Shared math helpers (used both inside Pallas kernels and in the reference)
# ----------------------------------------------------------------------------
def _layernorm(x, gamma, beta):
    mu = jnp.mean(x, axis=-1, keepdims=True)
    var = jnp.mean(jnp.square(x - mu), axis=-1, keepdims=True)
    return (x - mu) * lax.rsqrt(var + LN_EPS) * gamma + beta


def _gelu_exact(x):
    # PyTorch nn.GELU() default (approximate='none'): 0.5*x*(1+erf(x/sqrt(2)))
    return 0.5 * x * (1.0 + lax.erf(x * 0.7071067811865476))


def _mxu_dot(a, b):
    # bf16 MXU operands, f32 accumulation.  (astype is a no-op for the bf16-
    # stored weights, so only the activation operand is actually cast.)
    return jnp.dot(a.astype(jnp.bfloat16), b.astype(jnp.bfloat16),
                   preferred_element_type=jnp.float32)


def _mxu_einsum(eq, a, b):
    return jnp.einsum(eq, a.astype(jnp.bfloat16), b.astype(jnp.bfloat16),
                      preferred_element_type=jnp.float32)


# ----------------------------------------------------------------------------
# Kernels
# ----------------------------------------------------------------------------
def patch_embed_kernel(x_ref, g1_ref, b1_ref, w_ref, bw_ref, g2_ref, b2_ref, o_ref):
    x = x_ref[...]                                       # (Rt, patch_dim) f32
    xn = _layernorm(x, g1_ref[...], b1_ref[...])
    y = _mxu_dot(xn, w_ref[...]) + bw_ref[...]           # w is bf16
    o_ref[...] = _layernorm(y, g2_ref[...], b2_ref[...])


def transformer_layer_kernel(x_ref, pos_ref, ga_ref, ba_ref, wqkv_ref, wo_ref,
                             bo_ref, gf_ref, bf_ref, w1_ref, b1_ref, w2_ref,
                             b2_ref, o_ref, x_vmem, attn_vmem,
                             *, heads, dim_head, scale, n_real):
    layer = pl.program_id(1)
    inner = heads * dim_head
    Bt, N, D = x_vmem.shape

    # Residual stream lives in VMEM scratch across the depth ("arbitrary")
    # axis; the positional-embedding add is folded into layer 0.
    @pl.when(layer == 0)
    def _():
        x_vmem[...] = x_ref[...] + pos_ref[...]

    x = x_vmem[...].reshape(Bt * N, D)                   # (Bt*N, D) f32

    # ---------------- attention ----------------
    xn = _layernorm(x, ga_ref[...], ba_ref[...])
    qkv = _mxu_dot(xn, wqkv_ref[...])                    # one fused (Bt*N, 3*inner) matmul

    if n_real < N:                                       # mask padded key columns
        col = lax.broadcasted_iota(jnp.int32, (1, 1, N), 2)
        kmask = jnp.where(col < n_real, 0.0, NEG_INF).astype(jnp.float32)
    else:
        kmask = None

    for h in range(heads):                               # small static unroll
        q = qkv[:, h * dim_head:(h + 1) * dim_head].reshape(Bt, N, dim_head)
        k = qkv[:, inner + h * dim_head:
                   inner + (h + 1) * dim_head].reshape(Bt, N, dim_head)
        v = qkv[:, 2 * inner + h * dim_head:
                   2 * inner + (h + 1) * dim_head].reshape(Bt, N, dim_head)
        # contract on the last dims -> no XLU transpose of k
        dots = _mxu_einsum('bnd,bmd->bnm', q, k) * scale
        if kmask is not None:
            dots = dots + kmask
        dots = dots - jnp.max(dots, axis=-1, keepdims=True)
        e = jnp.exp(dots)
        p = e * pl.reciprocal(jnp.sum(e, axis=-1, keepdims=True), approx=True)
        # write this head's output straight into the (Bt, N, inner) slab
        attn_vmem[..., h * dim_head:(h + 1) * dim_head] = _mxu_einsum(
            'bnm,bmd->bnd', p, v)

    attn_out = attn_vmem[...].reshape(Bt * N, inner)
    x = x + _mxu_dot(attn_out, wo_ref[...]) + bo_ref[...]    # single out projection

    # ---------------- feed-forward ----------------
    xn = _layernorm(x, gf_ref[...], bf_ref[...])
    h1 = _gelu_exact(_mxu_dot(xn, w1_ref[...]) + b1_ref[...])
    x = x + _mxu_dot(h1, w2_ref[...]) + b2_ref[...]

    x_vmem[...] = x.reshape(Bt, N, D)

    @pl.when(layer == pl.num_programs(1) - 1)
    def _():
        o_ref[...] = x.reshape(Bt, N, D)


def head_kernel(x_ref, g_ref, b_ref, w_ref, bw_ref, o_ref):
    # x_ref: (B, D) cls rows only.  Final transformer LayerNorm commutes with
    # the cls-row slice, so it is applied here.
    xn = _layernorm(x_ref[...], g_ref[...], b_ref[...])
    o_ref[...] = _mxu_dot(xn, w_ref[...]) + bw_ref[...]  # (B, ncp) lane-dense


# ----------------------------------------------------------------------------
# pallas_call wrappers
# ----------------------------------------------------------------------------
def _row_tile(rows, max_tile=1024):
    for t in (max_tile, 512, 256, 128, 64, 32, 16, 8):
        if t <= rows and rows % t == 0:
            return t
    return rows


def patch_embed(patches, p):
    # patches: (R, patch_dim) with R = B * num_patches  (flattened rows)
    R, Pd = patches.shape
    D = p["w"].shape[1]
    rt = _row_tile(R)
    return pl.pallas_call(
        patch_embed_kernel,
        out_shape=jax.ShapeDtypeStruct((R, D), jnp.float32),
        grid=(R // rt,),
        in_specs=[pl.BlockSpec((rt, Pd), lambda i: (i, 0)),
                  pl.BlockSpec((1, Pd), lambda i: (0, 0)),
                  pl.BlockSpec((1, Pd), lambda i: (0, 0)),
                  pl.BlockSpec((Pd, D), lambda i: (0, 0)),
                  pl.BlockSpec((1, D), lambda i: (0, 0)),
                  pl.BlockSpec((1, D), lambda i: (0, 0)),
                  pl.BlockSpec((1, D), lambda i: (0, 0))],
        out_specs=pl.BlockSpec((rt, D), lambda i: (i, 0)),
        compiler_params=pltpu.CompilerParams(
            dimension_semantics=("parallel",), vmem_limit_bytes=_VMEM_LIMIT),
    )(patches, p["g1"], p["b1"], p["w"], p["bw"], p["g2"], p["b2"])


def transformer(x, pos, tb, cfg, *, n_real, batch_block=1):
    B, N, D = x.shape
    depth = cfg["depth"]
    H, dh, mlp = cfg["heads"], cfg["dim_head"], cfg["mlp_dim"]
    inner = H * dh
    Bt = min(batch_block, B)
    assert B % Bt == 0, (B, Bt)

    def wspec(*shape):
        nd = len(shape)
        return pl.BlockSpec((None,) + shape, lambda b, l, _nd=nd: (l,) + (0,) * _nd)

    kern = functools.partial(transformer_layer_kernel, heads=H, dim_head=dh,
                             scale=dh ** -0.5, n_real=n_real)
    return pl.pallas_call(
        kern,
        out_shape=jax.ShapeDtypeStruct((B, N, D), jnp.float32),
        grid=(B // Bt, depth),
        in_specs=[pl.BlockSpec((Bt, N, D), lambda b, l: (b, 0, 0)),      # x
                  pl.BlockSpec((None, N, D), lambda b, l: (0, 0, 0)),    # pos
                  wspec(1, D), wspec(1, D),                              # attn LN
                  wspec(D, 3 * inner), wspec(inner, D), wspec(1, D),     # qkv, out proj
                  wspec(1, D), wspec(1, D),                              # ff LN
                  wspec(D, mlp), wspec(1, mlp),                          # w1, b1
                  wspec(mlp, D), wspec(1, D)],                           # w2, b2
        out_specs=pl.BlockSpec((Bt, N, D), lambda b, l: (b, 0, 0)),
        scratch_shapes=[pltpu.VMEM((Bt, N, D), jnp.float32),             # residual
                        pltpu.VMEM((Bt, N, inner), jnp.float32)],        # head slab
        compiler_params=pltpu.CompilerParams(
            dimension_semantics=("parallel", "arbitrary"),
            vmem_limit_bytes=_VMEM_LIMIT),
    )(x, pos, tb["ga"], tb["ba"], tb["wqkv"], tb["wo"], tb["bo"],
      tb["gf"], tb["bf"], tb["w1"], tb["b1"], tb["w2"], tb["b2"])


def head(x_cls, p):
    # x_cls: (B, D) cls rows sliced outside the kernel.
    B, D = x_cls.shape
    nc = p["w"].shape[1]
    ncp = ((nc + 127) // 128) * 128                      # lane-dense padded classes
    w = jnp.pad(p["w"], ((0, 0), (0, ncp - nc)))
    bw = jnp.pad(p["bw"], ((0, 0), (0, ncp - nc)))
    out = pl.pallas_call(
        head_kernel,
        out_shape=jax.ShapeDtypeStruct((B, ncp), jnp.float32),
        grid=(1,),
        in_specs=[pl.BlockSpec((B, D), lambda i: (0, 0)),
                  pl.BlockSpec((1, D), lambda i: (0, 0)),
                  pl.BlockSpec((1, D), lambda i: (0, 0)),
                  pl.BlockSpec((D, ncp), lambda i: (0, 0)),
                  pl.BlockSpec((1, ncp), lambda i: (0, 0))],
        out_specs=pl.BlockSpec((B, ncp), lambda i: (0, 0)),
        compiler_params=pltpu.CompilerParams(vmem_limit_bytes=_VMEM_LIMIT),
    )(x_cls, p["g"], p["b"], w, bw)
    return out[:, :nc]


# ----------------------------------------------------------------------------
# Full forward pass (Pallas kernels + minimal JAX glue)
# ----------------------------------------------------------------------------
def _to_patches(img, cfg):
    # einops: 'b c (h p1) (w p2) -> b (h w) (p1 p2 c)'
    B, C, H, W = img.shape
    ph = pw = cfg["patch_size"]
    h, w = H // ph, W // pw
    x = img.reshape(B, C, h, ph, w, pw)
    x = x.transpose(0, 2, 4, 3, 5, 1)
    return x.reshape(B, h * w, ph * pw * C)


def vit_forward(img, params, cfg, *, batch_block=1):
    B = img.shape[0]
    D = cfg["dim"]

    patches = _to_patches(img, cfg)                      # (B, Np, Pd)
    _, Np, Pd = patches.shape
    x = patch_embed(patches.reshape(B * Np, Pd), params["patch"])
    x = x.reshape(B, Np, D)

    # cls-token concat + sublane-aligned sequence padding (JAX glue).
    cls = jnp.broadcast_to(params["cls_token"], (B, 1, D)).astype(jnp.float32)
    x = jnp.concatenate([cls, x], axis=1)                # (B, Np+1, D)
    n_real = Np + 1
    n_pad = ((n_real + 7) // 8) * 8
    x = jnp.pad(x, ((0, 0), (0, n_pad - n_real), (0, 0)))
    pos = jnp.pad(params["pos_embedding"][:, :n_real],
                  ((0, 0), (0, n_pad - n_real), (0, 0)))
    # emb dropout p=0 -> identity; pos add is fused into transformer layer 0.

    x = transformer(x, pos, params["tblock"], cfg,
                    n_real=n_real, batch_block=batch_block)

    return head(x[:, 0, :], params["head"])              # final LN + cls pool + classifier


# ----------------------------------------------------------------------------
# Pure-JAX reference (mirrors the kernel math, incl. bf16 matmul operands)
# ----------------------------------------------------------------------------
def vit_reference(img, params, cfg):
    B = img.shape[0]
    D, H, dh = cfg["dim"], cfg["heads"], cfg["dim_head"]
    inner = H * dh
    scale = dh ** -0.5

    x = _to_patches(img, cfg)
    pp = params["patch"]
    x = _layernorm(x, pp["g1"], pp["b1"])
    x = _mxu_dot(x, pp["w"]) + pp["bw"]
    x = _layernorm(x, pp["g2"], pp["b2"])

    cls = jnp.broadcast_to(params["cls_token"], (B, 1, D)).astype(jnp.float32)
    x = jnp.concatenate([cls, x], axis=1)
    x = x + params["pos_embedding"][:, : x.shape[1]]

    tb = params["tblock"]
    for l in range(cfg["depth"]):
        xn = _layernorm(x, tb["ga"][l], tb["ba"][l])
        qkv = _mxu_dot(xn, tb["wqkv"][l])
        heads_out = []
        for h in range(H):
            q = qkv[..., h * dh:(h + 1) * dh]
            k = qkv[..., inner + h * dh: inner + (h + 1) * dh]
            v = qkv[..., 2 * inner + h * dh: 2 * inner + (h + 1) * dh]
            dots = _mxu_einsum("bnd,bmd->bnm", q, k) * scale
            dots = dots - jnp.max(dots, axis=-1, keepdims=True)
            e = jnp.exp(dots)
            p = e / jnp.sum(e, axis=-1, keepdims=True)
            heads_out.append(_mxu_einsum("bnm,bmd->bnd", p, v))
        attn_out = jnp.concatenate(heads_out, axis=-1)
        x = _mxu_dot(attn_out, tb["wo"][l]) + tb["bo"][l] + x

        xn = _layernorm(x, tb["gf"][l], tb["bf"][l])
        h1 = _gelu_exact(_mxu_dot(xn, tb["w1"][l]) + tb["b1"][l])
        x = _mxu_dot(h1, tb["w2"][l]) + tb["b2"][l] + x

    hp = params["head"]
    cls_tok = _layernorm(x[:, 0, :], hp["g"], hp["b"])
    return _mxu_dot(cls_tok, hp["w"]) + hp["bw"]


# ----------------------------------------------------------------------------
# Deterministic parameter init (shapes match the PyTorch module's __init__;
# per-layer weights stacked along a leading depth axis; weight matrices bf16)
# ----------------------------------------------------------------------------
def init_params(key, cfg):
    D, H, dh = cfg["dim"], cfg["heads"], cfg["dim_head"]
    inner = H * dh
    mlp, nc = cfg["mlp_dim"], cfg["num_classes"]
    Pd = cfg["channels"] * cfg["patch_size"] ** 2
    Np = (cfg["image_size"] // cfg["patch_size"]) ** 2
    depth = cfg["depth"]

    keys = iter(jax.random.split(key, 64))

    def nrm(shape, std=0.05, dtype=jnp.float32):
        return (std * jax.random.normal(next(keys), shape)).astype(dtype)

    def gamma(shape):
        return (jnp.ones(shape) + 0.1 * jax.random.normal(next(keys), shape)).astype(jnp.float32)

    def beta(shape):
        return (0.1 * jax.random.normal(next(keys), shape)).astype(jnp.float32)

    bf16 = jnp.bfloat16
    params = {
        "patch": {"g1": gamma((1, Pd)), "b1": beta((1, Pd)),
                  "w": nrm((Pd, D), dtype=bf16), "bw": nrm((1, D)),
                  "g2": gamma((1, D)), "b2": beta((1, D))},
        "cls_token": nrm((1, 1, D), std=1.0),
        "pos_embedding": nrm((1, Np + 1, D), std=1.0),
        "tblock": {
            "ga": gamma((depth, 1, D)), "ba": beta((depth, 1, D)),
            "wqkv": nrm((depth, D, 3 * inner), dtype=bf16),   # Linear(dim, inner*3, bias=False)
            "wo": nrm((depth, inner, D), dtype=bf16),          # Linear(inner, dim)
            "bo": nrm((depth, 1, D)),
            "gf": gamma((depth, 1, D)), "bf": beta((depth, 1, D)),
            "w1": nrm((depth, D, mlp), dtype=bf16), "b1": nrm((depth, 1, mlp)),
            "w2": nrm((depth, mlp, D), dtype=bf16), "b2": nrm((depth, 1, D)),
        },
        "head": {"g": gamma((1, D)), "b": beta((1, D)),
                 "w": nrm((D, nc), dtype=bf16), "bw": nrm((1, nc))},
    }
    return params


# ----------------------------------------------------------------------------
if __name__ == "__main__":
    cfg = dict(image_size=16, patch_size=4, channels=4, dim=32, depth=2,
               heads=4, dim_head=8, mlp_dim=64, num_classes=10)

    key = jax.random.PRNGKey(0)
    k_img, k_par = jax.random.split(key)
    img = jax.random.normal(
        k_img, (2, cfg["channels"], cfg["image_size"], cfg["image_size"]),
        dtype=jnp.float32)                               # NCHW, like PyTorch
    params = init_params(k_par, cfg)

    # batch_block=1 keeps B//Bt = 2 "parallel" grid steps (both TCs on v7x);
    # use 2-4 for realistic ViT sizes to amortize weight DMA.
    fwd = jax.jit(lambda im, pr: vit_forward(im, pr, cfg, batch_block=1))
    ref_fn = jax.jit(lambda im, pr: vit_reference(im, pr, cfg))

    out = jax.block_until_ready(fwd(img, params))        # (B, num_classes)
    ref = jax.block_until_ready(ref_fn(img, params))

    assert out.shape == (2, cfg["num_classes"])
    # bf16 matmul operands are mirrored in the reference; remaining delta is the
    # approximate (EUP) reciprocal in the kernel softmax -> modest tolerance.
    assert jnp.allclose(out, ref, atol=1e-2, rtol=1e-2), (out, ref)

    print("KERNEL_OK")
</pallas_src>

<mosaic_0001>
module attributes {stable_mosaic.version = 11 : i64} {
  func.func @patch_embed_kernel(%arg0: i32, %arg1: memref<32x64xf32, #tpu.memory_space<vmem>>, %arg2: memref<1x64xf32, #tpu.memory_space<vmem>>, %arg3: memref<1x64xf32, #tpu.memory_space<vmem>>, %arg4: memref<64x32xbf16, #tpu.memory_space<vmem>>, %arg5: memref<1x32xf32, #tpu.memory_space<vmem>>, %arg6: memref<1x32xf32, #tpu.memory_space<vmem>>, %arg7: memref<1x32xf32, #tpu.memory_space<vmem>>, %arg8: memref<32x32xf32, #tpu.memory_space<vmem>>) attributes {dimension_semantics = [#tpu.dimension_semantics<parallel>], iteration_bounds = array<i64: 1>, scalar_prefetch = 0 : i64, scratch_operands = 0 : i64, tpu.core_type = #tpu.core_type<tc>, window_params = [{transform_indices = @transform_0, window_bounds = array<i64: 32, 64>}, {pipeline_mode = #tpu.pipeline_mode<synchronous>, transform_indices = @transform_1, window_bounds = array<i64: 1, 64>}, {pipeline_mode = #tpu.pipeline_mode<synchronous>, transform_indices = @transform_2, window_bounds = array<i64: 1, 64>}, {pipeline_mode = #tpu.pipeline_mode<synchronous>, transform_indices = @transform_3, window_bounds = array<i64: 64, 32>}, {pipeline_mode = #tpu.pipeline_mode<synchronous>, transform_indices = @transform_4, window_bounds = array<i64: 1, 32>}, {pipeline_mode = #tpu.pipeline_mode<synchronous>, transform_indices = @transform_5, window_bounds = array<i64: 1, 32>}, {pipeline_mode = #tpu.pipeline_mode<synchronous>, transform_indices = @transform_6, window_bounds = array<i64: 1, 32>}, {transform_indices = @transform_7, window_bounds = array<i64: 32, 32>}]} {
    %c0 = arith.constant 0 : index
    %c0_0 = arith.constant 0 : index
    %0 = vector.load %arg1[%c0, %c0_0] : memref<32x64xf32, #tpu.memory_space<vmem>>, vector<32x64xf32>
    %c0_1 = arith.constant 0 : index
    %c0_2 = arith.constant 0 : index
    %1 = vector.load %arg2[%c0_1, %c0_2] : memref<1x64xf32, #tpu.memory_space<vmem>>, vector<1x64xf32>
    %c0_3 = arith.constant 0 : index
    %c0_4 = arith.constant 0 : index
    %2 = vector.load %arg3[%c0_3, %c0_4] : memref<1x64xf32, #tpu.memory_space<vmem>>, vector<1x64xf32>
    %cst = arith.constant dense<0.000000e+00> : vector<32xf32>
    %3 = vector.multi_reduction <add>, %0, %cst [1] : vector<32x64xf32> to vector<32xf32>
    %4 = vector.shape_cast %3 : vector<32xf32> to vector<32x1xf32>
    %cst_5 = arith.constant 6.400000e+01 : f32
    %5 = vector.broadcast %cst_5 : f32 to vector<32x1xf32>
    %6 = arith.divf %4, %5 : vector<32x1xf32>
    %7 = vector.broadcast %6 : vector<32x1xf32> to vector<32x64xf32>
    %8 = arith.subf %0, %7 : vector<32x64xf32>
    %9 = arith.mulf %8, %8 : vector<32x64xf32>
    %cst_6 = arith.constant dense<0.000000e+00> : vector<32xf32>
    %10 = vector.multi_reduction <add>, %9, %cst_6 [1] : vector<32x64xf32> to vector<32xf32>
    %11 = vector.shape_cast %10 : vector<32xf32> to vector<32x1xf32>
    %cst_7 = arith.constant 6.400000e+01 : f32
    %12 = vector.broadcast %cst_7 : f32 to vector<32x1xf32>
    %13 = arith.divf %11, %12 : vector<32x1xf32>
    %14 = vector.broadcast %6 : vector<32x1xf32> to vector<32x64xf32>
    %15 = arith.subf %0, %14 : vector<32x64xf32>
    %cst_8 = arith.constant 9.99999974E-6 : f32
    %16 = vector.broadcast %cst_8 : f32 to vector<32x1xf32>
    %17 = arith.addf %13, %16 : vector<32x1xf32>
    %18 = math.rsqrt %17 : vector<32x1xf32>
    %19 = vector.broadcast %18 : vector<32x1xf32> to vector<32x64xf32>
    %20 = arith.mulf %15, %19 : vector<32x64xf32>
    %21 = vector.broadcast %1 : vector<1x64xf32> to vector<32x64xf32>
    %22 = arith.mulf %20, %21 : vector<32x64xf32>
    %23 = vector.broadcast %2 : vector<1x64xf32> to vector<32x64xf32>
    %24 = arith.addf %22, %23 : vector<32x64xf32>
    %c0_9 = arith.constant 0 : index
    %c0_10 = arith.constant 0 : index
    %25 = vector.load %arg4[%c0_9, %c0_10] : memref<64x32xbf16, #tpu.memory_space<vmem>>, vector<64x32xbf16>
    %26 = arith.truncf %24 : vector<32x64xf32> to vector<32x64xbf16>
    %cst_11 = arith.constant dense<0.000000e+00> : vector<32x32xf32>
    %27 = tpu.matmul %26, %25, %cst_11 {dimension_numbers = #tpu.dot_dimension_numbers<[1], [0], [0], [1], [0, 0, 1, 1], [], []>} : vector<32x64xbf16>, vector<64x32xbf16>, vector<32x32xf32> -> vector<32x32xf32>
    %c0_12 = arith.constant 0 : index
    %c0_13 = arith.constant 0 : index
    %28 = vector.load %arg5[%c0_12, %c0_13] : memref<1x32xf32, #tpu.memory_space<vmem>>, vector<1x32xf32>
    %29 = vector.broadcast %28 : vector<1x32xf32> to vector<32x32xf32>
    %30 = arith.addf %27, %29 : vector<32x32xf32>
    %c0_14 = arith.constant 0 : index
    %c0_15 = arith.constant 0 : index
    %31 = vector.load %arg6[%c0_14, %c0_15] : memref<1x32xf32, #tpu.memory_space<vmem>>, vector<1x32xf32>
    %c0_16 = arith.constant 0 : index
    %c0_17 = arith.constant 0 : index
    %32 = vector.load %arg7[%c0_16, %c0_17] : memref<1x32xf32, #tpu.memory_space<vmem>>, vector<1x32xf32>
    %cst_18 = arith.constant dense<0.000000e+00> : vector<32xf32>
    %33 = vector.multi_reduction <add>, %30, %cst_18 [1] : vector<32x32xf32> to vector<32xf32>
    %34 = vector.shape_cast %33 : vector<32xf32> to vector<32x1xf32>
    %cst_19 = arith.constant 3.200000e+01 : f32
    %35 = vector.broadcast %cst_19 : f32 to vector<32x1xf32>
    %36 = arith.divf %34, %35 : vector<32x1xf32>
    %37 = vector.broadcast %36 : vector<32x1xf32> to vector<32x32xf32>
    %38 = arith.subf %30, %37 : vector<32x32xf32>
    %39 = arith.mulf %38, %38 : vector<32x32xf32>
    %cst_20 = arith.constant dense<0.000000e+00> : vector<32xf32>
    %40 = vector.multi_reduction <add>, %39, %cst_20 [1] : vector<32x32xf32> to vector<32xf32>
    %41 = vector.shape_cast %40 : vector<32xf32> to vector<32x1xf32>
    %cst_21 = arith.constant 3.200000e+01 : f32
    %42 = vector.broadcast %cst_21 : f32 to vector<32x1xf32>
    %43 = arith.divf %41, %42 : vector<32x1xf32>
    %44 = vector.broadcast %36 : vector<32x1xf32> to vector<32x32xf32>
    %45 = arith.subf %30, %44 : vector<32x32xf32>
    %cst_22 = arith.constant 9.99999974E-6 : f32
    %46 = vector.broadcast %cst_22 : f32 to vector<32x1xf32>
    %47 = arith.addf %43, %46 : vector<32x1xf32>
    %48 = math.rsqrt %47 : vector<32x1xf32>
    %49 = vector.broadcast %48 : vector<32x1xf32> to vector<32x32xf32>
    %50 = arith.mulf %45, %49 : vector<32x32xf32>
    %51 = vector.broadcast %31 : vector<1x32xf32> to vector<32x32xf32>
    %52 = arith.mulf %50, %51 : vector<32x32xf32>
    %53 = vector.broadcast %32 : vector<1x32xf32> to vector<32x32xf32>
    %54 = arith.addf %52, %53 : vector<32x32xf32>
    %c0_23 = arith.constant 0 : index
    %c0_24 = arith.constant 0 : index
    %55 = vector.load %arg8[%c0_23, %c0_24] : memref<32x32xf32, #tpu.memory_space<vmem>>, vector<32x32xf32>
    tpu.vector_store %arg8[%c0_23, %c0_24], %54 {strides = array<i32>} : memref<32x32xf32, #tpu.memory_space<vmem>>, vector<32x32xf32>,
    return
  }
  func.func @transform_0(%arg0: i32) -> (i32, i32) {
    %c0_i32 = arith.constant 0 : i32
    %c0_i32_0 = arith.constant 0 : i32
    return %arg0, %c0_i32 : i32, i32
  }
  func.func @transform_1(%arg0: i32) -> (i32, i32) {
    %c0_i32 = arith.constant 0 : i32
    %c0_i32_0 = arith.constant 0 : i32
    %c0_i32_1 = arith.constant 0 : i32
    return %c0_i32, %c0_i32_0 : i32, i32
  }
  func.func @transform_2(%arg0: i32) -> (i32, i32) {
    %c0_i32 = arith.constant 0 : i32
    %c0_i32_0 = arith.constant 0 : i32
    %c0_i32_1 = arith.constant 0 : i32
    return %c0_i32, %c0_i32_0 : i32, i32
  }
  func.func @transform_3(%arg0: i32) -> (i32, i32) {
    %c0_i32 = arith.constant 0 : i32
    %c0_i32_0 = arith.constant 0 : i32
    %c0_i32_1 = arith.constant 0 : i32
    return %c0_i32, %c0_i32_0 : i32, i32
  }
  func.func @transform_4(%arg0: i32) -> (i32, i32) {
    %c0_i32 = arith.constant 0 : i32
    %c0_i32_0 = arith.constant 0 : i32
    %c0_i32_1 = arith.constant 0 : i32
    return %c0_i32, %c0_i32_0 : i32, i32
  }
  func.func @transform_5(%arg0: i32) -> (i32, i32) {
    %c0_i32 = arith.constant 0 : i32
    %c0_i32_0 = arith.constant 0 : i32
    %c0_i32_1 = arith.constant 0 : i32
    return %c0_i32, %c0_i32_0 : i32, i32
  }
  func.func @transform_6(%arg0: i32) -> (i32, i32) {
    %c0_i32 = arith.constant 0 : i32
    %c0_i32_0 = arith.constant 0 : i32
    %c0_i32_1 = arith.constant 0 : i32
    return %c0_i32, %c0_i32_0 : i32, i32
  }
  func.func @transform_7(%arg0: i32) -> (i32, i32) {
    %c0_i32 = arith.constant 0 : i32
    %c0_i32_0 = arith.constant 0 : i32
    return %arg0, %c0_i32 : i32, i32
  }
}

module attributes {stable_mosaic.version = 11 : i64} {
  func.func @transformer_layer_kernel(%arg0: i32, %arg1: i32, %arg2: memref<1x24x32xf32, #tpu.memory_space<vmem>>, %arg3: memref<1x24x32xf32, #tpu.memory_space<vmem>>, %arg4: memref<1x1x32xf32, #tpu.memory_space<vmem>>, %arg5: memref<1x1x32xf32, #tpu.memory_space<vmem>>, %arg6: memref<1x32x96xbf16, #tpu.memory_space<vmem>>, %arg7: memref<1x32x32xbf16, #tpu.memory_space<vmem>>, %arg8: memref<1x1x32xf32, #tpu.memory_space<vmem>>, %arg9: memref<1x1x32xf32, #tpu.memory_space<vmem>>, %arg10: memref<1x1x32xf32, #tpu.memory_space<vmem>>, %arg11: memref<1x32x64xbf16, #tpu.memory_space<vmem>>, %arg12: memref<1x1x64xf32, #tpu.memory_space<vmem>>, %arg13: memref<1x64x32xbf16, #tpu.memory_space<vmem>>, %arg14: memref<1x1x32xf32, #tpu.memory_space<vmem>>, %arg15: memref<1x24x32xf32, #tpu.memory_space<vmem>>, %arg16: memref<1x24x32xf32, #tpu.memory_space<vmem>>, %arg17: memref<1x24x32xf32, #tpu.memory_space<vmem>>) attributes {dimension_semantics = [#tpu.dimension_semantics<parallel>, #tpu.dimension_semantics<arbitrary>], iteration_bounds = array<i64: 2, 2>, scalar_prefetch = 0 : i64, scratch_operands = 2 : i64, tpu.core_type = #tpu.core_type<tc>, window_params = [{transform_indices = @transform_0, window_bounds = array<i64: 1, 24, 32>}, {pipeline_mode = #tpu.pipeline_mode<synchronous>, transform_indices = @transform_1, window_bounds = array<i64: 1, 24, 32>}, {transform_indices = @transform_2, window_bounds = array<i64: 1, 1, 32>}, {transform_indices = @transform_3, window_bounds = array<i64: 1, 1, 32>}, {transform_indices = @transform_4, window_bounds = array<i64: 1, 32, 96>}, {transform_indices = @transform_5, window_bounds = array<i64: 1, 32, 32>}, {transform_indices = @transform_6, window_bounds = array<i64: 1, 1, 32>}, {transform_indices = @transform_7, window_bounds = array<i64: 1, 1, 32>}, {transform_indices = @transform_8, window_bounds = array<i64: 1, 1, 32>}, {transform_indices = @transform_9, window_bounds = array<i64: 1, 32, 64>}, {transform_indices = @transform_10, window_bounds = array<i64: 1, 1, 64>}, {transform_indices = @transform_11, window_bounds = array<i64: 1, 64, 32>}, {transform_indices = @transform_12, window_bounds = array<i64: 1, 1, 32>}, {transform_indices = @transform_13, window_bounds = array<i64: 1, 24, 32>}]} {
    %c0_i32 = arith.constant 0 : i32
    %0 = arith.cmpi eq, %arg1, %c0_i32 : i32
    %1 = arith.extui %0 : i1 to i32
    %c0_i32_0 = arith.constant 0 : i32
    %2 = arith.cmpi ne, %1, %c0_i32_0 : i32
    scf.if %2 {
      %c0_90 = arith.constant 0 : index
      %c0_91 = arith.constant 0 : index
      %c0_92 = arith.constant 0 : index
      %216 = vector.load %arg2[%c0_90, %c0_91, %c0_92] : memref<1x24x32xf32, #tpu.memory_space<vmem>>, vector<1x24x32xf32>
      %c0_93 = arith.constant 0 : index
      %c0_94 = arith.constant 0 : index
      %c0_95 = arith.constant 0 : index
      %217 = vector.load %arg3[%c0_93, %c0_94, %c0_95] : memref<1x24x32xf32, #tpu.memory_space<vmem>>, vector<1x24x32xf32>
      %218 = vector.shape_cast %217 : vector<1x24x32xf32> to vector<24x32xf32>
      %219 = vector.shape_cast %218 : vector<24x32xf32> to vector<1x24x32xf32>
      %220 = arith.addf %216, %219 : vector<1x24x32xf32>
      %c0_96 = arith.constant 0 : index
      %c0_97 = arith.constant 0 : index
      %c0_98 = arith.constant 0 : index
      %221 = vector.load %arg16[%c0_96, %c0_97, %c0_98] : memref<1x24x32xf32, #tpu.memory_space<vmem>>, vector<1x24x32xf32>
      tpu.vector_store %arg16[%c0_96, %c0_97, %c0_98], %220 {strides = array<i32>} : memref<1x24x32xf32, #tpu.memory_space<vmem>>, vector<1x24x32xf32>,
    } else {
    }
    %c0 = arith.constant 0 : index
    %c0_1 = arith.constant 0 : index
    %c0_2 = arith.constant 0 : index
    %3 = vector.load %arg16[%c0, %c0_1, %c0_2] : memref<1x24x32xf32, #tpu.memory_space<vmem>>, vector<1x24x32xf32>
    %4 = vector.shape_cast %3 : vector<1x24x32xf32> to vector<24x32xf32>
    %c0_3 = arith.constant 0 : index
    %c0_4 = arith.constant 0 : index
    %c0_5 = arith.constant 0 : index
    %5 = vector.load %arg4[%c0_3, %c0_4, %c0_5] : memref<1x1x32xf32, #tpu.memory_space<vmem>>, vector<1x1x32xf32>
    %6 = vector.shape_cast %5 : vector<1x1x32xf32> to vector<1x32xf32>
    %c0_6 = arith.constant 0 : index
    %c0_7 = arith.constant 0 : index
    %c0_8 = arith.constant 0 : index
    %7 = vector.load %arg5[%c0_6, %c0_7, %c0_8] : memref<1x1x32xf32, #tpu.memory_space<vmem>>, vector<1x1x32xf32>
    %8 = vector.shape_cast %7 : vector<1x1x32xf32> to vector<1x32xf32>
    %cst = arith.constant dense<0.000000e+00> : vector<24xf32>
    %9 = vector.multi_reduction <add>, %4, %cst [1] : vector<24x32xf32> to vector<24xf32>
    %10 = vector.shape_cast %9 : vector<24xf32> to vector<24x1xf32>
    %cst_9 = arith.constant 3.200000e+01 : f32
    %11 = vector.broadcast %cst_9 : f32 to vector<24x1xf32>
    %12 = arith.divf %10, %11 : vector<24x1xf32>
    %13 = vector.broadcast %12 : vector<24x1xf32> to vector<24x32xf32>
    %14 = arith.subf %4, %13 : vector<24x32xf32>
    %15 = arith.mulf %14, %14 : vector<24x32xf32>
    %cst_10 = arith.constant dense<0.000000e+00> : vector<24xf32>
    %16 = vector.multi_reduction <add>, %15, %cst_10 [1] : vector<24x32xf32> to vector<24xf32>
    %17 = vector.shape_cast %16 : vector<24xf32> to vector<24x1xf32>
    %cst_11 = arith.constant 3.200000e+01 : f32
    %18 = vector.broadcast %cst_11 : f32 to vector<24x1xf32>
    %19 = arith.divf %17, %18 : vector<24x1xf32>
    %20 = vector.broadcast %12 : vector<24x1xf32> to vector<24x32xf32>
    %21 = arith.subf %4, %20 : vector<24x32xf32>
    %cst_12 = arith.constant 9.99999974E-6 : f32
    %22 = vector.broadcast %cst_12 : f32 to vector<24x1xf32>
    %23 = arith.addf %19, %22 : vector<24x1xf32>
    %24 = math.rsqrt %23 : vector<24x1xf32>
    %25 = vector.broadcast %24 : vector<24x1xf32> to vector<24x32xf32>
    %26 = arith.mulf %21, %25 : vector<24x32xf32>
    %27 = vector.broadcast %6 : vector<1x32xf32> to vector<24x32xf32>
    %28 = arith.mulf %26, %27 : vector<24x32xf32>
    %29 = vector.broadcast %8 : vector<1x32xf32> to vector<24x32xf32>
    %30 = arith.addf %28, %29 : vector<24x32xf32>
    %c0_13 = arith.constant 0 : index
    %c0_14 = arith.constant 0 : index
    %c0_15 = arith.constant 0 : index
    %31 = vector.load %arg6[%c0_13, %c0_14, %c0_15] : memref<1x32x96xbf16, #tpu.memory_space<vmem>>, vector<1x32x96xbf16>
    %32 = vector.shape_cast %31 : vector<1x32x96xbf16> to vector<32x96xbf16>
    %33 = arith.truncf %30 : vector<24x32xf32> to vector<24x32xbf16>
    %cst_16 = arith.constant dense<0.000000e+00> : vector<24x96xf32>
    %34 = tpu.matmul %33, %32, %cst_16 {dimension_numbers = #tpu.dot_dimension_numbers<[1], [0], [0], [1], [0, 0, 1, 1], [], []>} : vector<24x32xbf16>, vector<32x96xbf16>, vector<24x96xf32> -> vector<24x96xf32>
    %35 = tpu.iota {dimensions = array<i32: 2>} : vector<1x1x24xi32>
    %c17_i32 = arith.constant 17 : i32
    %36 = vector.broadcast %c17_i32 : i32 to vector<1x1x24xi32>
    %37 = arith.cmpi slt, %35, %36 : vector<1x1x24xi32>
    %cst_17 = arith.constant 0.000000e+00 : f32
    %cst_18 = arith.constant -1.000000e+30 : f32
    %38 = vector.broadcast %cst_17 : f32 to vector<1x1x24xf32>
    %39 = vector.broadcast %cst_18 : f32 to vector<1x1x24xf32>
    %40 = arith.select %37, %38, %39 : vector<1x1x24xi1>, vector<1x1x24xf32>
    %41 = vector.extract_strided_slice %34 {offsets = [0, 0], sizes = [24, 8], strides = [1, 1]} : vector<24x96xf32> to vector<24x8xf32>
    %42 = vector.shape_cast %41 : vector<24x8xf32> to vector<1x24x8xf32>
    %43 = vector.extract_strided_slice %34 {offsets = [0, 32], sizes = [24, 8], strides = [1, 1]} : vector<24x96xf32> to vector<24x8xf32>
    %44 = vector.shape_cast %43 : vector<24x8xf32> to vector<1x24x8xf32>
    %45 = vector.extract_strided_slice %34 {offsets = [0, 64], sizes = [24, 8], strides = [1, 1]} : vector<24x96xf32> to vector<24x8xf32>
    %46 = vector.shape_cast %45 : vector<24x8xf32> to vector<1x24x8xf32>
    %47 = arith.truncf %42 : vector<1x24x8xf32> to vector<1x24x8xbf16>
    %48 = arith.truncf %44 : vector<1x24x8xf32> to vector<1x24x8xbf16>
    "tpu.trace_start"() <{level = 10 : i32, message = "bnd,bmd->bnm"}> : () -> ()
    %cst_19 = arith.constant dense<0.000000e+00> : vector<1x24x24xf32>
    %49 = tpu.matmul %47, %48, %cst_19 {dimension_numbers = #tpu.dot_dimension_numbers<[2], [2], [1], [1], [0, 0, 0, 1, 1, 1], [0], [0]>} : vector<1x24x8xbf16>, vector<1x24x8xbf16>, vector<1x24x24xf32> -> vector<1x24x24xf32>
    "tpu.trace_stop"() : () -> ()
    %cst_20 = arith.constant 0.353553385 : f32
    %50 = vector.broadcast %cst_20 : f32 to vector<1x24x24xf32>
    %51 = arith.mulf %49, %50 : vector<1x24x24xf32>
    %52 = vector.broadcast %40 : vector<1x1x24xf32> to vector<1x24x24xf32>
    %53 = arith.addf %51, %52 : vector<1x24x24xf32>
    %cst_21 = arith.constant dense<0xFF800000> : vector<1x24xf32>
    %54 = vector.multi_reduction <maximumf>, %53, %cst_21 [2] : vector<1x24x24xf32> to vector<1x24xf32>
    %55 = vector.shape_cast %54 : vector<1x24xf32> to vector<1x24x1xf32>
    %56 = vector.broadcast %55 : vector<1x24x1xf32> to vector<1x24x24xf32>
    %57 = arith.subf %53, %56 : vector<1x24x24xf32>
    %58 = math.exp %57 : vector<1x24x24xf32>
    %cst_22 = arith.constant dense<0.000000e+00> : vector<1x24xf32>
    %59 = vector.multi_reduction <add>, %58, %cst_22 [2] : vector<1x24x24xf32> to vector<1x24xf32>
    %60 = vector.shape_cast %59 : vector<1x24xf32> to vector<1x24x1xf32>
    %61 = tpu.reciprocal %60 {approx = true} : vector<1x24x1xf32> -> vector<1x24x1xf32>
    %62 = vector.broadcast %61 : vector<1x24x1xf32> to vector<1x24x24xf32>
    %63 = arith.mulf %58, %62 : vector<1x24x24xf32>
    %64 = arith.truncf %63 : vector<1x24x24xf32> to vector<1x24x24xbf16>
    %65 = arith.truncf %46 : vector<1x24x8xf32> to vector<1x24x8xbf16>
    "tpu.trace_start"() <{level = 10 : i32, message = "bnm,bmd->bnd"}> : () -> ()
    %cst_23 = arith.constant dense<0.000000e+00> : vector<1x24x8xf32>
    %66 = tpu.matmul %64, %65, %cst_23 {dimension_numbers = #tpu.dot_dimension_numbers<[2], [1], [1], [2], [0, 0, 0, 1, 1, 2], [0], [0]>} : vector<1x24x24xbf16>, vector<1x24x8xbf16>, vector<1x24x8xf32> -> vector<1x24x8xf32>
    "tpu.trace_stop"() : () -> ()
    %c0_24 = arith.constant 0 : index
    %c0_25 = arith.constant 0 : index
    %c0_26 = arith.constant 0 : index
    %67 = vector.load %arg17[%c0_24, %c0_25, %c0_26] : memref<1x24x32xf32, #tpu.memory_space<vmem>>, vector<1x24x8xf32>
    tpu.vector_store %arg17[%c0_24, %c0_25, %c0_26], %66 {strides = array<i32>} : memref<1x24x32xf32, #tpu.memory_space<vmem>>, vector<1x24x8xf32>,
    %68 = vector.extract_strided_slice %34 {offsets = [0, 8], sizes = [24, 8], strides = [1, 1]} : vector<24x96xf32> to vector<24x8xf32>
    %69 = vector.shape_cast %68 : vector<24x8xf32> to vector<1x24x8xf32>
    %70 = vector.extract_strided_slice %34 {offsets = [0, 40], sizes = [24, 8], strides = [1, 1]} : vector<24x96xf32> to vector<24x8xf32>
    %71 = vector.shape_cast %70 : vector<24x8xf32> to vector<1x24x8xf32>
    %72 = vector.extract_strided_slice %34 {offsets = [0, 72], sizes = [24, 8], strides = [1, 1]} : vector<24x96xf32> to vector<24x8xf32>
    %73 = vector.shape_cast %72 : vector<24x8xf32> to vector<1x24x8xf32>
    %74 = arith.truncf %69 : vector<1x24x8xf32> to vector<1x24x8xbf16>
    %75 = arith.truncf %71 : vector<1x24x8xf32> to vector<1x24x8xbf16>
    "tpu.trace_start"() <{level = 10 : i32, message = "bnd,bmd->bnm"}> : () -> ()
    %cst_27 = arith.constant dense<0.000000e+00> : vector<1x24x24xf32>
    %76 = tpu.matmul %74, %75, %cst_27 {dimension_numbers = #tpu.dot_dimension_numbers<[2], [2], [1], [1], [0, 0, 0, 1, 1, 1], [0], [0]>} : vector<1x24x8xbf16>, vector<1x24x8xbf16>, vector<1x24x24xf32> -> vector<1x24x24xf32>
    "tpu.trace_stop"() : () -> ()
    %cst_28 = arith.constant 0.353553385 : f32
    %77 = vector.broadcast %cst_28 : f32 to vector<1x24x24xf32>
    %78 = arith.mulf %76, %77 : vector<1x24x24xf32>
    %79 = vector.broadcast %40 : vector<1x1x24xf32> to vector<1x24x24xf32>
    %80 = arith.addf %78, %79 : vector<1x24x24xf32>
    %cst_29 = arith.constant dense<0xFF800000> : vector<1x24xf32>
    %81 = vector.multi_reduction <maximumf>, %80, %cst_29 [2] : vector<1x24x24xf32> to vector<1x24xf32>
    %82 = vector.shape_cast %81 : vector<1x24xf32> to vector<1x24x1xf32>
    %83 = vector.broadcast %82 : vector<1x24x1xf32> to vector<1x24x24xf32>
    %84 = arith.subf %80, %83 : vector<1x24x24xf32>
    %85 = math.exp %84 : vector<1x24x24xf32>
    %cst_30 = arith.constant dense<0.000000e+00> : vector<1x24xf32>
    %86 = vector.multi_reduction <add>, %85, %cst_30 [2] : vector<1x24x24xf32> to vector<1x24xf32>
    %87 = vector.shape_cast %86 : vector<1x24xf32> to vector<1x24x1xf32>
    %88 = tpu.reciprocal %87 {approx = true} : vector<1x24x1xf32> -> vector<1x24x1xf32>
    %89 = vector.broadcast %88 : vector<1x24x1xf32> to vector<1x24x24xf32>
    %90 = arith.mulf %85, %89 : vector<1x24x24xf32>
    %91 = arith.truncf %90 : vector<1x24x24xf32> to vector<1x24x24xbf16>
    %92 = arith.truncf %73 : vector<1x24x8xf32> to vector<1x24x8xbf16>
    "tpu.trace_start"() <{level = 10 : i32, message = "bnm,bmd->bnd"}> : () -> ()
    %cst_31 = arith.constant dense<0.000000e+00> : vector<1x24x8xf32>
    %93 = tpu.matmul %91, %92, %cst_31 {dimension_numbers = #tpu.dot_dimension_numbers<[2], [1], [1], [2], [0, 0, 0, 1, 1, 2], [0], [0]>} : vector<1x24x24xbf16>, vector<1x24x8xbf16>, vector<1x24x8xf32> -> vector<1x24x8xf32>
    "tpu.trace_stop"() : () -> ()
    %c0_32 = arith.constant 0 : index
    %c0_33 = arith.constant 0 : index
    %c8 = arith.constant 8 : index
    %94 = vector.load %arg17[%c0_32, %c0_33, %c8] : memref<1x24x32xf32, #tpu.memory_space<vmem>>, vector<1x24x8xf32>
    tpu.vector_store %arg17[%c0_32, %c0_33, %c8], %93 {strides = array<i32>} : memref<1x24x32xf32, #tpu.memory_space<vmem>>, vector<1x24x8xf32>,
    %95 = vector.extract_strided_slice %34 {offsets = [0, 16], sizes = [24, 8], strides = [1, 1]} : vector<24x96xf32> to vector<24x8xf32>
    %96 = vector.shape_cast %95 : vector<24x8xf32> to vector<1x24x8xf32>
    %97 = vector.extract_strided_slice %34 {offsets = [0, 48], sizes = [24, 8], strides = [1, 1]} : vector<24x96xf32> to vector<24x8xf32>
    %98 = vector.shape_cast %97 : vector<24x8xf32> to vector<1x24x8xf32>
    %99 = vector.extract_strided_slice %34 {offsets = [0, 80], sizes = [24, 8], strides = [1, 1]} : vector<24x96xf32> to vector<24x8xf32>
    %100 = vector.shape_cast %99 : vector<24x8xf32> to vector<1x24x8xf32>
    %101 = arith.truncf %96 : vector<1x24x8xf32> to vector<1x24x8xbf16>
    %102 = arith.truncf %98 : vector<1x24x8xf32> to vector<1x24x8xbf16>
    "tpu.trace_start"() <{level = 10 : i32, message = "bnd,bmd->bnm"}> : () -> ()
    %cst_34 = arith.constant dense<0.000000e+00> : vector<1x24x24xf32>
    %103 = tpu.matmul %101, %102, %cst_34 {dimension_numbers = #tpu.dot_dimension_numbers<[2], [2], [1], [1], [0, 0, 0, 1, 1, 1], [0], [0]>} : vector<1x24x8xbf16>, vector<1x24x8xbf16>, vector<1x24x24xf32> -> vector<1x24x24xf32>
    "tpu.trace_stop"() : () -> ()
    %cst_35 = arith.constant 0.353553385 : f32
    %104 = vector.broadcast %cst_35 : f32 to vector<1x24x24xf32>
    %105 = arith.mulf %103, %104 : vector<1x24x24xf32>
    %106 = vector.broadcast %40 : vector<1x1x24xf32> to vector<1x24x24xf32>
    %107 = arith.addf %105, %106 : vector<1x24x24xf32>
    %cst_36 = arith.constant dense<0xFF800000> : vector<1x24xf32>
    %108 = vector.multi_reduction <maximumf>, %107, %cst_36 [2] : vector<1x24x24xf32> to vector<1x24xf32>
    %109 = vector.shape_cast %108 : vector<1x24xf32> to vector<1x24x1xf32>
    %110 = vector.broadcast %109 : vector<1x24x1xf32> to vector<1x24x24xf32>
    %111 = arith.subf %107, %110 : vector<1x24x24xf32>
    %112 = math.exp %111 : vector<1x24x24xf32>
    %cst_37 = arith.constant dense<0.000000e+00> : vector<1x24xf32>
    %113 = vector.multi_reduction <add>, %112, %cst_37 [2] : vector<1x24x24xf32> to vector<1x24xf32>
    %114 = vector.shape_cast %113 : vector<1x24xf32> to vector<1x24x1xf32>
    %115 = tpu.reciprocal %114 {approx = true} : vector<1x24x1xf32> -> vector<1x24x1xf32>
    %116 = vector.broadcast %115 : vector<1x24x1xf32> to vector<1x24x24xf32>
    %117 = arith.mulf %112, %116 : vector<1x24x24xf32>
    %118 = arith.truncf %117 : vector<1x24x24xf32> to vector<1x24x24xbf16>
    %119 = arith.truncf %100 : vector<1x24x8xf32> to vector<1x24x8xbf16>
    "tpu.trace_start"() <{level = 10 : i32, message = "bnm,bmd->bnd"}> : () -> ()
    %cst_38 = arith.constant dense<0.000000e+00> : vector<1x24x8xf32>
    %120 = tpu.matmul %118, %119, %cst_38 {dimension_numbers = #tpu.dot_dimension_numbers<[2], [1], [1], [2], [0, 0, 0, 1, 1, 2], [0], [0]>} : vector<1x24x24xbf16>, vector<1x24x8xbf16>, vector<1x24x8xf32> -> vector<1x24x8xf32>
    "tpu.trace_stop"() : () -> ()
    %c0_39 = arith.constant 0 : index
    %c0_40 = arith.constant 0 : index
    %c16 = arith.constant 16 : index
    %121 = vector.load %arg17[%c0_39, %c0_40, %c16] : memref<1x24x32xf32, #tpu.memory_space<vmem>>, vector<1x24x8xf32>
    tpu.vector_store %arg17[%c0_39, %c0_40, %c16], %120 {strides = array<i32>} : memref<1x24x32xf32, #tpu.memory_space<vmem>>, vector<1x24x8xf32>,
    %122 = vector.extract_strided_slice %34 {offsets = [0, 24], sizes = [24, 8], strides = [1, 1]} : vector<24x96xf32> to vector<24x8xf32>
    %123 = vector.shape_cast %122 : vector<24x8xf32> to vector<1x24x8xf32>
    %124 = vector.extract_strided_slice %34 {offsets = [0, 56], sizes = [24, 8], strides = [1, 1]} : vector<24x96xf32> to vector<24x8xf32>
    %125 = vector.shape_cast %124 : vector<24x8xf32> to vector<1x24x8xf32>
    %126 = vector.extract_strided_slice %34 {offsets = [0, 88], sizes = [24, 8], strides = [1, 1]} : vector<24x96xf32> to vector<24x8xf32>
    %127 = vector.shape_cast %126 : vector<24x8xf32> to vector<1x24x8xf32>
    %128 = arith.truncf %123 : vector<1x24x8xf32> to vector<1x24x8xbf16>
    %129 = arith.truncf %125 : vector<1x24x8xf32> to vector<1x24x8xbf16>
    "tpu.trace_start"() <{level = 10 : i32, message = "bnd,bmd->bnm"}> : () -> ()
    %cst_41 = arith.constant dense<0.000000e+00> : vector<1x24x24xf32>
    %130 = tpu.matmul %128, %129, %cst_41 {dimension_numbers = #tpu.dot_dimension_numbers<[2], [2], [1], [1], [0, 0, 0, 1, 1, 1], [0], [0]>} : vector<1x24x8xbf16>, vector<1x24x8xbf16>, vector<1x24x24xf32> -> vector<1x24x24xf32>
    "tpu.trace_stop"() : () -> ()
    %cst_42 = arith.constant 0.353553385 : f32
    %131 = vector.broadcast %cst_42 : f32 to vector<1x24x24xf32>
    %132 = arith.mulf %130, %131 : vector<1x24x24xf32>
    %133 = vector.broadcast %40 : vector<1x1x24xf32> to vector<1x24x24xf32>
    %134 = arith.addf %132, %133 : vector<1x24x24xf32>
    %cst_43 = arith.constant dense<0xFF800000> : vector<1x24xf32>
    %135 = vector.multi_reduction <maximumf>, %134, %cst_43 [2] : vector<1x24x24xf32> to vector<1x24xf32>
    %136 = vector.shape_cast %135 : vector<1x24xf32> to vector<1x24x1xf32>
    %137 = vector.broadcast %136 : vector<1x24x1xf32> to vector<1x24x24xf32>
    %138 = arith.subf %134, %137 : vector<1x24x24xf32>
    %139 = math.exp %138 : vector<1x24x24xf32>
    %cst_44 = arith.constant dense<0.000000e+00> : vector<1x24xf32>
    %140 = vector.multi_reduction <add>, %139, %cst_44 [2] : vector<1x24x24xf32> to vector<1x24xf32>
    %141 = vector.shape_cast %140 : vector<1x24xf32> to vector<1x24x1xf32>
    %142 = tpu.reciprocal %141 {approx = true} : vector<1x24x1xf32> -> vector<1x24x1xf32>
    %143 = vector.broadcast %142 : vector<1x24x1xf32> to vector<1x24x24xf32>
    %144 = arith.mulf %139, %143 : vector<1x24x24xf32>
    %145 = arith.truncf %144 : vector<1x24x24xf32> to vector<1x24x24xbf16>
    %146 = arith.truncf %127 : vector<1x24x8xf32> to vector<1x24x8xbf16>
    "tpu.trace_start"() <{level = 10 : i32, message = "bnm,bmd->bnd"}> : () -> ()
    %cst_45 = arith.constant dense<0.000000e+00> : vector<1x24x8xf32>
    %147 = tpu.matmul %145, %146, %cst_45 {dimension_numbers = #tpu.dot_dimension_numbers<[2], [1], [1], [2], [0, 0, 0, 1, 1, 2], [0], [0]>} : vector<1x24x24xbf16>, vector<1x24x8xbf16>, vector<1x24x8xf32> -> vector<1x24x8xf32>
    "tpu.trace_stop"() : () -> ()
    %c0_46 = arith.constant 0 : index
    %c0_47 = arith.constant 0 : index
    %c24 = arith.constant 24 : index
    %148 = vector.load %arg17[%c0_46, %c0_47, %c24] : memref<1x24x32xf32, #tpu.memory_space<vmem>>, vector<1x24x8xf32>
    tpu.vector_store %arg17[%c0_46, %c0_47, %c24], %147 {strides = array<i32>} : memref<1x24x32xf32, #tpu.memory_space<vmem>>, vector<1x24x8xf32>,
    %c0_48 = arith.constant 0 : index
    %c0_49 = arith.constant 0 : index
    %c0_50 = arith.constant 0 : index
    %149 = vector.load %arg17[%c0_48, %c0_49, %c0_50] : memref<1x24x32xf32, #tpu.memory_space<vmem>>, vector<1x24x32xf32>
    %150 = vector.shape_cast %149 : vector<1x24x32xf32> to vector<24x32xf32>
    %c0_51 = arith.constant 0 : index
    %c0_52 = arith.constant 0 : index
    %c0_53 = arith.constant 0 : index
    %151 = vector.load %arg7[%c0_51, %c0_52, %c0_53] : memref<1x32x32xbf16, #tpu.memory_space<vmem>>, vector<1x32x32xbf16>
    %152 = vector.shape_cast %151 : vector<1x32x32xbf16> to vector<32x32xbf16>
    %153 = arith.truncf %150 : vector<24x32xf32> to vector<24x32xbf16>
    %cst_54 = arith.constant dense<0.000000e+00> : vector<24x32xf32>
    %154 = tpu.matmul %153, %152, %cst_54 {dimension_numbers = #tpu.dot_dimension_numbers<[1], [0], [0], [1], [0, 0, 1, 1], [], []>} : vector<24x32xbf16>, vector<32x32xbf16>, vector<24x32xf32> -> vector<24x32xf32>
    %155 = arith.addf %4, %154 : vector<24x32xf32>
    %c0_55 = arith.constant 0 : index
    %c0_56 = arith.constant 0 : index
    %c0_57 = arith.constant 0 : index
    %156 = vector.load %arg8[%c0_55, %c0_56, %c0_57] : memref<1x1x32xf32, #tpu.memory_space<vmem>>, vector<1x1x32xf32>
    %157 = vector.shape_cast %156 : vector<1x1x32xf32> to vector<1x32xf32>
    %158 = vector.broadcast %157 : vector<1x32xf32> to vector<24x32xf32>
    %159 = arith.addf %155, %158 : vector<24x32xf32>
    %c0_58 = arith.constant 0 : index
    %c0_59 = arith.constant 0 : index
    %c0_60 = arith.constant 0 : index
    %160 = vector.load %arg9[%c0_58, %c0_59, %c0_60] : memref<1x1x32xf32, #tpu.memory_space<vmem>>, vector<1x1x32xf32>
    %161 = vector.shape_cast %160 : vector<1x1x32xf32> to vector<1x32xf32>
    %c0_61 = arith.constant 0 : index
    %c0_62 = arith.constant 0 : index
    %c0_63 = arith.constant 0 : index
    %162 = vector.load %arg10[%c0_61, %c0_62, %c0_63] : memref<1x1x32xf32, #tpu.memory_space<vmem>>, vector<1x1x32xf32>
    %163 = vector.shape_cast %162 : vector<1x1x32xf32> to vector<1x32xf32>
    %cst_64 = arith.constant dense<0.000000e+00> : vector<24xf32>
    %164 = vector.multi_reduction <add>, %159, %cst_64 [1] : vector<24x32xf32> to vector<24xf32>
    %165 = vector.shape_cast %164 : vector<24xf32> to vector<24x1xf32>
    %cst_65 = arith.constant 3.200000e+01 : f32
    %166 = vector.broadcast %cst_65 : f32 to vector<24x1xf32>
    %167 = arith.divf %165, %166 : vector<24x1xf32>
    %168 = vector.broadcast %167 : vector<24x1xf32> to vector<24x32xf32>
    %169 = arith.subf %159, %168 : vector<24x32xf32>
    %170 = arith.mulf %169, %169 : vector<24x32xf32>
    %cst_66 = arith.constant dense<0.000000e+00> : vector<24xf32>
    %171 = vector.multi_reduction <add>, %170, %cst_66 [1] : vector<24x32xf32> to vector<24xf32>
    %172 = vector.shape_cast %171 : vector<24xf32> to vector<24x1xf32>
    %cst_67 = arith.constant 3.200000e+01 : f32
    %173 = vector.broadcast %cst_67 : f32 to vector<24x1xf32>
    %174 = arith.divf %172, %173 : vector<24x1xf32>
    %175 = vector.broadcast %167 : vector<24x1xf32> to vector<24x32xf32>
    %176 = arith.subf %159, %175 : vector<24x32xf32>
    %cst_68 = arith.constant 9.99999974E-6 : f32
    %177 = vector.broadcast %cst_68 : f32 to vector<24x1xf32>
    %178 = arith.addf %174, %177 : vector<24x1xf32>
    %179 = math.rsqrt %178 : vector<24x1xf32>
    %180 = vector.broadcast %179 : vector<24x1xf32> to vector<24x32xf32>
    %181 = arith.mulf %176, %180 : vector<24x32xf32>
    %182 = vector.broadcast %161 : vector<1x32xf32> to vector<24x32xf32>
    %183 = arith.mulf %181, %182 : vector<24x32xf32>
    %184 = vector.broadcast %163 : vector<1x32xf32> to vector<24x32xf32>
    %185 = arith.addf %183, %184 : vector<24x32xf32>
    %c0_69 = arith.constant 0 : index
    %c0_70 = arith.constant 0 : index
    %c0_71 = arith.constant 0 : index
    %186 = vector.load %arg11[%c0_69, %c0_70, %c0_71] : memref<1x32x64xbf16, #tpu.memory_space<vmem>>, vector<1x32x64xbf16>
    %187 = vector.shape_cast %186 : vector<1x32x64xbf16> to vector<32x64xbf16>
    %188 = arith.truncf %185 : vector<24x32xf32> to vector<24x32xbf16>
    %cst_72 = arith.constant dense<0.000000e+00> : vector<24x64xf32>
    %189 = tpu.matmul %188, %187, %cst_72 {dimension_numbers = #tpu.dot_dimension_numbers<[1], [0], [0], [1], [0, 0, 1, 1], [], []>} : vector<24x32xbf16>, vector<32x64xbf16>, vector<24x64xf32> -> vector<24x64xf32>
    %c0_73 = arith.constant 0 : index
    %c0_74 = arith.constant 0 : index
    %c0_75 = arith.constant 0 : index
    %190 = vector.load %arg12[%c0_73, %c0_74, %c0_75] : memref<1x1x64xf32, #tpu.memory_space<vmem>>, vector<1x1x64xf32>
    %191 = vector.shape_cast %190 : vector<1x1x64xf32> to vector<1x64xf32>
    %192 = vector.broadcast %191 : vector<1x64xf32> to vector<24x64xf32>
    %193 = arith.addf %189, %192 : vector<24x64xf32>
    %cst_76 = arith.constant 5.000000e-01 : f32
    %194 = vector.broadcast %cst_76 : f32 to vector<24x64xf32>
    %195 = arith.mulf %194, %193 : vector<24x64xf32>
    %cst_77 = arith.constant 0.707106769 : f32
    %196 = vector.broadcast %cst_77 : f32 to vector<24x64xf32>
    %197 = arith.mulf %193, %196 : vector<24x64xf32>
    %198 = math.erf %197 : vector<24x64xf32>
    %cst_78 = arith.constant 1.000000e+00 : f32
    %199 = vector.broadcast %cst_78 : f32 to vector<24x64xf32>
    %200 = arith.addf %199, %198 : vector<24x64xf32>
    %201 = arith.mulf %195, %200 : vector<24x64xf32>
    %c0_79 = arith.constant 0 : index
    %c0_80 = arith.constant 0 : index
    %c0_81 = arith.constant 0 : index
    %202 = vector.load %arg13[%c0_79, %c0_80, %c0_81] : memref<1x64x32xbf16, #tpu.memory_space<vmem>>, vector<1x64x32xbf16>
    %203 = vector.shape_cast %202 : vector<1x64x32xbf16> to vector<64x32xbf16>
    %204 = arith.truncf %201 : vector<24x64xf32> to vector<24x64xbf16>
    %cst_82 = arith.constant dense<0.000000e+00> : vector<24x32xf32>
    %205 = tpu.matmul %204, %203, %cst_82 {dimension_numbers = #tpu.dot_dimension_numbers<[1], [0], [0], [1], [0, 0, 1, 1], [], []>} : vector<24x64xbf16>, vector<64x32xbf16>, vector<24x32xf32> -> vector<24x32xf32>
    %206 = arith.addf %159, %205 : vector<24x32xf32>
    %c0_83 = arith.constant 0 : index
    %c0_84 = arith.constant 0 : index
    %c0_85 = arith.constant 0 : index
    %207 = vector.load %arg14[%c0_83, %c0_84, %c0_85] : memref<1x1x32xf32, #tpu.memory_space<vmem>>, vector<1x1x32xf32>
    %208 = vector.shape_cast %207 : vector<1x1x32xf32> to vector<1x32xf32>
    %209 = vector.broadcast %208 : vector<1x32xf32> to vector<24x32xf32>
    %210 = arith.addf %206, %209 : vector<24x32xf32>
    %211 = vector.shape_cast %210 : vector<24x32xf32> to vector<1x24x32xf32>
    %c0_86 = arith.constant 0 : index
    %c0_87 = arith.constant 0 : index
    %c0_88 = arith.constant 0 : index
    %212 = vector.load %arg16[%c0_86, %c0_87, %c0_88] : memref<1x24x32xf32, #tpu.memory_space<vmem>>, vector<1x24x32xf32>
    tpu.vector_store %arg16[%c0_86, %c0_87, %c0_88], %211 {strides = array<i32>} : memref<1x24x32xf32, #tpu.memory_space<vmem>>, vector<1x24x32xf32>,
    %c1_i32 = arith.constant 1 : i32
    %213 = arith.cmpi eq, %arg1, %c1_i32 : i32
    %214 = arith.extui %213 : i1 to i32
    %c0_i32_89 = arith.constant 0 : i32
    %215 = arith.cmpi ne, %214, %c0_i32_89 : i32
    scf.if %215 {
      %216 = vector.shape_cast %210 : vector<24x32xf32> to vector<1x24x32xf32>
      %c0_90 = arith.constant 0 : index
      %c0_91 = arith.constant 0 : index
      %c0_92 = arith.constant 0 : index
      %217 = vector.load %arg15[%c0_90, %c0_91, %c0_92] : memref<1x24x32xf32, #tpu.memory_space<vmem>>, vector<1x24x32xf32>
      tpu.vector_store %arg15[%c0_90, %c0_91, %c0_92], %216 {strides = array<i32>} : memref<1x24x32xf32, #tpu.memory_space<vmem>>, vector<1x24x32xf32>,
    } else {
    }
    return
  }
  func.func @transform_0(%arg0: i32, %arg1: i32) -> (i32, i32, i32) {
    %c0_i32 = arith.constant 0 : i32
    %c0_i32_0 = arith.constant 0 : i32
    %c0_i32_1 = arith.constant 0 : i32
    return %arg0, %c0_i32, %c0_i32_0 : i32, i32, i32
  }
  func.func @transform_1(%arg0: i32, %arg1: i32) -> (i32, i32, i32) {
    %c0_i32 = arith.constant 0 : i32
    %c0_i32_0 = arith.constant 0 : i32
    %c0_i32_1 = arith.constant 0 : i32
    %c0_i32_2 = arith.constant 0 : i32
    return %c0_i32, %c0_i32_0, %c0_i32_1 : i32, i32, i32
  }
  func.func @transform_2(%arg0: i32, %arg1: i32) -> (i32, i32, i32) {
    %c0_i32 = arith.constant 0 : i32
    %c0_i32_0 = arith.constant 0 : i32
    %c0_i32_1 = arith.constant 0 : i32
    return %arg1, %c0_i32, %c0_i32_0 : i32, i32, i32
  }
  func.func @transform_3(%arg0: i32, %arg1: i32) -> (i32, i32, i32) {
    %c0_i32 = arith.constant 0 : i32
    %c0_i32_0 = arith.constant 0 : i32
    %c0_i32_1 = arith.constant 0 : i32
    return %arg1, %c0_i32, %c0_i32_0 : i32, i32, i32
  }
  func.func @transform_4(%arg0: i32, %arg1: i32) -> (i32, i32, i32) {
    %c0_i32 = arith.constant 0 : i32
    %c0_i32_0 = arith.constant 0 : i32
    %c0_i32_1 = arith.constant 0 : i32
    return %arg1, %c0_i32, %c0_i32_0 : i32, i32, i32
  }
  func.func @transform_5(%arg0: i32, %arg1: i32) -> (i32, i32, i32) {
    %c0_i32 = arith.constant 0 : i32
    %c0_i32_0 = arith.constant 0 : i32
    %c0_i32_1 = arith.constant 0 : i32
    return %arg1, %c0_i32, %c0_i32_0 : i32, i32, i32
  }
  func.func @transform_6(%arg0: i32, %arg1: i32) -> (i32, i32, i32) {
    %c0_i32 = arith.constant 0 : i32
    %c0_i32_0 = arith.constant 0 : i32
    %c0_i32_1 = arith.constant 0 : i32
    return %arg1, %c0_i32, %c0_i32_0 : i32, i32, i32
  }
  func.func @transform_7(%arg0: i32, %arg1: i32) -> (i32, i32, i32) {
    %c0_i32 = arith.constant 0 : i32
    %c0_i32_0 = arith.constant 0 : i32
    %c0_i32_1 = arith.constant 0 : i32
    return %arg1, %c0_i32, %c0_i32_0 : i32, i32, i32
  }
  func.func @transform_8(%arg0: i32, %arg1: i32) -> (i32, i32, i32) {
    %c0_i32 = arith.constant 0 : i32
    %c0_i32_0 = arith.constant 0 : i32
    %c0_i32_1 = arith.constant 0 : i32
    return %arg1, %c0_i32, %c0_i32_0 : i32, i32, i32
  }
  func.func @transform_9(%arg0: i32, %arg1: i32) -> (i32, i32, i32) {
    %c0_i32 = arith.constant 0 : i32
    %c0_i32_0 = arith.constant 0 : i32
    %c0_i32_1 = arith.constant 0 : i32
    return %arg1, %c0_i32, %c0_i32_0 : i32, i32, i32
  }
  func.func @transform_10(%arg0: i32, %arg1: i32) -> (i32, i32, i32) {
    %c0_i32 = arith.constant 0 : i32
    %c0_i32_0 = arith.constant 0 : i32
    %c0_i32_1 = arith.constant 0 : i32
    return %arg1, %c0_i32, %c0_i32_0 : i32, i32, i32
  }
  func.func @transform_11(%arg0: i32, %arg1: i32) -> (i32, i32, i32) {
    %c0_i32 = arith.constant 0 : i32
    %c0_i32_0 = arith.constant 0 : i32
    %c0_i32_1 = arith.constant 0 : i32
    return %arg1, %c0_i32, %c0_i32_0 : i32, i32, i32
  }
  func.func @transform_12(%arg0: i32, %arg1: i32) -> (i32, i32, i32) {
    %c0_i32 = arith.constant 0 : i32
    %c0_i32_0 = arith.constant 0 : i32
    %c0_i32_1 = arith.constant 0 : i32
    return %arg1, %c0_i32, %c0_i32_0 : i32, i32, i32
  }
  func.func @transform_13(%arg0: i32, %arg1: i32) -> (i32, i32, i32) {
    %c0_i32 = arith.constant 0 : i32
    %c0_i32_0 = arith.constant 0 : i32
    %c0_i32_1 = arith.constant 0 : i32
    return %arg0, %c0_i32, %c0_i32_0 : i32, i32, i32
  }
}

module attributes {stable_mosaic.version = 11 : i64} {
  func.func @head_kernel(%arg0: i32, %arg1: memref<2x32xf32, #tpu.memory_space<vmem>>, %arg2: memref<1x32xf32, #tpu.memory_space<vmem>>, %arg3: memref<1x32xf32, #tpu.memory_space<vmem>>, %arg4: memref<32x128xbf16, #tpu.memory_space<vmem>>, %arg5: memref<1x128xf32, #tpu.memory_space<vmem>>, %arg6: memref<2x128xf32, #tpu.memory_space<vmem>>) attributes {dimension_semantics = [#tpu.dimension_semantics<arbitrary>], iteration_bounds = array<i64: 1>, scalar_prefetch = 0 : i64, scratch_operands = 0 : i64, tpu.core_type = #tpu.core_type<tc>, window_params = [{pipeline_mode = #tpu.pipeline_mode<synchronous>, transform_indices = @transform_0, window_bounds = array<i64: 2, 32>}, {pipeline_mode = #tpu.pipeline_mode<synchronous>, transform_indices = @transform_1, window_bounds = array<i64: 1, 32>}, {pipeline_mode = #tpu.pipeline_mode<synchronous>, transform_indices = @transform_2, window_bounds = array<i64: 1, 32>}, {pipeline_mode = #tpu.pipeline_mode<synchronous>, transform_indices = @transform_3, window_bounds = array<i64: 32, 128>}, {pipeline_mode = #tpu.pipeline_mode<synchronous>, transform_indices = @transform_4, window_bounds = array<i64: 1, 128>}, {pipeline_mode = #tpu.pipeline_mode<synchronous>, transform_indices = @transform_5, window_bounds = array<i64: 2, 128>}]} {
    %c0 = arith.constant 0 : index
    %c0_0 = arith.constant 0 : index
    %0 = vector.load %arg1[%c0, %c0_0] : memref<2x32xf32, #tpu.memory_space<vmem>>, vector<2x32xf32>
    %c0_1 = arith.constant 0 : index
    %c0_2 = arith.constant 0 : index
    %1 = vector.load %arg2[%c0_1, %c0_2] : memref<1x32xf32, #tpu.memory_space<vmem>>, vector<1x32xf32>
    %c0_3 = arith.constant 0 : index
    %c0_4 = arith.constant 0 : index
    %2 = vector.load %arg3[%c0_3, %c0_4] : memref<1x32xf32, #tpu.memory_space<vmem>>, vector<1x32xf32>
    %cst = arith.constant dense<0.000000e+00> : vector<2xf32>
    %3 = vector.multi_reduction <add>, %0, %cst [1] : vector<2x32xf32> to vector<2xf32>
    %4 = vector.shape_cast %3 : vector<2xf32> to vector<2x1xf32>
    %cst_5 = arith.constant 3.200000e+01 : f32
    %5 = vector.broadcast %cst_5 : f32 to vector<2x1xf32>
    %6 = arith.divf %4, %5 : vector<2x1xf32>
    %7 = vector.broadcast %6 : vector<2x1xf32> to vector<2x32xf32>
    %8 = arith.subf %0, %7 : vector<2x32xf32>
    %9 = arith.mulf %8, %8 : vector<2x32xf32>
    %cst_6 = arith.constant dense<0.000000e+00> : vector<2xf32>
    %10 = vector.multi_reduction <add>, %9, %cst_6 [1] : vector<2x32xf32> to vector<2xf32>
    %11 = vector.shape_cast %10 : vector<2xf32> to vector<2x1xf32>
    %cst_7 = arith.constant 3.200000e+01 : f32
    %12 = vector.broadcast %cst_7 : f32 to vector<2x1xf32>
    %13 = arith.divf %11, %12 : vector<2x1xf32>
    %14 = vector.broadcast %6 : vector<2x1xf32> to vector<2x32xf32>
    %15 = arith.subf %0, %14 : vector<2x32xf32>
    %cst_8 = arith.constant 9.99999974E-6 : f32
    %16 = vector.broadcast %cst_8 : f32 to vector<2x1xf32>
    %17 = arith.addf %13, %16 : vector<2x1xf32>
    %18 = math.rsqrt %17 : vector<2x1xf32>
    %19 = vector.broadcast %18 : vector<2x1xf32> to vector<2x32xf32>
    %20 = arith.mulf %15, %19 : vector<2x32xf32>
    %21 = vector.broadcast %1 : vector<1x32xf32> to vector<2x32xf32>
    %22 = arith.mulf %20, %21 : vector<2x32xf32>
    %23 = vector.broadcast %2 : vector<1x32xf32> to vector<2x32xf32>
    %24 = arith.addf %22, %23 : vector<2x32xf32>
    %c0_9 = arith.constant 0 : index
    %c0_10 = arith.constant 0 : index
    %25 = vector.load %arg4[%c0_9, %c0_10] : memref<32x128xbf16, #tpu.memory_space<vmem>>, vector<32x128xbf16>
    %26 = arith.truncf %24 : vector<2x32xf32> to vector<2x32xbf16>
    %cst_11 = arith.constant dense<0.000000e+00> : vector<2x128xf32>
    %27 = tpu.matmul %26, %25, %cst_11 {dimension_numbers = #tpu.dot_dimension_numbers<[1], [0], [0], [1], [0, 0, 1, 1], [], []>} : vector<2x32xbf16>, vector<32x128xbf16>, vector<2x128xf32> -> vector<2x128xf32>
    %c0_12 = arith.constant 0 : index
    %c0_13 = arith.constant 0 : index
    %28 = vector.load %arg5[%c0_12, %c0_13] : memref<1x128xf32, #tpu.memory_space<vmem>>, vector<1x128xf32>
    %29 = vector.broadcast %28 : vector<1x128xf32> to vector<2x128xf32>
    %30 = arith.addf %27, %29 : vector<2x128xf32>
    %c0_14 = arith.constant 0 : index
    %c0_15 = arith.constant 0 : index
    %31 = vector.load %arg6[%c0_14, %c0_15] : memref<2x128xf32, #tpu.memory_space<vmem>>, vector<2x128xf32>
    tpu.vector_store %arg6[%c0_14, %c0_15], %30 {strides = array<i32>} : memref<2x128xf32, #tpu.memory_space<vmem>>, vector<2x128xf32>,
    return
  }
  func.func @transform_0(%arg0: i32) -> (i32, i32) {
    %c0_i32 = arith.constant 0 : i32
    %c0_i32_0 = arith.constant 0 : i32
    %c0_i32_1 = arith.constant 0 : i32
    return %c0_i32, %c0_i32_0 : i32, i32
  }
  func.func @transform_1(%arg0: i32) -> (i32, i32) {
    %c0_i32 = arith.constant 0 : i32
    %c0_i32_0 = arith.constant 0 : i32
    %c0_i32_1 = arith.constant 0 : i32
    return %c0_i32, %c0_i32_0 : i32, i32
  }
  func.func @transform_2(%arg0: i32) -> (i32, i32) {
    %c0_i32 = arith.constant 0 : i32
    %c0_i32_0 = arith.constant 0 : i32
    %c0_i32_1 = arith.constant 0 : i32
    return %c0_i32, %c0_i32_0 : i32, i32
  }
  func.func @transform_3(%arg0: i32) -> (i32, i32) {
    %c0_i32 = arith.constant 0 : i32
    %c0_i32_0 = arith.constant 0 : i32
    %c0_i32_1 = arith.constant 0 : i32
    return %c0_i32, %c0_i32_0 : i32, i32
  }
  func.func @transform_4(%arg0: i32) -> (i32, i32) {
    %c0_i32 = arith.constant 0 : i32
    %c0_i32_0 = arith.constant 0 : i32
    %c0_i32_1 = arith.constant 0 : i32
    return %c0_i32, %c0_i32_0 : i32, i32
  }
  func.func @transform_5(%arg0: i32) -> (i32, i32) {
    %c0_i32 = arith.constant 0 : i32
    %c0_i32_0 = arith.constant 0 : i32
    %c0_i32_1 = arith.constant 0 : i32
    return %c0_i32, %c0_i32_0 : i32, i32
  }
}

</mosaic_0001>

<llo_original>
// kernel: _lambda_.3
$region0: #{_lambda_.3}
  #allocation0 [shape = 'u32[]', space=smem, size = 0x4, offset = 0x4, fixed_abs, tag = 'smem constant byte address 0x4 - core index']
  #allocation1 [shape = 'u32[144,128]{1,0:T(1,128)}', space=vmem, size = 0x12000, scoped, tag = 'internal scratch']
  %s0 = inlined_call_operand.vmem [shape: f32[32,64], index: 0, kind: input, shape index: {}]
  %s1 = inlined_call_operand.vmem [shape: f32[1,64], index: 1, kind: input, shape index: {}]
  %s2 = inlined_call_operand.vmem [shape: f32[1,64], index: 2, kind: input, shape index: {}]
  %s3 = inlined_call_operand.vmem [shape: bf16[64,32], index: 3, kind: input, shape index: {}]
  %s4 = inlined_call_operand.vmem [shape: f32[1,32], index: 4, kind: input, shape index: {}]
  %s5 = inlined_call_operand.vmem [shape: f32[1,32], index: 5, kind: input, shape index: {}]
  %s6 = inlined_call_operand.vmem [shape: f32[1,32], index: 6, kind: input, shape index: {}]
  %s7 = inlined_call_operand.vmem [shape: f32[32,32], index: 7, kind: output, shape index: {}]
  %s8 = sld [smem:[#allocation0]]
  $region38: #{_lambda_.3} parent=0
    _
  %s10 = ssub.s32 1, %s8
  %s11 = scalar_select 0, %s10, %s8
  // Predicated region
  $region2: #{_lambda_.3} parent=0 // pred_check
    _
  $region3: #{_lambda_.3} parent=0 // pred_check_branch
    %13 = sbr.rel (0) target = $region5
  $region4: #{_lambda_.3} parent=0 // pred_region
    _
  $region5: #{_lambda_.3} parent=0 // pred_fallthru
    _
  // Predicated region
  $region6: #{_lambda_.3} parent=0 // pred_check
    _
  $region7: #{_lambda_.3} parent=0 // pred_check_branch
    %15 = sbr.rel (0) target = $region9
  $region8: #{_lambda_.3} parent=0 // pred_region
    _
  $region9: #{_lambda_.3} parent=0 // pred_fallthru
    _
  // Predicated region
  $region10: #{_lambda_.3} parent=0 // pred_check
    _
  $region11: #{_lambda_.3} parent=0 // pred_check_branch
    %17 = sbr.rel (0) target = $region13
  $region12: #{_lambda_.3} parent=0 // pred_region
    _
  $region13: #{_lambda_.3} parent=0 // pred_fallthru
    _
  // Predicated region
  $region14: #{_lambda_.3} parent=0 // pred_check
    _
  $region15: #{_lambda_.3} parent=0 // pred_check_branch
    %19 = sbr.rel (0) target = $region17
  $region16: #{_lambda_.3} parent=0 // pred_region
    _
  $region17: #{_lambda_.3} parent=0 // pred_fallthru
    _
  // Predicated region
  $region18: #{_lambda_.3} parent=0 // pred_check
    _
  $region19: #{_lambda_.3} parent=0 // pred_check_branch
    %21 = sbr.rel (0) target = $region21
  $region20: #{_lambda_.3} parent=0 // pred_region
    _
  $region21: #{_lambda_.3} parent=0 // pred_fallthru
    _
  // Predicated region
  $region22: #{_lambda_.3} parent=0 // pred_check
    _
  $region23: #{_lambda_.3} parent=0 // pred_check_branch
    %23 = sbr.rel (0) target = $region25
  $region24: #{_lambda_.3} parent=0 // pred_region
    _
  $region25: #{_lambda_.3} parent=0 // pred_fallthru
    _
  // Predicated region
  $region26: #{_lambda_.3} parent=0 // pred_check
    _
  $region27: #{_lambda_.3} parent=0 // pred_check_branch
    %25 = sbr.rel (0) target = $region29
  $region28: #{_lambda_.3} parent=0 // pred_region
    _
  $region29: #{_lambda_.3} parent=0 // pred_fallthru
    _
  %v27 = vld [vmem:[%s0] sm:$0xff]
  %v28 = vld [vmem:[%s0 + $0x8] sm:$0xff]
  %v29 = vld [vmem:[%s0 + $0x10] sm:$0xff]
  %v30 = vld [vmem:[%s0 + $0x18] sm:$0xff]
  %v31 = vld [vmem:[%s1] sm:$0x1]
  %v32 = vld [vmem:[%s2] sm:$0x1]
  %vm33 = vcmask 523264
  %v34 = vsel %vm33, %v27, 0.0
  %35 = vadd.xlane.f32.xlu0 %v34
  %v36 = vpop.xlane.xlu0 %35
  %v37 = vsel %vm33, %v28, 0.0
  %38 = vadd.xlane.f32.xlu0 %v37
  %v39 = vpop.xlane.xlu0 %38
  %v40 = vsel %vm33, %v29, 0.0
  %41 = vadd.xlane.f32.xlu0 %v40
  %v42 = vpop.xlane.xlu0 %41
  %v43 = vsel %vm33, %v30, 0.0
  %44 = vadd.xlane.f32.xlu0 %v43
  %v45 = vpop.xlane.xlu0 %44
  %v46 = vrcp.pop 64.0
  %v47 = vmul.f32 %v36, %v46
  %v48 = vmul.f32 %v39, %v46
  %v49 = vmul.f32 %v42, %v46
  %v50 = vmul.f32 %v45, %v46
  %v51 = vsub.f32 %v27, %v47
  %v52 = vsub.f32 %v28, %v48
  %v53 = vsub.f32 %v29, %v49
  %v54 = vsub.f32 %v30, %v50
  %v55 = vmul.f32 %v51, %v51
  %v56 = vmul.f32 %v52, %v52
  %v57 = vmul.f32 %v53, %v53
  %v58 = vmul.f32 %v54, %v54
  %v59 = vsel %vm33, %v55, 0.0
  %60 = vadd.xlane.f32.xlu0 %v59
  %v61 = vpop.xlane.xlu0 %60
  %v62 = vsel %vm33, %v56, 0.0
  %63 = vadd.xlane.f32.xlu0 %v62
  %v64 = vpop.xlane.xlu0 %63
  %v65 = vsel %vm33, %v57, 0.0
  %66 = vadd.xlane.f32.xlu0 %v65
  %v67 = vpop.xlane.xlu0 %66
  %v68 = vsel %vm33, %v58, 0.0
  %69 = vadd.xlane.f32.xlu0 %v68
  %v70 = vpop.xlane.xlu0 %69
  %v71 = vmul.f32 %v61, %v46
  %v72 = vmul.f32 %v64, %v46
  %v73 = vmul.f32 %v67, %v46
  %v74 = vmul.f32 %v70, %v46
  %v75 = vadd.f32 %v71, 1e-05
  %v76 = vadd.f32 %v72, 1e-05
  %v77 = vadd.f32 %v73, 1e-05
  %v78 = vadd.f32 %v74, 1e-05
  %v79 = vrsqrt.pop %v75
  %v80 = vrsqrt.pop %v76
  %v81 = vrsqrt.pop %v77
  %v82 = vrsqrt.pop %v78
  %v83 = vmul.f32 %v51, %v79
  %v84 = vmul.f32 %v52, %v80
  %v85 = vmul.f32 %v53, %v81
  %v86 = vmul.f32 %v54, %v82
  %v88 = vlaneseq
  %v89 = vshrl.u32 %v88, 7
  %v90 = vsub.s32 0, %v89
  %v91 = vrot.slane %v31, %v90
  %v93 = vmul.f32 %v83, %v91
  %v94 = vmul.f32 %v84, %v91
  %v95 = vmul.f32 %v85, %v91
  %v96 = vmul.f32 %v86, %v91
  %v98 = vlaneseq
  %v99 = vshrl.u32 %v98, 7
  %v100 = vsub.s32 0, %v99
  %v101 = vrot.slane %v32, %v100
  %v103 = vadd.f32 %v93, %v101
  %v104 = vadd.f32 %v94, %v101
  %v105 = vadd.f32 %v95, %v101
  %v106 = vadd.f32 %v96, %v101
  %v107 = vld [vmem:[%s3] sm:$0xf]
  %v108 = vld [vmem:[%s3 + $0x4] sm:$0xf]
  %v109 = vld [vmem:[%s3 + $0x8] sm:$0xf]
  %v110 = vld [vmem:[%s3 + $0xc] sm:$0xf]
  %v111 = vld [vmem:[%s3 + $0x10] sm:$0xf]
  %v112 = vld [vmem:[%s3 + $0x14] sm:$0xf]
  %v113 = vld [vmem:[%s3 + $0x18] sm:$0xf]
  %v114 = vld [vmem:[%s3 + $0x1c] sm:$0xf]
  %v115 = vpack.c.bf16 %v104, %v103
  %v116 = vpack.c.bf16 %v106, %v105
  %v117 = vld [vmem:[%s4] sm:$0x1]
  %v119 = vlaneseq
  %v120 = vshrl.u32 %v119, 7
  %v121 = vsub.s32 0, %v120
  %v122 = vrot.slane %v117, %v121
  %v132 = vunpack.c.l.b16 %v107
  %v133 = vunpack.c.l.b16 %v108
  %v134 = vunpack.c.l.b16 %v109
  %v135 = vunpack.c.l.b16 %v110
  %v136 = vunpack.c.l.b16 %v111
  %v137 = vunpack.c.l.b16 %v112
  %v138 = vunpack.c.l.b16 %v113
  %v139 = vunpack.c.l.b16 %v114
  %v140 = vpack.c.b16 %v133, %v132
  %v141 = vpack.c.b16 %v135, %v134
  %v142 = vpack.c.b16 %v137, %v136
  %v143 = vpack.c.b16 %v139, %v138
  %v149 = vsel %vm33, %v115, 0
  %v152 = vsel %vm33, %v116, 0
  %154 = vmatprep.subr.bf16.mxu0 0
  %155 = vmatpush1.bf16.msra.mxu0 %v140
  %156 = vmatprep.subr.bf16.mxu0 0
  %157 = vmatpush1.bf16.msra.mxu0 %v141
  %158 = vmatprep.subr.bf16.mxu0 0
  %159 = vmatpush1.bf16.msra.mxu0 %v142
  %160 = vmatprep.subr.bf16.mxu0 0
  %161 = vmatpush1.bf16.msra.mxu0 %v143
  %162 = vmatprep.subr.bf16.mxu0 0
  %163 = vmatpush1.bf16.msra.mxu0 0
  %164 = vmatprep.subr.bf16.mxu0 0
  %165 = vmatpush1.bf16.msra.mxu0 0
  %166 = vmatprep.subr.bf16.mxu0 0
  %167 = vmatpush1.bf16.msra.mxu0 0
  %168 = vmatprep.subr.bf16.mxu0 0
  %169 = vmatpush1.bf16.msra.mxu0 0
  %170 = vmatprep.subr.bf16.mxu0 0
  %171 = vmatpush1.bf16.msra.mxu0 0
  %172 = vmatprep.subr.bf16.mxu0 0
  %173 = vmatpush1.bf16.msra.mxu0 0
  %174 = vmatprep.subr.bf16.mxu0 0
  %175 = vmatpush1.bf16.msra.mxu0 0
  %176 = vmatprep.subr.bf16.mxu0 0
  %177 = vmatpush1.bf16.msra.mxu0 0
  %178 = vmatprep.subr.bf16.mxu0 0
  %179 = vmatpush1.bf16.msra.mxu0 0
  %180 = vmatprep.subr.bf16.mxu0 0
  %181 = vmatpush1.bf16.msra.mxu0 0
  %182 = vmatprep.subr.bf16.mxu0 0
  %183 = vmatpush1.bf16.msra.mxu0 0
  %184 = vmatprep.subr.bf16.mxu0 0
  %185 = vmatpush1.bf16.msra.mxu0 0
  %186 = vmatprep.mubr.bf16.mxu0 0
  %187 = vmatmul.mubr.bf16.gmra.mrb[0].mxu0 %v149
  %v188 = vpop.f32.mrb[0].mxu0
  %v189 = vadd.f32 %v122, %v188
  %v190 = vpop.f32.mrb[0].mxu0
  %v191 = vpop.f32.mrb[0].mxu0
  %v192 = vadd.f32 %v122, %v191
  %v193 = vpop.f32.mrb[0].mxu0
  %194 = vmatprep.mubr.bf16.mxu0 0
  %195 = vmatmul.mubr.bf16.gmra.mrb[0].mxu0 %v152
  %v196 = vpop.f32.mrb[0].mxu0
  %v197 = vadd.f32 %v122, %v196
  %v198 = vpop.f32.mrb[0].mxu0
  %v199 = vpop.f32.mrb[0].mxu0
  %v200 = vadd.f32 %v122, %v199
  %v201 = vpop.f32.mrb[0].mxu0
  %202 = vdwg.mxu0
  %v203 = vld [vmem:[%s5] sm:$0x1]
  %v204 = vld [vmem:[%s6] sm:$0x1]
  %vm205 = vcmask 261120
  %v206 = vsel %vm205, %v189, 0.0
  %207 = vadd.xlane.f32.xlu0 %v206
  %v208 = vpop.xlane.xlu0 %207
  %v209 = vsel %vm205, %v192, 0.0
  %210 = vadd.xlane.f32.xlu0 %v209
  %v211 = vpop.xlane.xlu0 %210
  %v212 = vsel %vm205, %v197, 0.0
  %213 = vadd.xlane.f32.xlu0 %v212
  %v214 = vpop.xlane.xlu0 %213
  %v215 = vsel %vm205, %v200, 0.0
  %216 = vadd.xlane.f32.xlu0 %v215
  %v217 = vpop.xlane.xlu0 %216
  %v218 = vrcp.pop 32.0
  %v219 = vmul.f32 %v208, %v218
  %v220 = vmul.f32 %v211, %v218
  %v221 = vmul.f32 %v214, %v218
  %v222 = vmul.f32 %v217, %v218
  %v223 = vsub.f32 %v189, %v219
  %v224 = vsub.f32 %v192, %v220
  %v225 = vsub.f32 %v197, %v221
  %v226 = vsub.f32 %v200, %v222
  %v227 = vmul.f32 %v223, %v223
  %v228 = vmul.f32 %v224, %v224
  %v229 = vmul.f32 %v225, %v225
  %v230 = vmul.f32 %v226, %v226
  %v231 = vsel %vm205, %v227, 0.0
  %232 = vadd.xlane.f32.xlu0 %v231
  %v233 = vpop.xlane.xlu0 %232
  %v234 = vsel %vm205, %v228, 0.0
  %235 = vadd.xlane.f32.xlu0 %v234
  %v236 = vpop.xlane.xlu0 %235
  %v237 = vsel %vm205, %v229, 0.0
  %238 = vadd.xlane.f32.xlu0 %v237
  %v239 = vpop.xlane.xlu0 %238
  %v240 = vsel %vm205, %v230, 0.0
  %241 = vadd.xlane.f32.xlu0 %v240
  %v242 = vpop.xlane.xlu0 %241
  %v243 = vmul.f32 %v233, %v218
  %v244 = vmul.f32 %v236, %v218
  %v245 = vmul.f32 %v239, %v218
  %v246 = vmul.f32 %v242, %v218
  %v247 = vadd.f32 %v243, 1e-05
  %v248 = vadd.f32 %v244, 1e-05
  %v249 = vadd.f32 %v245, 1e-05
  %v250 = vadd.f32 %v246, 1e-05
  %v251 = vrsqrt.pop %v247
  %v252 = vrsqrt.pop %v248
  %v253 = vrsqrt.pop %v249
  %v254 = vrsqrt.pop %v250
  %v255 = vmul.f32 %v223, %v251
  %v256 = vmul.f32 %v224, %v252
  %v257 = vmul.f32 %v225, %v253
  %v258 = vmul.f32 %v226, %v254
  %v260 = vlaneseq
  %v261 = vshrl.u32 %v260, 7
  %v262 = vsub.s32 0, %v261
  %v263 = vrot.slane %v203, %v262
  %v265 = vmul.f32 %v255, %v263
  %v266 = vmul.f32 %v256, %v263
  %v267 = vmul.f32 %v257, %v263
  %v268 = vmul.f32 %v258, %v263
  %v270 = vlaneseq
  %v271 = vshrl.u32 %v270, 7
  %v272 = vsub.s32 0, %v271
  %v273 = vrot.slane %v204, %v272
  %v275 = vadd.f32 %v265, %v273
  %v276 = vadd.f32 %v266, %v273
  %v277 = vadd.f32 %v267, %v273
  %v278 = vadd.f32 %v268, %v273
  %279 = vst.msk [vmem:[%s7] sm:$0xff] %vm205, %v275
  %280 = vst.msk [vmem:[%s7 + $0x8] sm:$0xff] %vm205, %v276
  %281 = vst.msk [vmem:[%s7 + $0x10] sm:$0xff] %vm205, %v277
  %282 = vst.msk [vmem:[%s7 + $0x18] sm:$0xff] %vm205, %v278
  // Predicated region
  $region30: #{_lambda_.3} parent=0 // pred_check
    _
  $region31: #{_lambda_.3} parent=0 // pred_check_branch
    %284 = sbr.rel (0) target = $region33
  $region32: #{_lambda_.3} parent=0 // pred_region
    _
  $region33: #{_lambda_.3} parent=0 // pred_fallthru
    _
  // Predicated region
  $region34: #{_lambda_.3} parent=0 // pred_check
    _
  $region35: #{_lambda_.3} parent=0 // pred_check_branch
    %286 = sbr.rel (0) target = $region37
  $region36: #{_lambda_.3} parent=0 // pred_region
    _
  $region37: #{_lambda_.3} parent=0 // pred_fallthru
    _

// kernel: _lambda_.5
$region0: #{_lambda_.5}
  #allocation0 [shape = 'u32[]', space=smem, size = 0x4, offset = 0x4, fixed_abs, tag = 'smem constant byte address 0x4 - core index']
  #allocation1 [shape = 'u32[144,128]{1,0:T(1,128)}', space=vmem, size = 0x12000, scoped, tag = 'internal scratch']
  %s0 = inlined_call_operand.vmem [shape: f32[2,32], index: 0, kind: input, shape index: {}]
  %s1 = inlined_call_operand.vmem [shape: f32[1,32], index: 1, kind: input, shape index: {}]
  %s2 = inlined_call_operand.vmem [shape: f32[1,32], index: 2, kind: input, shape index: {}]
  %s3 = inlined_call_operand.vmem [shape: bf16[32,128], index: 3, kind: input, shape index: {}]
  %s4 = inlined_call_operand.vmem [shape: f32[1,128], index: 4, kind: input, shape index: {}]
  %s5 = inlined_call_operand.hbm [shape: f32[2,128], index: 5, kind: output, shape index: {}]
  %s6 = sld [smem:[#allocation0]]
  $region30: #{_lambda_.5} parent=0
    _
  %s8 = ssub.s32 1, %s6
  %s9 = scalar_select 0, %s8, %s6
  $region1: #{_lambda_.5} parent=0
    #allocation2 [shape = 'u8[1024]{0}', space=vmem, size = 0x400, scoped, tag = 'output window, operand 0, single buffered']
    #allocation3 [shape = 's32[1]{0}', space=sflag, size = 0x4, scoped, tag = 'scoped memory for _lambda_.5']
    %10 = vsyncpa [#allocation3], 0
    // Predicated region
    $region2: #{_lambda_.5} parent=1 // pred_check
      _
    $region3: #{_lambda_.5} parent=1 // pred_check_branch
      %12 = sbr.rel (0) target = $region5
    $region4: #{_lambda_.5} parent=1 // pred_region
      _
    $region5: #{_lambda_.5} parent=1 // pred_fallthru
      _
    // Predicated region
    $region6: #{_lambda_.5} parent=1 // pred_check
      _
    $region7: #{_lambda_.5} parent=1 // pred_check_branch
      %14 = sbr.rel (0) target = $region9
    $region8: #{_lambda_.5} parent=1 // pred_region
      _
    $region9: #{_lambda_.5} parent=1 // pred_fallthru
      _
    // Predicated region
    $region10: #{_lambda_.5} parent=1 // pred_check
      _
    $region11: #{_lambda_.5} parent=1 // pred_check_branch
      %16 = sbr.rel (0) target = $region13
    $region12: #{_lambda_.5} parent=1 // pred_region
      _
    $region13: #{_lambda_.5} parent=1 // pred_fallthru
      _
    // Predicated region
    $region14: #{_lambda_.5} parent=1 // pred_check
      _
    $region15: #{_lambda_.5} parent=1 // pred_check_branch
      %18 = sbr.rel (0) target = $region17
    $region16: #{_lambda_.5} parent=1 // pred_region
      _
    $region17: #{_lambda_.5} parent=1 // pred_fallthru
      _
    // Predicated region
    $region18: #{_lambda_.5} parent=1 // pred_check
      _
    $region19: #{_lambda_.5} parent=1 // pred_check_branch
      %20 = sbr.rel (0) target = $region21
    $region20: #{_lambda_.5} parent=1 // pred_region
      _
    $region21: #{_lambda_.5} parent=1 // pred_fallthru
      _
    %v22 = vld [vmem:[%s0] sm:$0x3]
    %v23 = vld [vmem:[%s1] sm:$0x1]
    %v24 = vld [vmem:[%s2] sm:$0x1]
    %vm25 = vcmask 254976
    %v26 = vsel %vm25, %v22, 0.0
    %27 = vadd.xlane.f32.xlu0 %v26
    %v28 = vpop.xlane.xlu0 %27
    %v29 = vrcp.pop 32.0
    %v30 = vmul.f32 %v28, %v29
    %v31 = vsub.f32 %v22, %v30
    %v32 = vmul.f32 %v31, %v31
    %v33 = vsel %vm25, %v32, 0.0
    %34 = vadd.xlane.f32.xlu0 %v33
    %v35 = vpop.xlane.xlu0 %34
    %v36 = vmul.f32 %v35, %v29
    %v37 = vadd.f32 %v36, 1e-05
    %v38 = vrsqrt.pop %v37
    %v39 = vmul.f32 %v31, %v38
    %v41 = vlaneseq
    %v42 = vshrl.u32 %v41, 7
    %v43 = vsub.s32 0, %v42
    %v44 = vrot.slane %v23, %v43
    %v46 = vmul.f32 %v39, %v44
    %v48 = vlaneseq
    %v49 = vshrl.u32 %v48, 7
    %v50 = vsub.s32 0, %v49
    %v51 = vrot.slane %v24, %v50
    %v53 = vadd.f32 %v46, %v51
    %v54 = vld [vmem:[%s3] sm:$0xf]
    %v55 = vld [vmem:[%s3 + $0x4] sm:$0xf]
    %v56 = vld [vmem:[%s3 + $0x8] sm:$0xf]
    %v57 = vld [vmem:[%s3 + $0xc] sm:$0xf]
    %v58 = vpack.c.bf16 %v53, %v53
    %v59 = vld [vmem:[%s4] sm:$0x1]
    %v61 = vlaneseq
    %v62 = vshrl.u32 %v61, 7
    %v63 = vsub.s32 0, %v62
    %v64 = vrot.slane %v59, %v63
    %v70 = vunpack.c.l.b16 %v54
    %v71 = vunpack.c.l.b16 %v55
    %v72 = vunpack.c.l.b16 %v56
    %v73 = vunpack.c.l.b16 %v57
    %v74 = vpack.c.b16 %v71, %v70
    %v75 = vpack.c.b16 %v73, %v72
    %vm78 = vcmask 261120
    %v80 = vsel %vm78, %v58, 0
    %82 = vmatprep.subr.bf16.mxu0 0
    %83 = vmatpush1.bf16.msra.mxu0 %v74
    %84 = vmatprep.subr.bf16.mxu0 0
    %85 = vmatpush1.bf16.msra.mxu0 %v75
    %86 = vmatprep.subr.bf16.mxu0 0
    %87 = vmatpush1.bf16.msra.mxu0 0
    %88 = vmatprep.subr.bf16.mxu0 0
    %89 = vmatpush1.bf16.msra.mxu0 0
    %90 = vmatprep.subr.bf16.mxu0 0
    %91 = vmatpush1.bf16.msra.mxu0 0
    %92 = vmatprep.subr.bf16.mxu0 0
    %93 = vmatpush1.bf16.msra.mxu0 0
    %94 = vmatprep.subr.bf16.mxu0 0
    %95 = vmatpush1.bf16.msra.mxu0 0
    %96 = vmatprep.subr.bf16.mxu0 0
    %97 = vmatpush1.bf16.msra.mxu0 0
    %98 = vmatprep.subr.bf16.mxu0 0
    %99 = vmatpush1.bf16.msra.mxu0 0
    %100 = vmatprep.subr.bf16.mxu0 0
    %101 = vmatpush1.bf16.msra.mxu0 0
    %102 = vmatprep.subr.bf16.mxu0 0
    %103 = vmatpush1.bf16.msra.mxu0 0
    %104 = vmatprep.subr.bf16.mxu0 0
    %105 = vmatpush1.bf16.msra.mxu0 0
    %106 = vmatprep.subr.bf16.mxu0 0
    %107 = vmatpush1.bf16.msra.mxu0 0
    %108 = vmatprep.subr.bf16.mxu0 0
    %109 = vmatpush1.bf16.msra.mxu0 0
    %110 = vmatprep.subr.bf16.mxu0 0
    %111 = vmatpush1.bf16.msra.mxu0 0
    %112 = vmatprep.subr.bf16.mxu0 0
    %113 = vmatpush1.bf16.msra.mxu0 0
    %114 = vmatprep.mubr.bf16.mxu0 0
    %115 = vmatmul.mubr.bf16.gmra.mrb[0].mxu0 %v80
    %v116 = vpop.f32.mrb[0].mxu0
    %v117 = vadd.f32 %v64, %v116
    %v118 = vpop.f32.mrb[0].mxu0
    %v119 = vpop.f32.mrb[0].mxu0
    %v120 = vpop.f32.mrb[0].mxu0
    %121 = vdwg.mxu0
    %122 = vst [vmem:[#allocation2] sm:$0x3] %v117
    // Predicated region
    $region22: #{_lambda_.5} parent=1 // pred_check
      _
    $region23: #{_lambda_.5} parent=1 // pred_check_branch
      %124 = sbr.rel (0) target = $region25
    $region24: #{_lambda_.5} parent=1 // pred_region
      %s126 = ssub.s32 32, 32
      %127 = vsyncadd [#allocation3], %s126
      %s129 = sshll.u32 [#allocation2], 4
      %s130 = int_to_ptr.vmem [resolvable:$true] %s129
      %132 = dma.vmem_to_hbm [thread:$0]  %s130, 32, %s5, [#allocation3]
    $region25: #{_lambda_.5} parent=1 // pred_fallthru
      _
    // Predicated region
    $region26: #{_lambda_.5} parent=1 // pred_check
      _
    $region27: #{_lambda_.5} parent=1 // pred_check_branch
      %134 = sbr.rel (0) target = $region29
    $region28: #{_lambda_.5} parent=1 // pred_region
      %135 = dma.done [#allocation3], 32
    $region29: #{_lambda_.5} parent=1 // pred_fallthru
      _
    %136 = vsyncpa [#allocation3], 1

// kernel: _lambda_.4
$region0: #{_lambda_.4}
  #allocation0 [shape = 'u32[]', space=smem, size = 0x4, offset = 0x4, fixed_abs, tag = 'smem constant byte address 0x4 - core index']
  #allocation1 [shape = 'u32[144,128]{1,0:T(1,128)}', space=vmem, size = 0x12000, scoped, tag = 'internal scratch']
  #allocation2 [shape = 'f32[1,24,32]{2,1,0:T(8,128)}', space=vmem, size = 0x3000, scoped, tag = 'scratch operand']
  #allocation3 [shape = 'f32[1,24,32]{2,1,0:T(8,128)}', space=vmem, size = 0x3000, scoped, tag = 'scratch operand']
  %s0 = inlined_call_operand.vmem [shape: f32[2,24,32], index: 0, kind: input, shape index: {}]
  %s1 = inlined_call_operand.vmem [shape: f32[1,24,32], index: 1, kind: input, shape index: {}]
  %s2 = inlined_call_operand.vmem [shape: f32[2,1,32], index: 2, kind: input, shape index: {}]
  %s3 = inlined_call_operand.vmem [shape: f32[2,1,32], index: 3, kind: input, shape index: {}]
  %s4 = inlined_call_operand.vmem [shape: bf16[2,32,96], index: 4, kind: input, shape index: {}]
  %s5 = inlined_call_operand.vmem [shape: bf16[2,32,32], index: 5, kind: input, shape index: {}]
  %s6 = inlined_call_operand.vmem [shape: f32[2,1,32], index: 6, kind: input, shape index: {}]
  %s7 = inlined_call_operand.vmem [shape: f32[2,1,32], index: 7, kind: input, shape index: {}]
  %s8 = inlined_call_operand.vmem [shape: f32[2,1,32], index: 8, kind: input, shape index: {}]
  %s9 = inlined_call_operand.vmem [shape: bf16[2,32,64], index: 9, kind: input, shape index: {}]
  %s10 = inlined_call_operand.vmem [shape: f32[2,1,64], index: 10, kind: input, shape index: {}]
  %s11 = inlined_call_operand.vmem [shape: bf16[2,64,32], index: 11, kind: input, shape index: {}]
  %s12 = inlined_call_operand.vmem [shape: f32[2,1,32], index: 12, kind: input, shape index: {}]
  %s13 = inlined_call_operand.vmem [shape: f32[2,24,32], index: 13, kind: output, shape index: {}]
  %s14 = sld [smem:[#allocation0]]
  $region93: #{_lambda_.4} parent=0
    _
  %s16 = ssub.s32 1, %s14
  %s17 = scalar_select 0, %s16, %s14
  loop: start=0, step=1, limit=6
  $region2: #{_lambda_.4} parent=0 // loop_pre_header
    _
  $region3: #{_lambda_.4} parent=0 // loop_header
    %s19 = sphi 0, %s23
    %p20 = scmp.ge.s32.totalorder %s19, 6
    %s26 = sphi 0, %s38
    %s27 = sphi 0, %s34
    %s28 = sphi 0, %s26
    %s29 = sphi 0, %s27
    %s30 = sphi 0, %s28
    %s31 = sphi 0, %s29
    %s41 = sphi 0, %s43
    %s44 = sphi 0, %s41
    %s45 = sphi 0, %s44
    %s61 = sphi 0, %s45
    %s65 = sphi 0, %s65
    %s67 = sphi 0, %s65
    %s68 = sphi 0, %s67
    %s82 = sphi 0, %s68
    %s88 = sphi 0, %s90
    %s91 = sphi 0, %s88
    %s92 = sphi 0, %s91
    %s108 = sphi 0, %s92
    %s114 = sphi 0, %s116
    %s117 = sphi 0, %s114
    %s118 = sphi 0, %s117
    %s134 = sphi 0, %s118
    %s140 = sphi 0, %s142
    %s143 = sphi 0, %s140
    %s144 = sphi 0, %s143
    %s160 = sphi 0, %s144
    %s166 = sphi 0, %s168
    %s169 = sphi 0, %s166
    %s170 = sphi 0, %s169
    %s186 = sphi 0, %s170
    %s192 = sphi 0, %s194
    %s195 = sphi 0, %s192
    %s196 = sphi 0, %s195
    %s212 = sphi 0, %s196
    %s218 = sphi 0, %s220
    %s221 = sphi 0, %s218
    %s222 = sphi 0, %s221
    %s238 = sphi 0, %s222
    %s244 = sphi 0, %s246
    %s247 = sphi 0, %s244
    %s248 = sphi 0, %s247
    %s264 = sphi 0, %s248
    %s270 = sphi 0, %s272
    %s273 = sphi 0, %s270
    %s274 = sphi 0, %s273
    %s290 = sphi 0, %s274
    %s296 = sphi 0, %s298
    %s299 = sphi 0, %s296
    %s300 = sphi 0, %s299
    %s316 = sphi 0, %s300
    %s322 = sphi 0, %s324
    %s325 = sphi 0, %s322
    %s326 = sphi 0, %s325
    %s342 = sphi 0, %s326
    %s348 = sphi 0, %s350
    %s351 = sphi 0, %s348
    %s352 = sphi 0, %s351
    %s368 = sphi 0, %s352
    %s374 = sphi 0, %s376
    %s377 = sphi 0, %s374
    %s378 = sphi 0, %s377
    %s394 = sphi 0, %s378
  $region4: #{_lambda_.4} parent=0 // loop_header_branch
    %22 = sbr.rel (%p20) target = $region8
  $region5: #{_lambda_.4} parent=0 // loop_body
    %s24 = ssub.s32 %s19, 1
    %s25 = ssub.s32 %s19, 2
    %s32 = sadd.s32 1, %s27
    %p33 = scmp.ge.s32.totalorder %s32, 2
    %s34 = scalar_select %p33, 0, %s32
    %s35 = sadd.s32 1, %s26
    %s36 = scalar_select %p33, %s35, %s26
    %p37 = scmp.ge.s32.totalorder %s36, 2
    %s38 = scalar_select %p37, 0, %s36
    %s39 = ssub.s32 %s26, %s38
    %p40 = scmp.eq.s32.totalorder %s39, 0
    %s42 = sadd.s32 %s41, 1
    %s43 = scalar_select %p40, %s41, %s42
    %p46 = pneg %p40
    %p47 = scmp.eq.s32.totalorder %s19, 3
    %p48 = por %p46, %p47
    %p49 = scmp.ne.s32.totalorder %s41, %s44
    %p50 = scmp.eq.s32.totalorder %s19, 0
    %p51 = por %p49, %p50
    %p52 = scmp.ne.s32.totalorder %s41, %s44
    %p53 = scmp.eq.s32.totalorder %s24, 3
    %p54 = por %p52, %p53
    %p55 = scmp.ne.s32.totalorder %s44, %s45
    %p56 = scmp.eq.s32.totalorder %s24, 0
    %p57 = por %p55, %p56
    %p58 = scmp.ne.s32.totalorder %s44, %s45
    %p59 = scmp.eq.s32.totalorder %s25, 3
    %p60 = por %p58, %p59
    %p62 = scmp.ne.s32.totalorder %s45, %s61
    %p63 = scmp.eq.s32.totalorder %s25, 0
    %p64 = por %p62, %p63
    %s66 = sadd.s32 %s65, 1
    %p69 = scmp.eq.s32.totalorder %s19, 3
    %p70 = scmp.ne.s32.totalorder %s65, %s67
    %p71 = scmp.eq.s32.totalorder %s19, 0
    %p72 = por %p70, %p71
    %p73 = scmp.ne.s32.totalorder %s65, %s67
    %p74 = scmp.eq.s32.totalorder %s24, 3
    %p75 = por %p73, %p74
    %p76 = scmp.ne.s32.totalorder %s67, %s68
    %p77 = scmp.eq.s32.totalorder %s24, 0
    %p78 = por %p76, %p77
    %p79 = scmp.ne.s32.totalorder %s67, %s68
    %p80 = scmp.eq.s32.totalorder %s25, 3
    %p81 = por %p79, %p80
    %p83 = scmp.ne.s32.totalorder %s68, %s82
    %p84 = scmp.eq.s32.totalorder %s25, 0
    %p85 = por %p83, %p84
    %s86 = ssub.s32 %s27, %s34
    %p87 = scmp.eq.s32.totalorder %s86, 0
    %s89 = sadd.s32 %s88, 1
    %s90 = scalar_select %p87, %s88, %s89
    %p93 = pneg %p87
    %p94 = scmp.eq.s32.totalorder %s19, 3
    %p95 = por %p93, %p94
    %p96 = scmp.ne.s32.totalorder %s88, %s91
    %p97 = scmp.eq.s32.totalorder %s19, 0
    %p98 = por %p96, %p97
    %p99 = scmp.ne.s32.totalorder %s88, %s91
    %p100 = scmp.eq.s32.totalorder %s24, 3
    %p101 = por %p99, %p100
    %p102 = scmp.ne.s32.totalorder %s91, %s92
    %p103 = scmp.eq.s32.totalorder %s24, 0
    %p104 = por %p102, %p103
    %p105 = scmp.ne.s32.totalorder %s91, %s92
    %p106 = scmp.eq.s32.totalorder %s25, 3
    %p107 = por %p105, %p106
    %p109 = scmp.ne.s32.totalorder %s92, %s108
    %p110 = scmp.eq.s32.totalorder %s25, 0
    %p111 = por %p109, %p110
    %s112 = ssub.s32 %s27, %s34
    %p113 = scmp.eq.s32.totalorder %s112, 0
    %s115 = sadd.s32 %s114, 1
    %s116 = scalar_select %p113, %s114, %s115
    %p119 = pneg %p113
    %p120 = scmp.eq.s32.totalorder %s19, 3
    %p121 = por %p119, %p120
    %p122 = scmp.ne.s32.totalorder %s114, %s117
    %p123 = scmp.eq.s32.totalorder %s19, 0
    %p124 = por %p122, %p123
    %p125 = scmp.ne.s32.totalorder %s114, %s117
    %p126 = scmp.eq.s32.totalorder %s24, 3
    %p127 = por %p125, %p126
    %p128 = scmp.ne.s32.totalorder %s117, %s118
    %p129 = scmp.eq.s32.totalorder %s24, 0
    %p130 = por %p128, %p129
    %p131 = scmp.ne.s32.totalorder %s117, %s118
    %p132 = scmp.eq.s32.totalorder %s25, 3
    %p133 = por %p131, %p132
    %p135 = scmp.ne.s32.totalorder %s118, %s134
    %p136 = scmp.eq.s32.totalorder %s25, 0
    %p137 = por %p135, %p136
    %s138 = ssub.s32 %s27, %s34
    %p139 = scmp.eq.s32.totalorder %s138, 0
    %s141 = sadd.s32 %s140, 1
    %s142 = scalar_select %p139, %s140, %s141
    %p145 = pneg %p139
    %p146 = scmp.eq.s32.totalorder %s19, 3
    %p147 = por %p145, %p146
    %p148 = scmp.ne.s32.totalorder %s140, %s143
    %p149 = scmp.eq.s32.totalorder %s19, 0
    %p150 = por %p148, %p149
    %p151 = scmp.ne.s32.totalorder %s140, %s143
    %p152 = scmp.eq.s32.totalorder %s24, 3
    %p153 = por %p151, %p152
    %p154 = scmp.ne.s32.totalorder %s143, %s144
    %p155 = scmp.eq.s32.totalorder %s24, 0
    %p156 = por %p154, %p155
    %p157 = scmp.ne.s32.totalorder %s143, %s144
    %p158 = scmp.eq.s32.totalorder %s25, 3
    %p159 = por %p157, %p158
    %p161 = scmp.ne.s32.totalorder %s144, %s160
    %p162 = scmp.eq.s32.totalorder %s25, 0
    %p163 = por %p161, %p162
    %s164 = ssub.s32 %s27, %s34
    %p165 = scmp.eq.s32.totalorder %s164, 0
    %s167 = sadd.s32 %s166, 1
    %s168 = scalar_select %p165, %s166, %s167
    %p171 = pneg %p165
    %p172 = scmp.eq.s32.totalorder %s19, 3
    %p173 = por %p171, %p172
    %p174 = scmp.ne.s32.totalorder %s166, %s169
    %p175 = scmp.eq.s32.totalorder %s19, 0
    %p176 = por %p174, %p175
    %p177 = scmp.ne.s32.totalorder %s166, %s169
    %p178 = scmp.eq.s32.totalorder %s24, 3
    %p179 = por %p177, %p178
    %p180 = scmp.ne.s32.totalorder %s169, %s170
    %p181 = scmp.eq.s32.totalorder %s24, 0
    %p182 = por %p180, %p181
    %p183 = scmp.ne.s32.totalorder %s169, %s170
    %p184 = scmp.eq.s32.totalorder %s25, 3
    %p185 = por %p183, %p184
    %p187 = scmp.ne.s32.totalorder %s170, %s186
    %p188 = scmp.eq.s32.totalorder %s25, 0
    %p189 = por %p187, %p188
    %s190 = ssub.s32 %s27, %s34
    %p191 = scmp.eq.s32.totalorder %s190, 0
    %s193 = sadd.s32 %s192, 1
    %s194 = scalar_select %p191, %s192, %s193
    %p197 = pneg %p191
    %p198 = scmp.eq.s32.totalorder %s19, 3
    %p199 = por %p197, %p198
    %p200 = scmp.ne.s32.totalorder %s192, %s195
    %p201 = scmp.eq.s32.totalorder %s19, 0
    %p202 = por %p200, %p201
    %p203 = scmp.ne.s32.totalorder %s192, %s195
    %p204 = scmp.eq.s32.totalorder %s24, 3
    %p205 = por %p203, %p204
    %p206 = scmp.ne.s32.totalorder %s195, %s196
    %p207 = scmp.eq.s32.totalorder %s24, 0
    %p208 = por %p206, %p207
    %p209 = scmp.ne.s32.totalorder %s195, %s196
    %p210 = scmp.eq.s32.totalorder %s25, 3
    %p211 = por %p209, %p210
    %p213 = scmp.ne.s32.totalorder %s196, %s212
    %p214 = scmp.eq.s32.totalorder %s25, 0
    %p215 = por %p213, %p214
    %s216 = ssub.s32 %s27, %s34
    %p217 = scmp.eq.s32.totalorder %s216, 0
    %s219 = sadd.s32 %s218, 1
    %s220 = scalar_select %p217, %s218, %s219
    %p223 = pneg %p217
    %p224 = scmp.eq.s32.totalorder %s19, 3
    %p225 = por %p223, %p224
    %p226 = scmp.ne.s32.totalorder %s218, %s221
    %p227 = scmp.eq.s32.totalorder %s19, 0
    %p228 = por %p226, %p227
    %p229 = scmp.ne.s32.totalorder %s218, %s221
    %p230 = scmp.eq.s32.totalorder %s24, 3
    %p231 = por %p229, %p230
    %p232 = scmp.ne.s32.totalorder %s221, %s222
    %p233 = scmp.eq.s32.totalorder %s24, 0
    %p234 = por %p232, %p233
    %p235 = scmp.ne.s32.totalorder %s221, %s222
    %p236 = scmp.eq.s32.totalorder %s25, 3
    %p237 = por %p235, %p236
    %p239 = scmp.ne.s32.totalorder %s222, %s238
    %p240 = scmp.eq.s32.totalorder %s25, 0
    %p241 = por %p239, %p240
    %s242 = ssub.s32 %s27, %s34
    %p243 = scmp.eq.s32.totalorder %s242, 0
    %s245 = sadd.s32 %s244, 1
    %s246 = scalar_select %p243, %s244, %s245
    %p249 = pneg %p243
    %p250 = scmp.eq.s32.totalorder %s19, 3
    %p251 = por %p249, %p250
    %p252 = scmp.ne.s32.totalorder %s244, %s247
    %p253 = scmp.eq.s32.totalorder %s19, 0
    %p254 = por %p252, %p253
    %p255 = scmp.ne.s32.totalorder %s244, %s247
    %p256 = scmp.eq.s32.totalorder %s24, 3
    %p257 = por %p255, %p256
    %p258 = scmp.ne.s32.totalorder %s247, %s248
    %p259 = scmp.eq.s32.totalorder %s24, 0
    %p260 = por %p258, %p259
    %p261 = scmp.ne.s32.totalorder %s247, %s248
    %p262 = scmp.eq.s32.totalorder %s25, 3
    %p263 = por %p261, %p262
    %p265 = scmp.ne.s32.totalorder %s248, %s264
    %p266 = scmp.eq.s32.totalorder %s25, 0
    %p267 = por %p265, %p266
    %s268 = ssub.s32 %s27, %s34
    %p269 = scmp.eq.s32.totalorder %s268, 0
    %s271 = sadd.s32 %s270, 1
    %s272 = scalar_select %p269, %s270, %s271
    %p275 = pneg %p269
    %p276 = scmp.eq.s32.totalorder %s19, 3
    %p277 = por %p275, %p276
    %p278 = scmp.ne.s32.totalorder %s270, %s273
    %p279 = scmp.eq.s32.totalorder %s19, 0
    %p280 = por %p278, %p279
    %p281 = scmp.ne.s32.totalorder %s270, %s273
    %p282 = scmp.eq.s32.totalorder %s24, 3
    %p283 = por %p281, %p282
    %p284 = scmp.ne.s32.totalorder %s273, %s274
    %p285 = scmp.eq.s32.totalorder %s24, 0
    %p286 = por %p284, %p285
    %p287 = scmp.ne.s32.totalorder %s273, %s274
    %p288 = scmp.eq.s32.totalorder %s25, 3
    %p289 = por %p287, %p288
    %p291 = scmp.ne.s32.totalorder %s274, %s290
    %p292 = scmp.eq.s32.totalorder %s25, 0
    %p293 = por %p291, %p292
    %s294 = ssub.s32 %s27, %s34
    %p295 = scmp.eq.s32.totalorder %s294, 0
    %s297 = sadd.s32 %s296, 1
    %s298 = scalar_select %p295, %s296, %s297
    %p301 = pneg %p295
    %p302 = scmp.eq.s32.totalorder %s19, 3
    %p303 = por %p301, %p302
    %p304 = scmp.ne.s32.totalorder %s296, %s299
    %p305 = scmp.eq.s32.totalorder %s19, 0
    %p306 = por %p304, %p305
    %p307 = scmp.ne.s32.totalorder %s296, %s299
    %p308 = scmp.eq.s32.totalorder %s24, 3
    %p309 = por %p307, %p308
    %p310 = scmp.ne.s32.totalorder %s299, %s300
    %p311 = scmp.eq.s32.totalorder %s24, 0
    %p312 = por %p310, %p311
    %p313 = scmp.ne.s32.totalorder %s299, %s300
    %p314 = scmp.eq.s32.totalorder %s25, 3
    %p315 = por %p313, %p314
    %p317 = scmp.ne.s32.totalorder %s300, %s316
    %p318 = scmp.eq.s32.totalorder %s25, 0
    %p319 = por %p317, %p318
    %s320 = ssub.s32 %s27, %s34
    %p321 = scmp.eq.s32.totalorder %s320, 0
    %s323 = sadd.s32 %s322, 1
    %s324 = scalar_select %p321, %s322, %s323
    %p327 = pneg %p321
    %p328 = scmp.eq.s32.totalorder %s19, 3
    %p329 = por %p327, %p328
    %p330 = scmp.ne.s32.totalorder %s322, %s325
    %p331 = scmp.eq.s32.totalorder %s19, 0
    %p332 = por %p330, %p331
    %p333 = scmp.ne.s32.totalorder %s322, %s325
    %p334 = scmp.eq.s32.totalorder %s24, 3
    %p335 = por %p333, %p334
    %p336 = scmp.ne.s32.totalorder %s325, %s326
    %p337 = scmp.eq.s32.totalorder %s24, 0
    %p338 = por %p336, %p337
    %p339 = scmp.ne.s32.totalorder %s325, %s326
    %p340 = scmp.eq.s32.totalorder %s25, 3
    %p341 = por %p339, %p340
    %p343 = scmp.ne.s32.totalorder %s326, %s342
    %p344 = scmp.eq.s32.totalorder %s25, 0
    %p345 = por %p343, %p344
    %s346 = ssub.s32 %s27, %s34
    %p347 = scmp.eq.s32.totalorder %s346, 0
    %s349 = sadd.s32 %s348, 1
    %s350 = scalar_select %p347, %s348, %s349
    %p353 = pneg %p347
    %p354 = scmp.eq.s32.totalorder %s19, 3
    %p355 = por %p353, %p354
    %p356 = scmp.ne.s32.totalorder %s348, %s351
    %p357 = scmp.eq.s32.totalorder %s19, 0
    %p358 = por %p356, %p357
    %p359 = scmp.ne.s32.totalorder %s348, %s351
    %p360 = scmp.eq.s32.totalorder %s24, 3
    %p361 = por %p359, %p360
    %p362 = scmp.ne.s32.totalorder %s351, %s352
    %p363 = scmp.eq.s32.totalorder %s24, 0
    %p364 = por %p362, %p363
    %p365 = scmp.ne.s32.totalorder %s351, %s352
    %p366 = scmp.eq.s32.totalorder %s25, 3
    %p367 = por %p365, %p366
    %p369 = scmp.ne.s32.totalorder %s352, %s368
    %p370 = scmp.eq.s32.totalorder %s25, 0
    %p371 = por %p369, %p370
    %s372 = ssub.s32 %s26, %s38
    %p373 = scmp.eq.s32.totalorder %s372, 0
    %s375 = sadd.s32 %s374, 1
    %s376 = scalar_select %p373, %s374, %s375
    %p379 = pneg %p373
    %p380 = scmp.eq.s32.totalorder %s19, 3
    %p381 = por %p379, %p380
    %p382 = scmp.ne.s32.totalorder %s374, %s377
    %p383 = scmp.eq.s32.totalorder %s19, 0
    %p384 = por %p382, %p383
    %p385 = scmp.ne.s32.totalorder %s374, %s377
    %p386 = scmp.eq.s32.totalorder %s24, 3
    %p387 = por %p385, %p386
    %p388 = scmp.ne.s32.totalorder %s377, %s378
    %p389 = scmp.eq.s32.totalorder %s24, 0
    %p390 = por %p388, %p389
    %p391 = scmp.ne.s32.totalorder %s377, %s378
    %p392 = scmp.eq.s32.totalorder %s25, 3
    %p393 = por %p391, %p392
    %p395 = scmp.ne.s32.totalorder %s378, %s394
    %p396 = scmp.eq.s32.totalorder %s25, 0
    %p397 = por %p395, %p396
    %p398 = scmp.le.s32.totalorder 1, %s19
    %p399 = scmp.lt.s32.totalorder %s19, 5
    %p400 = pnand %p398, %p399
    %p401 = pneg %p400
    // Predicated region
    $region9: #{_lambda_.4} parent=5 // pred_check
      _
    $region10: #{_lambda_.4} parent=5 // pred_check_branch
      %403 = sbr.rel (%p400) target = $region12
    $region11: #{_lambda_.4} parent=5 // pred_region
      %s404 = ssub.s32 %s19, 1
      // Predicated region
      $region13: #{_lambda_.4} parent=11 // pred_check
        %p405 = pneg %p78
      $region14: #{_lambda_.4} parent=11 // pred_check_branch
        %407 = sbr.rel (%p405) target = $region16
      $region15: #{_lambda_.4} parent=11 // pred_region
        _
      $region16: #{_lambda_.4} parent=11 // pred_fallthru
        _
    $region12: #{_lambda_.4} parent=5 // pred_fallthru
      _
    %p408 = scmp.lt.s32.totalorder %s19, 4
    // Predicated region
    $region17: #{_lambda_.4} parent=5 // pred_check
      %p409 = pneg %p408
    $region18: #{_lambda_.4} parent=5 // pred_check_branch
      %411 = sbr.rel (%p409) target = $region20
    $region19: #{_lambda_.4} parent=5 // pred_region
      // Predicated region
      $region21: #{_lambda_.4} parent=19 // pred_check
        %p412 = pneg %p51
      $region22: #{_lambda_.4} parent=19 // pred_check_branch
        %414 = sbr.rel (%p412) target = $region24
      $region23: #{_lambda_.4} parent=19 // pred_region
        %p415 = scmp.lt.s32.totalorder %s26, 1
        %s416 = scalar_select %p415, %s26, 1
        %s417 = smul.addr %s416, 3
        %s418 = smul.addr %s417, 8
        %s419 = scalar_lea.vmem %s0, %s418
      $region24: #{_lambda_.4} parent=19 // pred_fallthru
        _
      // Predicated region
      $region25: #{_lambda_.4} parent=19 // pred_check
        %p420 = pneg %p98
      $region26: #{_lambda_.4} parent=19 // pred_check_branch
        %422 = sbr.rel (%p420) target = $region28
      $region27: #{_lambda_.4} parent=19 // pred_region
        %p423 = scmp.lt.s32.totalorder %s27, 1
        %s424 = scalar_select %p423, %s27, 1
        %s425 = scalar_lea.vmem %s2, %s424
      $region28: #{_lambda_.4} parent=19 // pred_fallthru
        _
      // Predicated region
      $region29: #{_lambda_.4} parent=19 // pred_check
        %p426 = pneg %p124
      $region30: #{_lambda_.4} parent=19 // pred_check_branch
        %428 = sbr.rel (%p426) target = $region32
      $region31: #{_lambda_.4} parent=19 // pred_region
        %p429 = scmp.lt.s32.totalorder %s27, 1
        %s430 = scalar_select %p429, %s27, 1
        %s431 = scalar_lea.vmem %s3, %s430
      $region32: #{_lambda_.4} parent=19 // pred_fallthru
        _
      // Predicated region
      $region33: #{_lambda_.4} parent=19 // pred_check
        %p432 = pneg %p150
      $region34: #{_lambda_.4} parent=19 // pred_check_branch
        %434 = sbr.rel (%p432) target = $region36
      $region35: #{_lambda_.4} parent=19 // pred_region
        %p435 = scmp.lt.s32.totalorder %s27, 1
        %s436 = scalar_select %p435, %s27, 1
        %s437 = smul.addr %s436, 4
        %s438 = smul.addr %s437, 4
        %s439 = scalar_lea.vmem %s4, %s438
      $region36: #{_lambda_.4} parent=19 // pred_fallthru
        _
      // Predicated region
      $region37: #{_lambda_.4} parent=19 // pred_check
        %p440 = pneg %p176
      $region38: #{_lambda_.4} parent=19 // pred_check_branch
        %442 = sbr.rel (%p440) target = $region40
      $region39: #{_lambda_.4} parent=19 // pred_region
        %p443 = scmp.lt.s32.totalorder %s27, 1
        %s444 = scalar_select %p443, %s27, 1
        %s445 = smul.addr %s444, 4
        %s446 = smul.addr %s445, 4
        %s447 = scalar_lea.vmem %s5, %s446
      $region40: #{_lambda_.4} parent=19 // pred_fallthru
        _
      // Predicated region
      $region41: #{_lambda_.4} parent=19 // pred_check
        %p448 = pneg %p202
      $region42: #{_lambda_.4} parent=19 // pred_check_branch
        %450 = sbr.rel (%p448) target = $region44
      $region43: #{_lambda_.4} parent=19 // pred_region
        %p451 = scmp.lt.s32.totalorder %s27, 1
        %s452 = scalar_select %p451, %s27, 1
        %s453 = scalar_lea.vmem %s6, %s452
      $region44: #{_lambda_.4} parent=19 // pred_fallthru
        _
      // Predicated region
      $region45: #{_lambda_.4} parent=19 // pred_check
        %p454 = pneg %p228
      $region46: #{_lambda_.4} parent=19 // pred_check_branch
        %456 = sbr.rel (%p454) target = $region48
      $region47: #{_lambda_.4} parent=19 // pred_region
        %p457 = scmp.lt.s32.totalorder %s27, 1
        %s458 = scalar_select %p457, %s27, 1
        %s459 = scalar_lea.vmem %s7, %s458
      $region48: #{_lambda_.4} parent=19 // pred_fallthru
        _
      // Predicated region
      $region49: #{_lambda_.4} parent=19 // pred_check
        %p460 = pneg %p254
      $region50: #{_lambda_.4} parent=19 // pred_check_branch
        %462 = sbr.rel (%p460) target = $region52
      $region51: #{_lambda_.4} parent=19 // pred_region
        %p463 = scmp.lt.s32.totalorder %s27, 1
        %s464 = scalar_select %p463, %s27, 1
        %s465 = scalar_lea.vmem %s8, %s464
      $region52: #{_lambda_.4} parent=19 // pred_fallthru
        _
      // Predicated region
      $region53: #{_lambda_.4} parent=19 // pred_check
        %p466 = pneg %p280
      $region54: #{_lambda_.4} parent=19 // pred_check_branch
        %468 = sbr.rel (%p466) target = $region56
      $region55: #{_lambda_.4} parent=19 // pred_region
        %p469 = scmp.lt.s32.totalorder %s27, 1
        %s470 = scalar_select %p469, %s27, 1
        %s471 = smul.addr %s470, 4
        %s472 = smul.addr %s471, 4
        %s473 = scalar_lea.vmem %s9, %s472
      $region56: #{_lambda_.4} parent=19 // pred_fallthru
        _
      // Predicated region
      $region57: #{_lambda_.4} parent=19 // pred_check
        %p474 = pneg %p306
      $region58: #{_lambda_.4} parent=19 // pred_check_branch
        %476 = sbr.rel (%p474) target = $region60
      $region59: #{_lambda_.4} parent=19 // pred_region
        %p477 = scmp.lt.s32.totalorder %s27, 1
        %s478 = scalar_select %p477, %s27, 1
        %s479 = scalar_lea.vmem %s10, %s478
      $region60: #{_lambda_.4} parent=19 // pred_fallthru
        _
      // Predicated region
      $region61: #{_lambda_.4} parent=19 // pred_check
        %p480 = pneg %p332
      $region62: #{_lambda_.4} parent=19 // pred_check_branch
        %482 = sbr.rel (%p480) target = $region64
      $region63: #{_lambda_.4} parent=19 // pred_region
        %p483 = scmp.lt.s32.totalorder %s27, 1
        %s484 = scalar_select %p483, %s27, 1
        %s485 = smul.addr %s484, 8
        %s486 = smul.addr %s485, 4
        %s487 = scalar_lea.vmem %s11, %s486
      $region64: #{_lambda_.4} parent=19 // pred_fallthru
        _
      // Predicated region
      $region65: #{_lambda_.4} parent=19 // pred_check
        %p488 = pneg %p358
      $region66: #{_lambda_.4} parent=19 // pred_check_branch
        %490 = sbr.rel (%p488) target = $region68
      $region67: #{_lambda_.4} parent=19 // pred_region
        %p491 = scmp.lt.s32.totalorder %s27, 1
        %s492 = scalar_select %p491, %s27, 1
        %s493 = scalar_lea.vmem %s12, %s492
      $region68: #{_lambda_.4} parent=19 // pred_fallthru
        _
    $region20: #{_lambda_.4} parent=5 // pred_fallthru
      _
    %p494 = scmp.le.s32.totalorder 1, %s19
    %p495 = scmp.lt.s32.totalorder %s19, 5
    %p496 = pnand %p494, %p495
    %p497 = pneg %p496
    // Predicated region
    $region69: #{_lambda_.4} parent=5 // pred_check
      _
    $region70: #{_lambda_.4} parent=5 // pred_check_branch
      %499 = sbr.rel (%p496) target = $region72
    $region71: #{_lambda_.4} parent=5 // pred_region
      %s500 = ssub.s32 %s19, 1
      %p501 = scmp.lt.s32.totalorder %s28, 1
      %s502 = scalar_select %p501, %s28, 1
      %s503 = smul.addr %s502, 3
      %s504 = smul.addr %s503, 8
      %s505 = scalar_lea.vmem %s0, %s504
      %p506 = pneg %p57
      %p507 = pneg %p54
      %p508 = pneg %p78
      %p509 = pneg %p75
      %p510 = scmp.lt.s32.totalorder %s29, 1
      %s511 = scalar_select %p510, %s29, 1
      %s512 = scalar_lea.vmem %s2, %s511
      %p513 = pneg %p104
      %p514 = pneg %p101
      %p515 = scmp.lt.s32.totalorder %s29, 1
      %s516 = scalar_select %p515, %s29, 1
      %s517 = scalar_lea.vmem %s3, %s516
      %p518 = pneg %p130
      %p519 = pneg %p127
      %p520 = scmp.lt.s32.totalorder %s29, 1
      %s521 = scalar_select %p520, %s29, 1
      %s522 = smul.addr %s521, 4
      %s523 = smul.addr %s522, 4
      %s524 = scalar_lea.vmem %s4, %s523
      %p525 = pneg %p156
      %p526 = pneg %p153
      %p527 = scmp.lt.s32.totalorder %s29, 1
      %s528 = scalar_select %p527, %s29, 1
      %s529 = smul.addr %s528, 4
      %s530 = smul.addr %s529, 4
      %s531 = scalar_lea.vmem %s5, %s530
      %p532 = pneg %p182
      %p533 = pneg %p179
      %p534 = scmp.lt.s32.totalorder %s29, 1
      %s535 = scalar_select %p534, %s29, 1
      %s536 = scalar_lea.vmem %s6, %s535
      %p537 = pneg %p208
      %p538 = pneg %p205
      %p539 = scmp.lt.s32.totalorder %s29, 1
      %s540 = scalar_select %p539, %s29, 1
      %s541 = scalar_lea.vmem %s7, %s540
      %p542 = pneg %p234
      %p543 = pneg %p231
      %p544 = scmp.lt.s32.totalorder %s29, 1
      %s545 = scalar_select %p544, %s29, 1
      %s546 = scalar_lea.vmem %s8, %s545
      %p547 = pneg %p260
      %p548 = pneg %p257
      %p549 = scmp.lt.s32.totalorder %s29, 1
      %s550 = scalar_select %p549, %s29, 1
      %s551 = smul.addr %s550, 4
      %s552 = smul.addr %s551, 4
      %s553 = scalar_lea.vmem %s9, %s552
      %p554 = pneg %p286
      %p555 = pneg %p283
      %p556 = scmp.lt.s32.totalorder %s29, 1
      %s557 = scalar_select %p556, %s29, 1
      %s558 = scalar_lea.vmem %s10, %s557
      %p559 = pneg %p312
      %p560 = pneg %p309
      %p561 = scmp.lt.s32.totalorder %s29, 1
      %s562 = scalar_select %p561, %s29, 1
      %s563 = smul.addr %s562, 8
      %s564 = smul.addr %s563, 4
      %s565 = scalar_lea.vmem %s11, %s564
      %p566 = pneg %p338
      %p567 = pneg %p335
      %p568 = scmp.lt.s32.totalorder %s29, 1
      %s569 = scalar_select %p568, %s29, 1
      %s570 = scalar_lea.vmem %s12, %s569
      %p571 = pneg %p364
      %p572 = pneg %p361
      %p573 = pneg %p390
      %p574 = pneg %p387
      %p575 = scmp.lt.s32.totalorder %s28, 1
      %s576 = scalar_select %p575, %s28, 1
      %s577 = smul.addr %s576, 3
      %s578 = smul.addr %s577, 8
      %s579 = scalar_lea.vmem %s13, %s578
      %p580 = scmp.lt.s32.totalorder %s28, 1
      %s581 = scalar_select %p580, %s28, 1
      %s582 = smul.addr %s581, 3
      %s583 = smul.addr %s582, 8
      %s584 = scalar_lea.vmem %s0, %s583
      %p585 = scmp.lt.s32.totalorder %s29, 1
      %s586 = scalar_select %p585, %s29, 1
      %s587 = scalar_lea.vmem %s2, %s586
      %p588 = scmp.lt.s32.totalorder %s29, 1
      %s589 = scalar_select %p588, %s29, 1
      %s590 = scalar_lea.vmem %s3, %s589
      %p591 = scmp.lt.s32.totalorder %s29, 1
      %s592 = scalar_select %p591, %s29, 1
      %s593 = smul.addr %s592, 4
      %s594 = smul.addr %s593, 4
      %s595 = scalar_lea.vmem %s4, %s594
      %p596 = scmp.lt.s32.totalorder %s29, 1
      %s597 = scalar_select %p596, %s29, 1
      %s598 = smul.addr %s597, 4
      %s599 = smul.addr %s598, 4
      %s600 = scalar_lea.vmem %s5, %s599
      %p601 = scmp.lt.s32.totalorder %s29, 1
      %s602 = scalar_select %p601, %s29, 1
      %s603 = scalar_lea.vmem %s6, %s602
      %p604 = scmp.lt.s32.totalorder %s29, 1
      %s605 = scalar_select %p604, %s29, 1
      %s606 = scalar_lea.vmem %s7, %s605
      %p607 = scmp.lt.s32.totalorder %s29, 1
      %s608 = scalar_select %p607, %s29, 1
      %s609 = scalar_lea.vmem %s8, %s608
      %p610 = scmp.lt.s32.totalorder %s29, 1
      %s611 = scalar_select %p610, %s29, 1
      %s612 = smul.addr %s611, 4
      %s613 = smul.addr %s612, 4
      %s614 = scalar_lea.vmem %s9, %s613
      %p615 = scmp.lt.s32.totalorder %s29, 1
      %s616 = scalar_select %p615, %s29, 1
      %s617 = scalar_lea.vmem %s10, %s616
      %p618 = scmp.lt.s32.totalorder %s29, 1
      %s619 = scalar_select %p618, %s29, 1
      %s620 = smul.addr %s619, 8
      %s621 = smul.addr %s620, 4
      %s622 = scalar_lea.vmem %s11, %s621
      %p623 = scmp.lt.s32.totalorder %s29, 1
      %s624 = scalar_select %p623, %s29, 1
      %s625 = scalar_lea.vmem %s12, %s624
      %p626 = scmp.lt.s32.totalorder %s28, 1
      %s627 = scalar_select %p626, %s28, 1
      %s628 = smul.addr %s627, 3
      %s629 = smul.addr %s628, 8
      %s630 = scalar_lea.vmem %s13, %s629
      %p632 = scmp.eq.s32.totalorder %s29, 0
      // Predicated region
      $region73: #{_lambda_.4} parent=71 // pred_check
        %p633 = pneg %p632
      $region74: #{_lambda_.4} parent=71 // pred_check_branch
        %635 = sbr.rel (%p633) target = $region76
      $region75: #{_lambda_.4} parent=71 // pred_region
        %v636 = vld [vmem:[%s584] sm:$0xff]
        %v637 = vld [vmem:[%s584 + $0x8] sm:$0xff]
        %v638 = vld [vmem:[%s584 + $0x10] sm:$0xff]
        %v639 = vld [vmem:[%s1] sm:$0xff]
        %v640 = vld [vmem:[%s1 + $0x8] sm:$0xff]
        %v641 = vld [vmem:[%s1 + $0x10] sm:$0xff]
        %v642 = vadd.f32 %v636, %v639
        %v643 = vadd.f32 %v637, %v640
        %v644 = vadd.f32 %v638, %v641
        %vm645 = vcmask 261120
        %646 = vst.msk [vmem:[#allocation2] sm:$0xff] %vm645, %v642
        %647 = vst.msk [vmem:[#allocation2 + $0x8] sm:$0xff] %vm645, %v643
        %648 = vst.msk [vmem:[#allocation2 + $0x10] sm:$0xff] %vm645, %v644
      $region76: #{_lambda_.4} parent=71 // pred_fallthru
        _
      %v649 = vld [vmem:[#allocation2] sm:$0xff]
      %v650 = vld [vmem:[#allocation2 + $0x8] sm:$0xff]
      %v651 = vld [vmem:[#allocation2 + $0x10] sm:$0xff]
      %v652 = vld [vmem:[%s587] sm:$0x1]
      %v653 = vld [vmem:[%s590] sm:$0x1]
      %vm654 = vcmask 261120
      %v655 = vsel %vm654, %v649, 0.0
      %656 = vadd.xlane.f32.xlu0 %v655
      %v657 = vpop.xlane.xlu0 %656
      %v658 = vsel %vm654, %v650, 0.0
      %659 = vadd.xlane.f32.xlu0 %v658
      %v660 = vpop.xlane.xlu0 %659
      %v661 = vsel %vm654, %v651, 0.0
      %662 = vadd.xlane.f32.xlu0 %v661
      %v663 = vpop.xlane.xlu0 %662
      %v664 = vrcp.pop 32.0
      %v665 = vmul.f32 %v657, %v664
      %v666 = vmul.f32 %v660, %v664
      %v667 = vmul.f32 %v663, %v664
      %v668 = vsub.f32 %v649, %v665
      %v669 = vsub.f32 %v650, %v666
      %v670 = vsub.f32 %v651, %v667
      %v671 = vmul.f32 %v668, %v668
      %v672 = vmul.f32 %v669, %v669
      %v673 = vmul.f32 %v670, %v670
      %v674 = vsel %vm654, %v671, 0.0
      %675 = vadd.xlane.f32.xlu0 %v674
      %v676 = vpop.xlane.xlu0 %675
      %v677 = vsel %vm654, %v672, 0.0
      %678 = vadd.xlane.f32.xlu0 %v677
      %v679 = vpop.xlane.xlu0 %678
      %v680 = vsel %vm654, %v673, 0.0
      %681 = vadd.xlane.f32.xlu0 %v680
      %v682 = vpop.xlane.xlu0 %681
      %v683 = vmul.f32 %v676, %v664
      %v684 = vmul.f32 %v679, %v664
      %v685 = vmul.f32 %v682, %v664
      %v686 = vadd.f32 %v683, 1e-05
      %v687 = vadd.f32 %v684, 1e-05
      %v688 = vadd.f32 %v685, 1e-05
      %v689 = vrsqrt.pop %v686
      %v690 = vrsqrt.pop %v687
      %v691 = vrsqrt.pop %v688
      %v692 = vmul.f32 %v668, %v689
      %v693 = vmul.f32 %v669, %v690
      %v694 = vmul.f32 %v670, %v691
      %v696 = vlaneseq
      %v697 = vshrl.u32 %v696, 7
      %v698 = vsub.s32 0, %v697
      %v699 = vrot.slane %v652, %v698
      %v701 = vmul.f32 %v692, %v699
      %v702 = vmul.f32 %v693, %v699
      %v703 = vmul.f32 %v694, %v699
      %v705 = vlaneseq
      %v706 = vshrl.u32 %v705, 7
      %v707 = vsub.s32 0, %v706
      %v708 = vrot.slane %v653, %v707
      %v710 = vadd.f32 %v701, %v708
      %v711 = vadd.f32 %v702, %v708
      %v712 = vadd.f32 %v703, %v708
      %v713 = vld [vmem:[%s595] sm:$0xf]
      %v714 = vld [vmem:[%s595 + $0x4] sm:$0xf]
      %v715 = vld [vmem:[%s595 + $0x8] sm:$0xf]
      %v716 = vld [vmem:[%s595 + $0xc] sm:$0xf]
      %v717 = vpack.c.bf16 %v711, %v710
      %v718 = vpack.c.bf16 %v712, %v712
      %v723 = vunpack.c.l.b16 %v713
      %v724 = vunpack.c.l.b16 %v714
      %v725 = vunpack.c.l.b16 %v715
      %v726 = vunpack.c.l.b16 %v716
      %v727 = vpack.c.b16 %v724, %v723
      %v728 = vpack.c.b16 %v726, %v725
      %v732 = vsel %vm654, %v717, 0
      %v735 = vsel %vm654, %v718, 0
      %737 = vmatprep.subr.bf16.mxu0 0
      %738 = vmatpush1.bf16.msra.mxu0 %v727
      %739 = vmatprep.subr.bf16.mxu0 0
      %740 = vmatpush1.bf16.msra.mxu0 %v728
      %741 = vmatprep.subr.bf16.mxu0 0
      %742 = vmatpush1.bf16.msra.mxu0 0
      %743 = vmatprep.subr.bf16.mxu0 0
      %744 = vmatpush1.bf16.msra.mxu0 0
      %745 = vmatprep.subr.bf16.mxu0 0
      %746 = vmatpush1.bf16.msra.mxu0 0
      %747 = vmatprep.subr.bf16.mxu0 0
      %748 = vmatpush1.bf16.msra.mxu0 0
      %749 = vmatprep.subr.bf16.mxu0 0
      %750 = vmatpush1.bf16.msra.mxu0 0
      %751 = vmatprep.subr.bf16.mxu0 0
      %752 = vmatpush1.bf16.msra.mxu0 0
      %753 = vmatprep.subr.bf16.mxu0 0
      %754 = vmatpush1.bf16.msra.mxu0 0
      %755 = vmatprep.subr.bf16.mxu0 0
      %756 = vmatpush1.bf16.msra.mxu0 0
      %757 = vmatprep.subr.bf16.mxu0 0
      %758 = vmatpush1.bf16.msra.mxu0 0
      %759 = vmatprep.subr.bf16.mxu0 0
      %760 = vmatpush1.bf16.msra.mxu0 0
      %761 = vmatprep.subr.bf16.mxu0 0
      %762 = vmatpush1.bf16.msra.mxu0 0
      %763 = vmatprep.subr.bf16.mxu0 0
      %764 = vmatpush1.bf16.msra.mxu0 0
      %765 = vmatprep.subr.bf16.mxu0 0
      %766 = vmatpush1.bf16.msra.mxu0 0
      %767 = vmatprep.subr.bf16.mxu0 0
      %768 = vmatpush1.bf16.msra.mxu0 0
      %769 = vmatprep.mubr.bf16.mxu0 0
      %770 = vmatmul.mubr.bf16.gmra.mrb[0].mxu0 %v732
      %v771 = vpop.f32.mrb[0].mxu0
      %v772 = vadd.f32 0.0, %v771
      %v773 = vpop.f32.mrb[0].mxu0
      %v774 = vpop.f32.mrb[0].mxu0
      %v775 = vadd.f32 0.0, %v774
      %v776 = vpop.f32.mrb[0].mxu0
      %777 = vmatprep.mubr.bf16.mxu0 0
      %778 = vmatmul.mubr.bf16.gmra.mrb[0].mxu0 %v735
      %v779 = vpop.f32.mrb[0].mxu0
      %v780 = vadd.f32 0.0, %v779
      %v781 = vpop.f32.mrb[0].mxu0
      %v782 = vpop.f32.mrb[0].mxu0
      %v783 = vpop.f32.mrb[0].mxu0
      %784 = vdwg.mxu0
      %v785 = vlaneseq
      %v786 = vand.u32 %v785, 127
      %vm787 = vcmp.lt.s32.totalorder %v786, 17
      %v788 = vsel %vm787, 0.0, -1e+30
      %v789 = vpack.c.bf16 %v775, %v772
      %v790 = vpack.c.bf16 %v780, %v780
      %793 = vrot.lane.b32.xlu0 %v789, 96
      %v794 = vpop.permute.xlu0 %793
      %795 = vrot.lane.b32.xlu0 %v790, 96
      %v796 = vpop.permute.xlu0 %795
      %vm797 = vcmask 64512
      %v799 = vsel %vm797, %v789, 0
      %v802 = vsel %vm797, %v790, 0
      %v805 = vsel %vm797, %v794, 0
      %v808 = vsel %vm797, %v796, 0
      %810 = vmatprep.subr.bf16.mxu0 0
      %811 = vmatpush1.bf16.xpose.msra.mxu0 %v805
      %812 = vmatprep.subr.bf16.mxu0 0
      %813 = vmatpush1.bf16.xpose.msra.mxu0 %v808
      %814 = vmatprep.subr.bf16.mxu0 0
      %815 = vmatpush1.bf16.xpose.msra.mxu0 0
      %816 = vmatprep.subr.bf16.mxu0 0
      %817 = vmatpush1.bf16.xpose.msra.mxu0 0
      %818 = vmatprep.subr.bf16.mxu0 0
      %819 = vmatpush1.bf16.xpose.msra.mxu0 0
      %820 = vmatprep.subr.bf16.mxu0 0
      %821 = vmatpush1.bf16.xpose.msra.mxu0 0
      %822 = vmatprep.subr.bf16.mxu0 0
      %823 = vmatpush1.bf16.xpose.msra.mxu0 0
      %824 = vmatprep.subr.bf16.mxu0 0
      %825 = vmatpush1.bf16.xpose.msra.mxu0 0
      %826 = vmatprep.subr.bf16.mxu0 0
      %827 = vmatpush1.bf16.xpose.msra.mxu0 0
      %828 = vmatprep.subr.bf16.mxu0 0
      %829 = vmatpush1.bf16.xpose.msra.mxu0 0
      %830 = vmatprep.subr.bf16.mxu0 0
      %831 = vmatpush1.bf16.xpose.msra.mxu0 0
      %832 = vmatprep.subr.bf16.mxu0 0
      %833 = vmatpush1.bf16.xpose.msra.mxu0 0
      %834 = vmatprep.subr.bf16.mxu0 0
      %835 = vmatpush1.bf16.xpose.msra.mxu0 0
      %836 = vmatprep.subr.bf16.mxu0 0
      %837 = vmatpush1.bf16.xpose.msra.mxu0 0
      %838 = vmatprep.subr.bf16.mxu0 0
      %839 = vmatpush1.bf16.xpose.msra.mxu0 0
      %840 = vmatprep.subr.bf16.mxu0 0
      %841 = vmatpush1.bf16.xpose.msra.mxu0 0
      %842 = vmatprep.mubr.bf16.mxu0 0
      %843 = vmatmul.mubr.bf16.gmra.mrb[0].mxu0 %v799
      %v844 = vpop.f32.mrb[0].mxu0
      %v845 = vadd.f32 0.0, %v844
      %v846 = vpop.f32.mrb[0].mxu0
      %v847 = vpop.f32.mrb[0].mxu0
      %v848 = vadd.f32 0.0, %v847
      %v849 = vpop.f32.mrb[0].mxu0
      %850 = vmatprep.mubr.bf16.mxu0 0
      %851 = vmatmul.mubr.bf16.gmra.mrb[0].mxu0 %v802
      %v852 = vpop.f32.mrb[0].mxu0
      %v853 = vadd.f32 0.0, %v852
      %v854 = vpop.f32.mrb[0].mxu0
      %v855 = vpop.f32.mrb[0].mxu0
      %v856 = vpop.f32.mrb[0].mxu0
      %857 = vdwg.mxu0
      %v858 = vmul.f32 %v845, 0.35355338
      %v859 = vmul.f32 %v848, 0.35355338
      %v860 = vmul.f32 %v853, 0.35355338
      %v861 = vadd.f32 %v858, %v788
      %v862 = vadd.f32 %v859, %v788
      %v863 = vadd.f32 %v860, %v788
      %vm864 = vcmask 195584
      %v865 = vsel %vm864, %v861, -inf
      %866 = vmax.xlane.f32.xlu0 %v865
      %v867 = vpop.xlane.xlu0 %866
      %v868 = vsel %vm864, %v862, -inf
      %869 = vmax.xlane.f32.xlu0 %v868
      %v870 = vpop.xlane.xlu0 %869
      %v871 = vsel %vm864, %v863, -inf
      %872 = vmax.xlane.f32.xlu0 %v871
      %v873 = vpop.xlane.xlu0 %872
      %v874 = vsub.f32 %v861, %v867
      %v875 = vsub.f32 %v862, %v870
      %v876 = vsub.f32 %v863, %v873
      %v877 = vmul.f32 %v874, 1.442695
      %v878 = vpow.pop %v877
      %v879 = vmul.f32 %v875, 1.442695
      %v880 = vpow.pop %v879
      %v881 = vmul.f32 %v876, 1.442695
      %v882 = vpow.pop %v881
      %v883 = vsel %vm864, %v878, 0.0
      %884 = vadd.xlane.f32.xlu0 %v883
      %v885 = vpop.xlane.xlu0 %884
      %v886 = vsel %vm864, %v880, 0.0
      %887 = vadd.xlane.f32.xlu0 %v886
      %v888 = vpop.xlane.xlu0 %887
      %v889 = vsel %vm864, %v882, 0.0
      %890 = vadd.xlane.f32.xlu0 %v889
      %v891 = vpop.xlane.xlu0 %890
      %v892 = vrcp.pop %v885
      %v893 = vrcp.pop %v888
      %v894 = vrcp.pop %v891
      %v895 = vmul.f32 %v878, %v892
      %v896 = vmul.f32 %v880, %v893
      %v897 = vmul.f32 %v882, %v894
      %v898 = vpack.c.bf16 %v896, %v895
      %v899 = vpack.c.bf16 %v897, %v897
      %900 = vrot.lane.b32.xlu0 %v789, 64
      %v901 = vpop.permute.xlu0 %900
      %902 = vrot.lane.b32.xlu0 %v790, 64
      %v903 = vpop.permute.xlu0 %902
      %v906 = vsel %vm864, %v898, 0
      %v909 = vsel %vm864, %v899, 0
      %vm911 = vcmask 1043456
      %v913 = vsel %vm911, %v903, 0
      %915 = vmatprep.subr.bf16.mxu0 0
      %916 = vmatpush1.bf16.msra.mxu0 %v901
      %917 = vmatprep.subr.bf16.mxu0 0
      %918 = vmatpush1.bf16.msra.mxu0 %v913
      %919 = vmatprep.subr.bf16.mxu0 0
      %920 = vmatpush1.bf16.msra.mxu0 0
      %921 = vmatprep.subr.bf16.mxu0 0
      %922 = vmatpush1.bf16.msra.mxu0 0
      %923 = vmatprep.subr.bf16.mxu0 0
      %924 = vmatpush1.bf16.msra.mxu0 0
      %925 = vmatprep.subr.bf16.mxu0 0
      %926 = vmatpush1.bf16.msra.mxu0 0
      %927 = vmatprep.subr.bf16.mxu0 0
      %928 = vmatpush1.bf16.msra.mxu0 0
      %929 = vmatprep.subr.bf16.mxu0 0
      %930 = vmatpush1.bf16.msra.mxu0 0
      %931 = vmatprep.subr.bf16.mxu0 0
      %932 = vmatpush1.bf16.msra.mxu0 0
      %933 = vmatprep.subr.bf16.mxu0 0
      %934 = vmatpush1.bf16.msra.mxu0 0
      %935 = vmatprep.subr.bf16.mxu0 0
      %936 = vmatpush1.bf16.msra.mxu0 0
      %937 = vmatprep.subr.bf16.mxu0 0
      %938 = vmatpush1.bf16.msra.mxu0 0
      %939 = vmatprep.subr.bf16.mxu0 0
      %940 = vmatpush1.bf16.msra.mxu0 0
      %941 = vmatprep.subr.bf16.mxu0 0
      %942 = vmatpush1.bf16.msra.mxu0 0
      %943 = vmatprep.subr.bf16.mxu0 0
      %944 = vmatpush1.bf16.msra.mxu0 0
      %945 = vmatprep.subr.bf16.mxu0 0
      %946 = vmatpush1.bf16.msra.mxu0 0
      %947 = vmatprep.mubr.bf16.mxu0 0
      %948 = vmatmul.mubr.bf16.gmra.mrb[0].mxu0 %v906
      %v949 = vpop.f32.mrb[0].mxu0
      %v950 = vadd.f32 0.0, %v949
      %v951 = vpop.f32.mrb[0].mxu0
      %v952 = vpop.f32.mrb[0].mxu0
      %v953 = vadd.f32 0.0, %v952
      %v954 = vpop.f32.mrb[0].mxu0
      %955 = vmatprep.mubr.bf16.mxu0 0
      %956 = vmatmul.mubr.bf16.gmra.mrb[0].mxu0 %v909
      %v957 = vpop.f32.mrb[0].mxu0
      %v958 = vadd.f32 0.0, %v957
      %v959 = vpop.f32.mrb[0].mxu0
      %v960 = vpop.f32.mrb[0].mxu0
      %v961 = vpop.f32.mrb[0].mxu0
      %962 = vdwg.mxu0
      %963 = vst.msk [vmem:[#allocation3] sm:$0xff] %vm797, %v950
      %964 = vst.msk [vmem:[#allocation3 + $0x8] sm:$0xff] %vm797, %v953
      %965 = vst.msk [vmem:[#allocation3 + $0x10] sm:$0xff] %vm797, %v958
      %966 = vrot.lane.b32.xlu0 %v789, 120
      %v967 = vpop.permute.xlu0 %966
      %968 = vrot.lane.b32.xlu0 %v790, 120
      %v969 = vpop.permute.xlu0 %968
      %970 = vrot.lane.b32.xlu0 %v789, 88
      %v971 = vpop.permute.xlu0 %970
      %972 = vrot.lane.b32.xlu0 %v790, 88
      %v973 = vpop.permute.xlu0 %972
      %v975 = vsel %vm797, %v967, 0
      %v978 = vsel %vm797, %v969, 0
      %v981 = vsel %vm797, %v971, 0
      %v984 = vsel %vm797, %v973, 0
      %986 = vmatprep.subr.bf16.mxu0 0
      %987 = vmatpush1.bf16.xpose.msra.mxu0 %v981
      %988 = vmatprep.subr.bf16.mxu0 0
      %989 = vmatpush1.bf16.xpose.msra.mxu0 %v984
      %990 = vmatprep.subr.bf16.mxu0 0
      %991 = vmatpush1.bf16.xpose.msra.mxu0 0
      %992 = vmatprep.subr.bf16.mxu0 0
      %993 = vmatpush1.bf16.xpose.msra.mxu0 0
      %994 = vmatprep.subr.bf16.mxu0 0
      %995 = vmatpush1.bf16.xpose.msra.mxu0 0
      %996 = vmatprep.subr.bf16.mxu0 0
      %997 = vmatpush1.bf16.xpose.msra.mxu0 0
      %998 = vmatprep.subr.bf16.mxu0 0
      %999 = vmatpush1.bf16.xpose.msra.mxu0 0
      %1000 = vmatprep.subr.bf16.mxu0 0
      %1001 = vmatpush1.bf16.xpose.msra.mxu0 0
      %1002 = vmatprep.subr.bf16.mxu0 0
      %1003 = vmatpush1.bf16.xpose.msra.mxu0 0
      %1004 = vmatprep.subr.bf16.mxu0 0
      %1005 = vmatpush1.bf16.xpose.msra.mxu0 0
      %1006 = vmatprep.subr.bf16.mxu0 0
      %1007 = vmatpush1.bf16.xpose.msra.mxu0 0
      %1008 = vmatprep.subr.bf16.mxu0 0
      %1009 = vmatpush1.bf16.xpose.msra.mxu0 0
      %1010 = vmatprep.subr.bf16.mxu0 0
      %1011 = vmatpush1.bf16.xpose.msra.mxu0 0
      %1012 = vmatprep.subr.bf16.mxu0 0
      %1013 = vmatpush1.bf16.xpose.msra.mxu0 0
      %1014 = vmatprep.subr.bf16.mxu0 0
      %1015 = vmatpush1.bf16.xpose.msra.mxu0 0
      %1016 = vmatprep.subr.bf16.mxu0 0
      %1017 = vmatpush1.bf16.xpose.msra.mxu0 0
      %1018 = vmatprep.mubr.bf16.mxu0 0
      %1019 = vmatmul.mubr.bf16.gmra.mrb[0].mxu0 %v975
      %v1020 = vpop.f32.mrb[0].mxu0
      %v1021 = vadd.f32 0.0, %v1020
      %v1022 = vpop.f32.mrb[0].mxu0
      %v1023 = vpop.f32.mrb[0].mxu0
      %v1024 = vadd.f32 0.0, %v1023
      %v1025 = vpop.f32.mrb[0].mxu0
      %1026 = vmatprep.mubr.bf16.mxu0 0
      %1027 = vmatmul.mubr.bf16.gmra.mrb[0].mxu0 %v978
      %v1028 = vpop.f32.mrb[0].mxu0
      %v1029 = vadd.f32 0.0, %v1028
      %v1030 = vpop.f32.mrb[0].mxu0
      %v1031 = vpop.f32.mrb[0].mxu0
      %v1032 = vpop.f32.mrb[0].mxu0
      %1033 = vdwg.mxu0
      %v1034 = vmul.f32 %v1021, 0.35355338
      %v1035 = vmul.f32 %v1024, 0.35355338
      %v1036 = vmul.f32 %v1029, 0.35355338
      %v1037 = vadd.f32 %v1034, %v788
      %v1038 = vadd.f32 %v1035, %v788
      %v1039 = vadd.f32 %v1036, %v788
      %v1040 = vsel %vm864, %v1037, -inf
      %1041 = vmax.xlane.f32.xlu0 %v1040
      %v1042 = vpop.xlane.xlu0 %1041
      %v1043 = vsel %vm864, %v1038, -inf
      %1044 = vmax.xlane.f32.xlu0 %v1043
      %v1045 = vpop.xlane.xlu0 %1044
      %v1046 = vsel %vm864, %v1039, -inf
      %1047 = vmax.xlane.f32.xlu0 %v1046
      %v1048 = vpop.xlane.xlu0 %1047
      %v1049 = vsub.f32 %v1037, %v1042
      %v1050 = vsub.f32 %v1038, %v1045
      %v1051 = vsub.f32 %v1039, %v1048
      %v1052 = vmul.f32 %v1049, 1.442695
      %v1053 = vpow.pop %v1052
      %v1054 = vmul.f32 %v1050, 1.442695
      %v1055 = vpow.pop %v1054
      %v1056 = vmul.f32 %v1051, 1.442695
      %v1057 = vpow.pop %v1056
      %v1058 = vsel %vm864, %v1053, 0.0
      %1059 = vadd.xlane.f32.xlu0 %v1058
      %v1060 = vpop.xlane.xlu0 %1059
      %v1061 = vsel %vm864, %v1055, 0.0
      %1062 = vadd.xlane.f32.xlu0 %v1061
      %v1063 = vpop.xlane.xlu0 %1062
      %v1064 = vsel %vm864, %v1057, 0.0
      %1065 = vadd.xlane.f32.xlu0 %v1064
      %v1066 = vpop.xlane.xlu0 %1065
      %v1067 = vrcp.pop %v1060
      %v1068 = vrcp.pop %v1063
      %v1069 = vrcp.pop %v1066
      %v1070 = vmul.f32 %v1053, %v1067
      %v1071 = vmul.f32 %v1055, %v1068
      %v1072 = vmul.f32 %v1057, %v1069
      %v1073 = vpack.c.bf16 %v1071, %v1070
      %v1074 = vpack.c.bf16 %v1072, %v1072
      %1075 = vrot.lane.b32.xlu0 %v789, 56
      %v1076 = vpop.permute.xlu0 %1075
      %1077 = vrot.lane.b32.xlu0 %v790, 56
      %v1078 = vpop.permute.xlu0 %1077
      %v1081 = vsel %vm864, %v1073, 0
      %v1084 = vsel %vm864, %v1074, 0
      %v1087 = vsel %vm911, %v1078, 0
      %1089 = vmatprep.subr.bf16.mxu0 0
      %1090 = vmatpush1.bf16.msra.mxu0 %v1076
      %1091 = vmatprep.subr.bf16.mxu0 0
      %1092 = vmatpush1.bf16.msra.mxu0 %v1087
      %1093 = vmatprep.subr.bf16.mxu0 0
      %1094 = vmatpush1.bf16.msra.mxu0 0
      %1095 = vmatprep.subr.bf16.mxu0 0
      %1096 = vmatpush1.bf16.msra.mxu0 0
      %1097 = vmatprep.subr.bf16.mxu0 0
      %1098 = vmatpush1.bf16.msra.mxu0 0
      %1099 = vmatprep.subr.bf16.mxu0 0
      %1100 = vmatpush1.bf16.msra.mxu0 0
      %1101 = vmatprep.subr.bf16.mxu0 0
      %1102 = vmatpush1.bf16.msra.mxu0 0
      %1103 = vmatprep.subr.bf16.mxu0 0
      %1104 = vmatpush1.bf16.msra.mxu0 0
      %1105 = vmatprep.subr.bf16.mxu0 0
      %1106 = vmatpush1.bf16.msra.mxu0 0
      %1107 = vmatprep.subr.bf16.mxu0 0
      %1108 = vmatpush1.bf16.msra.mxu0 0
      %1109 = vmatprep.subr.bf16.mxu0 0
      %1110 = vmatpush1.bf16.msra.mxu0 0
      %1111 = vmatprep.subr.bf16.mxu0 0
      %1112 = vmatpush1.bf16.msra.mxu0 0
      %1113 = vmatprep.subr.bf16.mxu0 0
      %1114 = vmatpush1.bf16.msra.mxu0 0
      %1115 = vmatprep.subr.bf16.mxu0 0
      %1116 = vmatpush1.bf16.msra.mxu0 0
      %1117 = vmatprep.subr.bf16.mxu0 0
      %1118 = vmatpush1.bf16.msra.mxu0 0
      %1119 = vmatprep.subr.bf16.mxu0 0
      %1120 = vmatpush1.bf16.msra.mxu0 0
      %1121 = vmatprep.mubr.bf16.mxu0 0
      %1122 = vmatmul.mubr.bf16.gmra.mrb[0].mxu0 %v1081
      %v1123 = vpop.f32.mrb[0].mxu0
      %v1124 = vadd.f32 0.0, %v1123
      %v1125 = vpop.f32.mrb[0].mxu0
      %v1126 = vpop.f32.mrb[0].mxu0
      %v1127 = vadd.f32 0.0, %v1126
      %v1128 = vpop.f32.mrb[0].mxu0
      %1129 = vmatprep.mubr.bf16.mxu0 0
      %1130 = vmatmul.mubr.bf16.gmra.mrb[0].mxu0 %v1084
      %v1131 = vpop.f32.mrb[0].mxu0
      %v1132 = vadd.f32 0.0, %v1131
      %v1133 = vpop.f32.mrb[0].mxu0
      %v1134 = vpop.f32.mrb[0].mxu0
      %v1135 = vpop.f32.mrb[0].mxu0
      %1136 = vdwg.mxu0
      %1140 = vrot.lane.b32.xlu0 %v1124, 8
      %v1141 = vpop.permute.xlu0 %1140
      %1142 = vrot.lane.b32.xlu0 %v1127, 8
      %v1143 = vpop.permute.xlu0 %1142
      %1144 = vrot.lane.b32.xlu0 %v1132, 8
      %v1145 = vpop.permute.xlu0 %1144
      %vm1149 = vcmask 130112
      %1150 = vst.msk [vmem:[#allocation3] sm:$0xff] %vm1149, %v1141
      %1151 = vst.msk [vmem:[#allocation3 + $0x8] sm:$0xff] %vm1149, %v1143
      %1152 = vst.msk [vmem:[#allocation3 + $0x10] sm:$0xff] %vm1149, %v1145
      %1153 = vrot.lane.b32.xlu0 %v789, 112
      %v1154 = vpop.permute.xlu0 %1153
      %1155 = vrot.lane.b32.xlu0 %v790, 112
      %v1156 = vpop.permute.xlu0 %1155
      %1157 = vrot.lane.b32.xlu0 %v789, 80
      %v1158 = vpop.permute.xlu0 %1157
      %1159 = vrot.lane.b32.xlu0 %v790, 80
      %v1160 = vpop.permute.xlu0 %1159
      %v1162 = vsel %vm797, %v1154, 0
      %v1165 = vsel %vm797, %v1156, 0
      %v1168 = vsel %vm797, %v1158, 0
      %v1171 = vsel %vm797, %v1160, 0
      %1173 = vmatprep.subr.bf16.mxu0 0
      %1174 = vmatpush1.bf16.xpose.msra.mxu0 %v1168
      %1175 = vmatprep.subr.bf16.mxu0 0
      %1176 = vmatpush1.bf16.xpose.msra.mxu0 %v1171
      %1177 = vmatprep.subr.bf16.mxu0 0
      %1178 = vmatpush1.bf16.xpose.msra.mxu0 0
      %1179 = vmatprep.subr.bf16.mxu0 0
      %1180 = vmatpush1.bf16.xpose.msra.mxu0 0
      %1181 = vmatprep.subr.bf16.mxu0 0
      %1182 = vmatpush1.bf16.xpose.msra.mxu0 0
      %1183 = vmatprep.subr.bf16.mxu0 0
      %1184 = vmatpush1.bf16.xpose.msra.mxu0 0
      %1185 = vmatprep.subr.bf16.mxu0 0
      %1186 = vmatpush1.bf16.xpose.msra.mxu0 0
      %1187 = vmatprep.subr.bf16.mxu0 0
      %1188 = vmatpush1.bf16.xpose.msra.mxu0 0
      %1189 = vmatprep.subr.bf16.mxu0 0
      %1190 = vmatpush1.bf16.xpose.msra.mxu0 0
      %1191 = vmatprep.subr.bf16.mxu0 0
      %1192 = vmatpush1.bf16.xpose.msra.mxu0 0
      %1193 = vmatprep.subr.bf16.mxu0 0
      %1194 = vmatpush1.bf16.xpose.msra.mxu0 0
      %1195 = vmatprep.subr.bf16.mxu0 0
      %1196 = vmatpush1.bf16.xpose.msra.mxu0 0
      %1197 = vmatprep.subr.bf16.mxu0 0
      %1198 = vmatpush1.bf16.xpose.msra.mxu0 0
      %1199 = vmatprep.subr.bf16.mxu0 0
      %1200 = vmatpush1.bf16.xpose.msra.mxu0 0
      %1201 = vmatprep.subr.bf16.mxu0 0
      %1202 = vmatpush1.bf16.xpose.msra.mxu0 0
      %1203 = vmatprep.subr.bf16.mxu0 0
      %1204 = vmatpush1.bf16.xpose.msra.mxu0 0
      %1205 = vmatprep.mubr.bf16.mxu0 0
      %1206 = vmatmul.mubr.bf16.gmra.mrb[0].mxu0 %v1162
      %v1207 = vpop.f32.mrb[0].mxu0
      %v1208 = vadd.f32 0.0, %v1207
      %v1209 = vpop.f32.mrb[0].mxu0
      %v1210 = vpop.f32.mrb[0].mxu0
      %v1211 = vadd.f32 0.0, %v1210
      %v1212 = vpop.f32.mrb[0].mxu0
      %1213 = vmatprep.mubr.bf16.mxu0 0
      %1214 = vmatmul.mubr.bf16.gmra.mrb[0].mxu0 %v1165
      %v1215 = vpop.f32.mrb[0].mxu0
      %v1216 = vadd.f32 0.0, %v1215
      %v1217 = vpop.f32.mrb[0].mxu0
      %v1218 = vpop.f32.mrb[0].mxu0
      %v1219 = vpop.f32.mrb[0].mxu0
      %1220 = vdwg.mxu0
      %v1221 = vmul.f32 %v1208, 0.35355338
      %v1222 = vmul.f32 %v1211, 0.35355338
      %v1223 = vmul.f32 %v1216, 0.35355338
      %v1224 = vadd.f32 %v1221, %v788
      %v1225 = vadd.f32 %v1222, %v788
      %v1226 = vadd.f32 %v1223, %v788
      %v1227 = vsel %vm864, %v1224, -inf
      %1228 = vmax.xlane.f32.xlu0 %v1227
      %v1229 = vpop.xlane.xlu0 %1228
      %v1230 = vsel %vm864, %v1225, -inf
      %1231 = vmax.xlane.f32.xlu0 %v1230
      %v1232 = vpop.xlane.xlu0 %1231
      %v1233 = vsel %vm864, %v1226, -inf
      %1234 = vmax.xlane.f32.xlu0 %v1233
      %v1235 = vpop.xlane.xlu0 %1234
      %v1236 = vsub.f32 %v1224, %v1229
      %v1237 = vsub.f32 %v1225, %v1232
      %v1238 = vsub.f32 %v1226, %v1235
      %v1239 = vmul.f32 %v1236, 1.442695
      %v1240 = vpow.pop %v1239
      %v1241 = vmul.f32 %v1237, 1.442695
      %v1242 = vpow.pop %v1241
      %v1243 = vmul.f32 %v1238, 1.442695
      %v1244 = vpow.pop %v1243
      %v1245 = vsel %vm864, %v1240, 0.0
      %1246 = vadd.xlane.f32.xlu0 %v1245
      %v1247 = vpop.xlane.xlu0 %1246
      %v1248 = vsel %vm864, %v1242, 0.0
      %1249 = vadd.xlane.f32.xlu0 %v1248
      %v1250 = vpop.xlane.xlu0 %1249
      %v1251 = vsel %vm864, %v1244, 0.0
      %1252 = vadd.xlane.f32.xlu0 %v1251
      %v1253 = vpop.xlane.xlu0 %1252
      %v1254 = vrcp.pop %v1247
      %v1255 = vrcp.pop %v1250
      %v1256 = vrcp.pop %v1253
      %v1257 = vmul.f32 %v1240, %v1254
      %v1258 = vmul.f32 %v1242, %v1255
      %v1259 = vmul.f32 %v1244, %v1256
      %v1260 = vpack.c.bf16 %v1258, %v1257
      %v1261 = vpack.c.bf16 %v1259, %v1259
      %1262 = vrot.lane.b32.xlu0 %v789, 48
      %v1263 = vpop.permute.xlu0 %1262
      %1264 = vrot.lane.b32.xlu0 %v790, 48
      %v1265 = vpop.permute.xlu0 %1264
      %v1268 = vsel %vm864, %v1260, 0
      %v1271 = vsel %vm864, %v1261, 0
      %v1274 = vsel %vm911, %v1265, 0
      %1276 = vmatprep.subr.bf16.mxu0 0
      %1277 = vmatpush1.bf16.msra.mxu0 %v1263
      %1278 = vmatprep.subr.bf16.mxu0 0
      %1279 = vmatpush1.bf16.msra.mxu0 %v1274
      %1280 = vmatprep.subr.bf16.mxu0 0
      %1281 = vmatpush1.bf16.msra.mxu0 0
      %1282 = vmatprep.subr.bf16.mxu0 0
      %1283 = vmatpush1.bf16.msra.mxu0 0
      %1284 = vmatprep.subr.bf16.mxu0 0
      %1285 = vmatpush1.bf16.msra.mxu0 0
      %1286 = vmatprep.subr.bf16.mxu0 0
      %1287 = vmatpush1.bf16.msra.mxu0 0
      %1288 = vmatprep.subr.bf16.mxu0 0
      %1289 = vmatpush1.bf16.msra.mxu0 0
      %1290 = vmatprep.subr.bf16.mxu0 0
      %1291 = vmatpush1.bf16.msra.mxu0 0
      %1292 = vmatprep.subr.bf16.mxu0 0
      %1293 = vmatpush1.bf16.msra.mxu0 0
      %1294 = vmatprep.subr.bf16.mxu0 0
      %1295 = vmatpush1.bf16.msra.mxu0 0
      %1296 = vmatprep.subr.bf16.mxu0 0
      %1297 = vmatpush1.bf16.msra.mxu0 0
      %1298 = vmatprep.subr.bf16.mxu0 0
      %1299 = vmatpush1.bf16.msra.mxu0 0
      %1300 = vmatprep.subr.bf16.mxu0 0
      %1301 = vmatpush1.bf16.msra.mxu0 0
      %1302 = vmatprep.subr.bf16.mxu0 0
      %1303 = vmatpush1.bf16.msra.mxu0 0
      %1304 = vmatprep.subr.bf16.mxu0 0
      %1305 = vmatpush1.bf16.msra.mxu0 0
      %1306 = vmatprep.subr.bf16.mxu0 0
      %1307 = vmatpush1.bf16.msra.mxu0 0
      %1308 = vmatprep.mubr.bf16.mxu0 0
      %1309 = vmatmul.mubr.bf16.gmra.mrb[0].mxu0 %v1268
      %v1310 = vpop.f32.mrb[0].mxu0
      %v1311 = vadd.f32 0.0, %v1310
      %v1312 = vpop.f32.mrb[0].mxu0
      %v1313 = vpop.f32.mrb[0].mxu0
      %v1314 = vadd.f32 0.0, %v1313
      %v1315 = vpop.f32.mrb[0].mxu0
      %1316 = vmatprep.mubr.bf16.mxu0 0
      %1317 = vmatmul.mubr.bf16.gmra.mrb[0].mxu0 %v1271
      %v1318 = vpop.f32.mrb[0].mxu0
      %v1319 = vadd.f32 0.0, %v1318
      %v1320 = vpop.f32.mrb[0].mxu0
      %v1321 = vpop.f32.mrb[0].mxu0
      %v1322 = vpop.f32.mrb[0].mxu0
      %1323 = vdwg.mxu0
      %1327 = vrot.lane.b32.xlu0 %v1311, 16
      %v1328 = vpop.permute.xlu0 %1327
      %1329 = vrot.lane.b32.xlu0 %v1314, 16
      %v1330 = vpop.permute.xlu0 %1329
      %1331 = vrot.lane.b32.xlu0 %v1319, 16
      %v1332 = vpop.permute.xlu0 %1331
      %vm1336 = vcmask 195712
      %1337 = vst.msk [vmem:[#allocation3] sm:$0xff] %vm1336, %v1328
      %1338 = vst.msk [vmem:[#allocation3 + $0x8] sm:$0xff] %vm1336, %v1330
      %1339 = vst.msk [vmem:[#allocation3 + $0x10] sm:$0xff] %vm1336, %v1332
      %1340 = vrot.lane.b32.xlu0 %v789, 104
      %v1341 = vpop.permute.xlu0 %1340
      %1342 = vrot.lane.b32.xlu0 %v790, 104
      %v1343 = vpop.permute.xlu0 %1342
      %1344 = vrot.lane.b32.xlu0 %v789, 72
      %v1345 = vpop.permute.xlu0 %1344
      %1346 = vrot.lane.b32.xlu0 %v790, 72
      %v1347 = vpop.permute.xlu0 %1346
      %v1349 = vsel %vm797, %v1341, 0
      %v1352 = vsel %vm797, %v1343, 0
      %v1355 = vsel %vm797, %v1345, 0
      %v1358 = vsel %vm797, %v1347, 0
      %1360 = vmatprep.subr.bf16.mxu0 0
      %1361 = vmatpush1.bf16.xpose.msra.mxu0 %v1355
      %1362 = vmatprep.subr.bf16.mxu0 0
      %1363 = vmatpush1.bf16.xpose.msra.mxu0 %v1358
      %1364 = vmatprep.subr.bf16.mxu0 0
      %1365 = vmatpush1.bf16.xpose.msra.mxu0 0
      %1366 = vmatprep.subr.bf16.mxu0 0
      %1367 = vmatpush1.bf16.xpose.msra.mxu0 0
      %1368 = vmatprep.subr.bf16.mxu0 0
      %1369 = vmatpush1.bf16.xpose.msra.mxu0 0
      %1370 = vmatprep.subr.bf16.mxu0 0
      %1371 = vmatpush1.bf16.xpose.msra.mxu0 0
      %1372 = vmatprep.subr.bf16.mxu0 0
      %1373 = vmatpush1.bf16.xpose.msra.mxu0 0
      %1374 = vmatprep.subr.bf16.mxu0 0
      %1375 = vmatpush1.bf16.xpose.msra.mxu0 0
      %1376 = vmatprep.subr.bf16.mxu0 0
      %1377 = vmatpush1.bf16.xpose.msra.mxu0 0
      %1378 = vmatprep.subr.bf16.mxu0 0
      %1379 = vmatpush1.bf16.xpose.msra.mxu0 0
      %1380 = vmatprep.subr.bf16.mxu0 0
      %1381 = vmatpush1.bf16.xpose.msra.mxu0 0
      %1382 = vmatprep.subr.bf16.mxu0 0
      %1383 = vmatpush1.bf16.xpose.msra.mxu0 0
      %1384 = vmatprep.subr.bf16.mxu0 0
      %1385 = vmatpush1.bf16.xpose.msra.mxu0 0
      %1386 = vmatprep.subr.bf16.mxu0 0
      %1387 = vmatpush1.bf16.xpose.msra.mxu0 0
      %1388 = vmatprep.subr.bf16.mxu0 0
      %1389 = vmatpush1.bf16.xpose.msra.mxu0 0
      %1390 = vmatprep.subr.bf16.mxu0 0
      %1391 = vmatpush1.bf16.xpose.msra.mxu0 0
      %1392 = vmatprep.mubr.bf16.mxu0 0
      %1393 = vmatmul.mubr.bf16.gmra.mrb[0].mxu0 %v1349
      %v1394 = vpop.f32.mrb[0].mxu0
      %v1395 = vadd.f32 0.0, %v1394
      %v1396 = vpop.f32.mrb[0].mxu0
      %v1397 = vpop.f32.mrb[0].mxu0
      %v1398 = vadd.f32 0.0, %v1397
      %v1399 = vpop.f32.mrb[0].mxu0
      %1400 = vmatprep.mubr.bf16.mxu0 0
      %1401 = vmatmul.mubr.bf16.gmra.mrb[0].mxu0 %v1352
      %v1402 = vpop.f32.mrb[0].mxu0
      %v1403 = vadd.f32 0.0, %v1402
      %v1404 = vpop.f32.mrb[0].mxu0
      %v1405 = vpop.f32.mrb[0].mxu0
      %v1406 = vpop.f32.mrb[0].mxu0
      %1407 = vdwg.mxu0
      %v1408 = vmul.f32 %v1395, 0.35355338
      %v1409 = vmul.f32 %v1398, 0.35355338
      %v1410 = vmul.f32 %v1403, 0.35355338
      %v1411 = vadd.f32 %v1408, %v788
      %v1412 = vadd.f32 %v1409, %v788
      %v1413 = vadd.f32 %v1410, %v788
      %v1414 = vsel %vm864, %v1411, -inf
      %1415 = vmax.xlane.f32.xlu0 %v1414
      %v1416 = vpop.xlane.xlu0 %1415
      %v1417 = vsel %vm864, %v1412, -inf
      %1418 = vmax.xlane.f32.xlu0 %v1417
      %v1419 = vpop.xlane.xlu0 %1418
      %v1420 = vsel %vm864, %v1413, -inf
      %1421 = vmax.xlane.f32.xlu0 %v1420
      %v1422 = vpop.xlane.xlu0 %1421
      %v1423 = vsub.f32 %v1411, %v1416
      %v1424 = vsub.f32 %v1412, %v1419
      %v1425 = vsub.f32 %v1413, %v1422
      %v1426 = vmul.f32 %v1423, 1.442695
      %v1427 = vpow.pop %v1426
      %v1428 = vmul.f32 %v1424, 1.442695
      %v1429 = vpow.pop %v1428
      %v1430 = vmul.f32 %v1425, 1.442695
      %v1431 = vpow.pop %v1430
      %v1432 = vsel %vm864, %v1427, 0.0
      %1433 = vadd.xlane.f32.xlu0 %v1432
      %v1434 = vpop.xlane.xlu0 %1433
      %v1435 = vsel %vm864, %v1429, 0.0
      %1436 = vadd.xlane.f32.xlu0 %v1435
      %v1437 = vpop.xlane.xlu0 %1436
      %v1438 = vsel %vm864, %v1431, 0.0
      %1439 = vadd.xlane.f32.xlu0 %v1438
      %v1440 = vpop.xlane.xlu0 %1439
      %v1441 = vrcp.pop %v1434
      %v1442 = vrcp.pop %v1437
      %v1443 = vrcp.pop %v1440
      %v1444 = vmul.f32 %v1427, %v1441
      %v1445 = vmul.f32 %v1429, %v1442
      %v1446 = vmul.f32 %v1431, %v1443
      %v1447 = vpack.c.bf16 %v1445, %v1444
      %v1448 = vpack.c.bf16 %v1446, %v1446
      %1449 = vrot.lane.b32.xlu0 %v789, 40
      %v1450 = vpop.permute.xlu0 %1449
      %1451 = vrot.lane.b32.xlu0 %v790, 40
      %v1452 = vpop.permute.xlu0 %1451
      %v1455 = vsel %vm864, %v1447, 0
      %v1458 = vsel %vm864, %v1448, 0
      %v1461 = vsel %vm911, %v1452, 0
      %1463 = vmatprep.subr.bf16.mxu0 0
      %1464 = vmatpush1.bf16.msra.mxu0 %v1450
      %1465 = vmatprep.subr.bf16.mxu0 0
      %1466 = vmatpush1.bf16.msra.mxu0 %v1461
      %1467 = vmatprep.subr.bf16.mxu0 0
      %1468 = vmatpush1.bf16.msra.mxu0 0
      %1469 = vmatprep.subr.bf16.mxu0 0
      %1470 = vmatpush1.bf16.msra.mxu0 0
      %1471 = vmatprep.subr.bf16.mxu0 0
      %1472 = vmatpush1.bf16.msra.mxu0 0
      %1473 = vmatprep.subr.bf16.mxu0 0
      %1474 = vmatpush1.bf16.msra.mxu0 0
      %1475 = vmatprep.subr.bf16.mxu0 0
      %1476 = vmatpush1.bf16.msra.mxu0 0
      %1477 = vmatprep.subr.bf16.mxu0 0
      %1478 = vmatpush1.bf16.msra.mxu0 0
      %1479 = vmatprep.subr.bf16.mxu0 0
      %1480 = vmatpush1.bf16.msra.mxu0 0
      %1481 = vmatprep.subr.bf16.mxu0 0
      %1482 = vmatpush1.bf16.msra.mxu0 0
      %1483 = vmatprep.subr.bf16.mxu0 0
      %1484 = vmatpush1.bf16.msra.mxu0 0
      %1485 = vmatprep.subr.bf16.mxu0 0
      %1486 = vmatpush1.bf16.msra.mxu0 0
      %1487 = vmatprep.subr.bf16.mxu0 0
      %1488 = vmatpush1.bf16.msra.mxu0 0
      %1489 = vmatprep.subr.bf16.mxu0 0
      %1490 = vmatpush1.bf16.msra.mxu0 0
      %1491 = vmatprep.subr.bf16.mxu0 0
      %1492 = vmatpush1.bf16.msra.mxu0 0
      %1493 = vmatprep.subr.bf16.mxu0 0
      %1494 = vmatpush1.bf16.msra.mxu0 0
      %1495 = vmatprep.mubr.bf16.mxu0 0
      %1496 = vmatmul.mubr.bf16.gmra.mrb[0].mxu0 %v1455
      %v1497 = vpop.f32.mrb[0].mxu0
      %v1498 = vadd.f32 0.0, %v1497
      %v1499 = vpop.f32.mrb[0].mxu0
      %v1500 = vpop.f32.mrb[0].mxu0
      %v1501 = vadd.f32 0.0, %v1500
      %v1502 = vpop.f32.mrb[0].mxu0
      %1503 = vmatprep.mubr.bf16.mxu0 0
      %1504 = vmatmul.mubr.bf16.gmra.mrb[0].mxu0 %v1458
      %v1505 = vpop.f32.mrb[0].mxu0
      %v1506 = vadd.f32 0.0, %v1505
      %v1507 = vpop.f32.mrb[0].mxu0
      %v1508 = vpop.f32.mrb[0].mxu0
      %v1509 = vpop.f32.mrb[0].mxu0
      %1510 = vdwg.mxu0
      %1514 = vrot.lane.b32.xlu0 %v1498, 24
      %v1515 = vpop.permute.xlu0 %1514
      %1516 = vrot.lane.b32.xlu0 %v1501, 24
      %v1517 = vpop.permute.xlu0 %1516
      %1518 = vrot.lane.b32.xlu0 %v1506, 24
      %v1519 = vpop.permute.xlu0 %1518
      %vm1523 = vcmask 261312
      %1524 = vst.msk [vmem:[#allocation3] sm:$0xff] %vm1523, %v1515
      %1525 = vst.msk [vmem:[#allocation3 + $0x8] sm:$0xff] %vm1523, %v1517
      %1526 = vst.msk [vmem:[#allocation3 + $0x10] sm:$0xff] %vm1523, %v1519
      %v1527 = vld [vmem:[#allocation3] sm:$0xff]
      %v1528 = vld [vmem:[#allocation3 + $0x8] sm:$0xff]
      %v1529 = vld [vmem:[#allocation3 + $0x10] sm:$0xff]
      %v1530 = vld [vmem:[%s600] sm:$0xf]
      %v1531 = vld [vmem:[%s600 + $0x4] sm:$0xf]
      %v1532 = vld [vmem:[%s600 + $0x8] sm:$0xf]
      %v1533 = vld [vmem:[%s600 + $0xc] sm:$0xf]
      %v1534 = vpack.c.bf16 %v1528, %v1527
      %v1535 = vpack.c.bf16 %v1529, %v1529
      %v1540 = vunpack.c.l.b16 %v1530
      %v1541 = vunpack.c.l.b16 %v1531
      %v1542 = vunpack.c.l.b16 %v1532
      %v1543 = vunpack.c.l.b16 %v1533
      %v1544 = vpack.c.b16 %v1541, %v1540
      %v1545 = vpack.c.b16 %v1543, %v1542
      %v1549 = vsel %vm654, %v1534, 0
      %v1552 = vsel %vm654, %v1535, 0
      %1554 = vmatprep.subr.bf16.mxu0 0
      %1555 = vmatpush1.bf16.msra.mxu0 %v1544
      %1556 = vmatprep.subr.bf16.mxu0 0
      %1557 = vmatpush1.bf16.msra.mxu0 %v1545
      %1558 = vmatprep.subr.bf16.mxu0 0
      %1559 = vmatpush1.bf16.msra.mxu0 0
      %1560 = vmatprep.subr.bf16.mxu0 0
      %1561 = vmatpush1.bf16.msra.mxu0 0
      %1562 = vmatprep.subr.bf16.mxu0 0
      %1563 = vmatpush1.bf16.msra.mxu0 0
      %1564 = vmatprep.subr.bf16.mxu0 0
      %1565 = vmatpush1.bf16.msra.mxu0 0
      %1566 = vmatprep.subr.bf16.mxu0 0
      %1567 = vmatpush1.bf16.msra.mxu0 0
      %1568 = vmatprep.subr.bf16.mxu0 0
      %1569 = vmatpush1.bf16.msra.mxu0 0
      %1570 = vmatprep.subr.bf16.mxu0 0
      %1571 = vmatpush1.bf16.msra.mxu0 0
      %1572 = vmatprep.subr.bf16.mxu0 0
      %1573 = vmatpush1.bf16.msra.mxu0 0
      %1574 = vmatprep.subr.bf16.mxu0 0
      %1575 = vmatpush1.bf16.msra.mxu0 0
      %1576 = vmatprep.subr.bf16.mxu0 0
      %1577 = vmatpush1.bf16.msra.mxu0 0
      %1578 = vmatprep.subr.bf16.mxu0 0
      %1579 = vmatpush1.bf16.msra.mxu0 0
      %1580 = vmatprep.subr.bf16.mxu0 0
      %1581 = vmatpush1.bf16.msra.mxu0 0
      %1582 = vmatprep.subr.bf16.mxu0 0
      %1583 = vmatpush1.bf16.msra.mxu0 0
      %1584 = vmatprep.subr.bf16.mxu0 0
      %1585 = vmatpush1.bf16.msra.mxu0 0
      %1586 = vmatprep.mubr.bf16.mxu0 0
      %1587 = vmatmul.mubr.bf16.gmra.mrb[0].mxu0 %v1549
      %v1588 = vpop.f32.mrb[0].mxu0
      %v1589 = vadd.f32 0.0, %v1588
      %v1590 = vpop.f32.mrb[0].mxu0
      %v1591 = vpop.f32.mrb[0].mxu0
      %v1592 = vadd.f32 0.0, %v1591
      %v1593 = vpop.f32.mrb[0].mxu0
      %1594 = vmatprep.mubr.bf16.mxu0 0
      %1595 = vmatmul.mubr.bf16.gmra.mrb[0].mxu0 %v1552
      %v1596 = vpop.f32.mrb[0].mxu0
      %v1597 = vadd.f32 0.0, %v1596
      %v1598 = vpop.f32.mrb[0].mxu0
      %v1599 = vpop.f32.mrb[0].mxu0
      %v1600 = vpop.f32.mrb[0].mxu0
      %1601 = vdwg.mxu0
      %v1602 = vadd.f32 %v649, %v1589
      %v1603 = vadd.f32 %v650, %v1592
      %v1604 = vadd.f32 %v651, %v1597
      %v1605 = vld [vmem:[%s603] sm:$0x1]
      %v1607 = vlaneseq
      %v1608 = vshrl.u32 %v1607, 7
      %v1609 = vsub.s32 0, %v1608
      %v1610 = vrot.slane %v1605, %v1609
      %v1612 = vadd.f32 %v1602, %v1610
      %v1613 = vadd.f32 %v1603, %v1610
      %v1614 = vadd.f32 %v1604, %v1610
      %v1615 = vld [vmem:[%s606] sm:$0x1]
      %v1616 = vld [vmem:[%s609] sm:$0x1]
      %v1617 = vsel %vm654, %v1612, 0.0
      %1618 = vadd.xlane.f32.xlu0 %v1617
      %v1619 = vpop.xlane.xlu0 %1618
      %v1620 = vsel %vm654, %v1613, 0.0
      %1621 = vadd.xlane.f32.xlu0 %v1620
      %v1622 = vpop.xlane.xlu0 %1621
      %v1623 = vsel %vm654, %v1614, 0.0
      %1624 = vadd.xlane.f32.xlu0 %v1623
      %v1625 = vpop.xlane.xlu0 %1624
      %v1626 = vmul.f32 %v1619, %v664
      %v1627 = vmul.f32 %v1622, %v664
      %v1628 = vmul.f32 %v1625, %v664
      %v1629 = vsub.f32 %v1612, %v1626
      %v1630 = vsub.f32 %v1613, %v1627
      %v1631 = vsub.f32 %v1614, %v1628
      %v1632 = vmul.f32 %v1629, %v1629
      %v1633 = vmul.f32 %v1630, %v1630
      %v1634 = vmul.f32 %v1631, %v1631
      %v1635 = vsel %vm654, %v1632, 0.0
      %1636 = vadd.xlane.f32.xlu0 %v1635
      %v1637 = vpop.xlane.xlu0 %1636
      %v1638 = vsel %vm654, %v1633, 0.0
      %1639 = vadd.xlane.f32.xlu0 %v1638
      %v1640 = vpop.xlane.xlu0 %1639
      %v1641 = vsel %vm654, %v1634, 0.0
      %1642 = vadd.xlane.f32.xlu0 %v1641
      %v1643 = vpop.xlane.xlu0 %1642
      %v1644 = vmul.f32 %v1637, %v664
      %v1645 = vmul.f32 %v1640, %v664
      %v1646 = vmul.f32 %v1643, %v664
      %v1647 = vadd.f32 %v1644, 1e-05
      %v1648 = vadd.f32 %v1645, 1e-05
      %v1649 = vadd.f32 %v1646, 1e-05
      %v1650 = vrsqrt.pop %v1647
      %v1651 = vrsqrt.pop %v1648
      %v1652 = vrsqrt.pop %v1649
      %v1653 = vmul.f32 %v1629, %v1650
      %v1654 = vmul.f32 %v1630, %v1651
      %v1655 = vmul.f32 %v1631, %v1652
      %v1657 = vlaneseq
      %v1658 = vshrl.u32 %v1657, 7
      %v1659 = vsub.s32 0, %v1658
      %v1660 = vrot.slane %v1615, %v1659
      %v1662 = vmul.f32 %v1653, %v1660
      %v1663 = vmul.f32 %v1654, %v1660
      %v1664 = vmul.f32 %v1655, %v1660
      %v1666 = vlaneseq
      %v1667 = vshrl.u32 %v1666, 7
      %v1668 = vsub.s32 0, %v1667
      %v1669 = vrot.slane %v1616, %v1668
      %v1671 = vadd.f32 %v1662, %v1669
      %v1672 = vadd.f32 %v1663, %v1669
      %v1673 = vadd.f32 %v1664, %v1669
      %v1674 = vld [vmem:[%s614] sm:$0xf]
      %v1675 = vld [vmem:[%s614 + $0x4] sm:$0xf]
      %v1676 = vld [vmem:[%s614 + $0x8] sm:$0xf]
      %v1677 = vld [vmem:[%s614 + $0xc] sm:$0xf]
      %v1678 = vpack.c.bf16 %v1672, %v1671
      %v1679 = vpack.c.bf16 %v1673, %v1673
      %v1680 = vld [vmem:[%s617] sm:$0x1]
      %v1682 = vlaneseq
      %v1683 = vshrl.u32 %v1682, 7
      %v1684 = vsub.s32 0, %v1683
      %v1685 = vrot.slane %v1680, %v1684
      %v1691 = vunpack.c.l.b16 %v1674
      %v1692 = vunpack.c.l.b16 %v1675
      %v1693 = vunpack.c.l.b16 %v1676
      %v1694 = vunpack.c.l.b16 %v1677
      %v1695 = vpack.c.b16 %v1692, %v1691
      %v1696 = vpack.c.b16 %v1694, %v1693
      %v1700 = vsel %vm654, %v1678, 0
      %v1703 = vsel %vm654, %v1679, 0
      %1705 = vmatprep.subr.bf16.mxu0 0
      %1706 = vmatpush1.bf16.msra.mxu0 %v1695
      %1707 = vmatprep.subr.bf16.mxu0 0
      %1708 = vmatpush1.bf16.msra.mxu0 %v1696
      %1709 = vmatprep.subr.bf16.mxu0 0
      %1710 = vmatpush1.bf16.msra.mxu0 0
      %1711 = vmatprep.subr.bf16.mxu0 0
      %1712 = vmatpush1.bf16.msra.mxu0 0
      %1713 = vmatprep.subr.bf16.mxu0 0
      %1714 = vmatpush1.bf16.msra.mxu0 0
      %1715 = vmatprep.subr.bf16.mxu0 0
      %1716 = vmatpush1.bf16.msra.mxu0 0
      %1717 = vmatprep.subr.bf16.mxu0 0
      %1718 = vmatpush1.bf16.msra.mxu0 0
      %1719 = vmatprep.subr.bf16.mxu0 0
      %1720 = vmatpush1.bf16.msra.mxu0 0
      %1721 = vmatprep.subr.bf16.mxu0 0
      %1722 = vmatpush1.bf16.msra.mxu0 0
      %1723 = vmatprep.subr.bf16.mxu0 0
      %1724 = vmatpush1.bf16.msra.mxu0 0
      %1725 = vmatprep.subr.bf16.mxu0 0
      %1726 = vmatpush1.bf16.msra.mxu0 0
      %1727 = vmatprep.subr.bf16.mxu0 0
      %1728 = vmatpush1.bf16.msra.mxu0 0
      %1729 = vmatprep.subr.bf16.mxu0 0
      %1730 = vmatpush1.bf16.msra.mxu0 0
      %1731 = vmatprep.subr.bf16.mxu0 0
      %1732 = vmatpush1.bf16.msra.mxu0 0
      %1733 = vmatprep.subr.bf16.mxu0 0
      %1734 = vmatpush1.bf16.msra.mxu0 0
      %1735 = vmatprep.subr.bf16.mxu0 0
      %1736 = vmatpush1.bf16.msra.mxu0 0
      %1737 = vmatprep.mubr.bf16.mxu0 0
      %1738 = vmatmul.mubr.bf16.gmra.mrb[0].mxu0 %v1700
      %v1739 = vpop.f32.mrb[0].mxu0
      %v1740 = vadd.f32 %v1685, %v1739
      %v1741 = vpop.f32.mrb[0].mxu0
      %v1742 = vpop.f32.mrb[0].mxu0
      %v1743 = vadd.f32 %v1685, %v1742
      %v1744 = vpop.f32.mrb[0].mxu0
      %1745 = vmatprep.mubr.bf16.mxu0 0
      %1746 = vmatmul.mubr.bf16.gmra.mrb[0].mxu0 %v1703
      %v1747 = vpop.f32.mrb[0].mxu0
      %v1748 = vadd.f32 %v1685, %v1747
      %v1749 = vpop.f32.mrb[0].mxu0
      %v1750 = vpop.f32.mrb[0].mxu0
      %v1751 = vpop.f32.mrb[0].mxu0
      %1752 = vdwg.mxu0
      %v1753 = vmul.f32 %v1740, 0.5
      %v1754 = vmul.f32 %v1743, 0.5
      %v1755 = vmul.f32 %v1748, 0.5
      %v1756 = vmul.f32 %v1740, 0.70710677
      %v1757 = vmul.f32 %v1743, 0.70710677
      %v1758 = vmul.f32 %v1748, 0.70710677
      %v1759 = verf.f32.pop %v1756
      %v1760 = verf.f32.pop %v1757
      %v1761 = verf.f32.pop %v1758
      %v1762 = vadd.f32 %v1759, 1.0
      %v1763 = vadd.f32 %v1760, 1.0
      %v1764 = vadd.f32 %v1761, 1.0
      %v1765 = vmul.f32 %v1753, %v1762
      %v1766 = vmul.f32 %v1754, %v1763
      %v1767 = vmul.f32 %v1755, %v1764
      %v1768 = vld [vmem:[%s622] sm:$0xf]
      %v1769 = vld [vmem:[%s622 + $0x4] sm:$0xf]
      %v1770 = vld [vmem:[%s622 + $0x8] sm:$0xf]
      %v1771 = vld [vmem:[%s622 + $0xc] sm:$0xf]
      %v1772 = vld [vmem:[%s622 + $0x10] sm:$0xf]
      %v1773 = vld [vmem:[%s622 + $0x14] sm:$0xf]
      %v1774 = vld [vmem:[%s622 + $0x18] sm:$0xf]
      %v1775 = vld [vmem:[%s622 + $0x1c] sm:$0xf]
      %v1776 = vpack.c.bf16 %v1766, %v1765
      %v1777 = vpack.c.bf16 %v1767, %v1767
      %v1786 = vunpack.c.l.b16 %v1768
      %v1787 = vunpack.c.l.b16 %v1769
      %v1788 = vunpack.c.l.b16 %v1770
      %v1789 = vunpack.c.l.b16 %v1771
      %v1790 = vunpack.c.l.b16 %v1772
      %v1791 = vunpack.c.l.b16 %v1773
      %v1792 = vunpack.c.l.b16 %v1774
      %v1793 = vunpack.c.l.b16 %v1775
      %v1794 = vpack.c.b16 %v1787, %v1786
      %v1795 = vpack.c.b16 %v1789, %v1788
      %v1796 = vpack.c.b16 %v1791, %v1790
      %v1797 = vpack.c.b16 %v1793, %v1792
      %vm1802 = vcmask 523264
      %v1804 = vsel %vm1802, %v1776, 0
      %v1807 = vsel %vm1802, %v1777, 0
      %1809 = vmatprep.subr.bf16.mxu0 0
      %1810 = vmatpush1.bf16.msra.mxu0 %v1794
      %1811 = vmatprep.subr.bf16.mxu0 0
      %1812 = vmatpush1.bf16.msra.mxu0 %v1795
      %1813 = vmatprep.subr.bf16.mxu0 0
      %1814 = vmatpush1.bf16.msra.mxu0 %v1796
      %1815 = vmatprep.subr.bf16.mxu0 0
      %1816 = vmatpush1.bf16.msra.mxu0 %v1797
      %1817 = vmatprep.subr.bf16.mxu0 0
      %1818 = vmatpush1.bf16.msra.mxu0 0
      %1819 = vmatprep.subr.bf16.mxu0 0
      %1820 = vmatpush1.bf16.msra.mxu0 0
      %1821 = vmatprep.subr.bf16.mxu0 0
      %1822 = vmatpush1.bf16.msra.mxu0 0
      %1823 = vmatprep.subr.bf16.mxu0 0
      %1824 = vmatpush1.bf16.msra.mxu0 0
      %1825 = vmatprep.subr.bf16.mxu0 0
      %1826 = vmatpush1.bf16.msra.mxu0 0
      %1827 = vmatprep.subr.bf16.mxu0 0
      %1828 = vmatpush1.bf16.msra.mxu0 0
      %1829 = vmatprep.subr.bf16.mxu0 0
      %1830 = vmatpush1.bf16.msra.mxu0 0
      %1831 = vmatprep.subr.bf16.mxu0 0
      %1832 = vmatpush1.bf16.msra.mxu0 0
      %1833 = vmatprep.subr.bf16.mxu0 0
      %1834 = vmatpush1.bf16.msra.mxu0 0
      %1835 = vmatprep.subr.bf16.mxu0 0
      %1836 = vmatpush1.bf16.msra.mxu0 0
      %1837 = vmatprep.subr.bf16.mxu0 0
      %1838 = vmatpush1.bf16.msra.mxu0 0
      %1839 = vmatprep.subr.bf16.mxu0 0
      %1840 = vmatpush1.bf16.msra.mxu0 0
      %1841 = vmatprep.mubr.bf16.mxu0 0
      %1842 = vmatmul.mubr.bf16.gmra.mrb[0].mxu0 %v1804
      %v1843 = vpop.f32.mrb[0].mxu0
      %v1844 = vadd.f32 0.0, %v1843
      %v1845 = vpop.f32.mrb[0].mxu0
      %v1846 = vpop.f32.mrb[0].mxu0
      %v1847 = vadd.f32 0.0, %v1846
      %v1848 = vpop.f32.mrb[0].mxu0
      %1849 = vmatprep.mubr.bf16.mxu0 0
      %1850 = vmatmul.mubr.bf16.gmra.mrb[0].mxu0 %v1807
      %v1851 = vpop.f32.mrb[0].mxu0
      %v1852 = vadd.f32 0.0, %v1851
      %v1853 = vpop.f32.mrb[0].mxu0
      %v1854 = vpop.f32.mrb[0].mxu0
      %v1855 = vpop.f32.mrb[0].mxu0
      %1856 = vdwg.mxu0
      %v1857 = vadd.f32 %v1612, %v1844
      %v1858 = vadd.f32 %v1613, %v1847
      %v1859 = vadd.f32 %v1614, %v1852
      %v1860 = vld [vmem:[%s625] sm:$0x1]
      %v1862 = vlaneseq
      %v1863 = vshrl.u32 %v1862, 7
      %v1864 = vsub.s32 0, %v1863
      %v1865 = vrot.slane %v1860, %v1864
      %v1867 = vadd.f32 %v1857, %v1865
      %v1868 = vadd.f32 %v1858, %v1865
      %v1869 = vadd.f32 %v1859, %v1865
      %1870 = vst.msk [vmem:[#allocation2] sm:$0xff] %vm654, %v1867
      %1871 = vst.msk [vmem:[#allocation2 + $0x8] sm:$0xff] %vm654, %v1868
      %1872 = vst.msk [vmem:[#allocation2 + $0x10] sm:$0xff] %vm654, %v1869
      %p1873 = scmp.eq.s32.totalorder %s29, 1
      // Predicated region
      $region77: #{_lambda_.4} parent=71 // pred_check
        %p1874 = pneg %p1873
      $region78: #{_lambda_.4} parent=71 // pred_check_branch
        %1876 = sbr.rel (%p1874) target = $region80
      $region79: #{_lambda_.4} parent=71 // pred_region
        %1877 = vst.msk [vmem:[%s630] sm:$0xff] %vm654, %v1867
        %1878 = vst.msk [vmem:[%s630 + $0x8] sm:$0xff] %vm654, %v1868
        %1879 = vst.msk [vmem:[%s630 + $0x10] sm:$0xff] %vm654, %v1869
      $region80: #{_lambda_.4} parent=71 // pred_fallthru
        _
      %p1880 = scmp.lt.s32.totalorder %s28, 1
      %s1881 = scalar_select %p1880, %s28, 1
      %s1882 = smul.addr %s1881, 3
      %s1883 = smul.addr %s1882, 8
      %s1884 = scalar_lea.vmem %s13, %s1883
      // Predicated region
      $region81: #{_lambda_.4} parent=71 // pred_check
        %p1885 = pneg %p387
      $region82: #{_lambda_.4} parent=71 // pred_check_branch
        %1887 = sbr.rel (%p1885) target = $region84
      $region83: #{_lambda_.4} parent=71 // pred_region
        _
      $region84: #{_lambda_.4} parent=71 // pred_fallthru
        _
    $region72: #{_lambda_.4} parent=5 // pred_fallthru
      _
    %p1888 = scmp.le.s32.totalorder 2, %s19
    // Predicated region
    $region85: #{_lambda_.4} parent=5 // pred_check
      %p1889 = pneg %p1888
    $region86: #{_lambda_.4} parent=5 // pred_check_branch
      %1891 = sbr.rel (%p1889) target = $region88
    $region87: #{_lambda_.4} parent=5 // pred_region
      %s1892 = ssub.s32 %s19, 2
      // Predicated region
      $region89: #{_lambda_.4} parent=87 // pred_check
        %p1893 = pneg %p393
      $region90: #{_lambda_.4} parent=87 // pred_check_branch
        %1895 = sbr.rel (%p1893) target = $region92
      $region91: #{_lambda_.4} parent=87 // pred_region
        %p1896 = scmp.lt.s32.totalorder %s30, 1
        %s1897 = scalar_select %p1896, %s30, 1
        %s1898 = smul.addr %s1897, 3
        %s1899 = smul.addr %s1898, 8
        %s1900 = scalar_lea.vmem %s13, %s1899
      $region92: #{_lambda_.4} parent=87 // pred_fallthru
        _
    $region88: #{_lambda_.4} parent=5 // pred_fallthru
      _
  $region6: #{_lambda_.4} parent=0 // loop_footer
    %s23 = sadd.s32 1, %s19
  $region7: #{_lambda_.4} parent=0 // loop_footer_branch
    %18 = sbr.rel target = $region3
  $region8: #{_lambda_.4} parent=0 // loop_exit
    _

</llo_original>
